<compile_context>
chip_gen: v5e
topology: v5e:2x2
jax: 0.10.0
libtpu: 0.0.40
codegen_flags: <defaults>
</compile_context>

<pallas_src>
import functools
import math

import jax
import jax.numpy as jnp
from jax.experimental import pallas as pl
from jax.experimental.pallas import tpu as pltpu


# ----------------------------- fused Pallas kernel ----------------------------

def _encoder_kernel(
    xf_ref, pos_ref,
    patch_w_ref, patch_b_ref,
    pos_w_ref, pos_b_ref,
    wqkv_ref, bqkv_ref, wo_ref, bo_ref,
    w1_ref, b1_ref, w2_ref, b2_ref,
    ln1_g_ref, ln1_b_ref, ln2_g_ref, ln2_b_ref,
    lnf_g_ref, lnf_b_ref,
    o_ref,
    xbuf, attnbuf,
    *, T, B, d, nhead, nlayers, eps,
):
    S = T + 1
    dh = d // nhead
    scale = 1.0 / math.sqrt(dh)

    def ln(x, g, b):
        mu = jnp.mean(x, axis=-1, keepdims=True)
        xc = x - mu
        var = jnp.mean(xc * xc, axis=-1, keepdims=True)
        return xc * jax.lax.rsqrt(var + eps) * g + b

    # ---- patch embedding: Conv3d(k=P, s=P) over one patch == linear ----------
    # bf16 inputs, f32 accumulation on the MXU (K = 9*C*P^3 = 1152).
    pe = jnp.dot(xf_ref[...].astype(jnp.bfloat16), patch_w_ref[...],
                 preferred_element_type=jnp.float32) + patch_b_ref[...]
    # fused L2 normalize (torch.norm(dim=-1) division); eps guards zero rows.
    pe = pe * jax.lax.rsqrt(jnp.sum(pe * pe, axis=-1, keepdims=True) + 1e-12)

    # ---- position embedding for all S*B tokens (incl. next_pos token) --------
    pos = jnp.dot(pos_ref[...], pos_w_ref[...],
                  preferred_element_type=jnp.float32) + pos_b_ref[...]

    # assemble token sequence in VMEM scratch (batch-major: row = b*S + s)
    xbuf[...] = pos
    for b in range(B):
        xbuf[b * S: b * S + T, :] = (
            xbuf[b * S: b * S + T, :] + pe[b * T:(b + 1) * T, :])

    # ---- transformer encoder layers (post-norm, ReLU FFN, dropout = id) ------
    for l in range(nlayers):
        x = xbuf[...]                                               # (B*S, d)

        # fused QKV projection: one (B*S, d) @ (d, 3d) matmul
        qkv = jnp.dot(x, wqkv_ref[l],
                      preferred_element_type=jnp.float32) + bqkv_ref[l]
        q = qkv[:, 0 * d:1 * d]
        k = qkv[:, 1 * d:2 * d]
        v = qkv[:, 2 * d:3 * d]

        # attention per (batch, head); everything stays in VMEM / vregs.
        for b in range(B):
            qb = q[b * S:(b + 1) * S, :]
            kb = k[b * S:(b + 1) * S, :]
            vb = v[b * S:(b + 1) * S, :]
            for h in range(nhead):
                qh = qb[:, h * dh:(h + 1) * dh]
                kh = kb[:, h * dh:(h + 1) * dh]
                vh = vb[:, h * dh:(h + 1) * dh]
                s = jnp.dot(qh, kh.T,
                            preferred_element_type=jnp.float32) * scale
                s = s - jnp.max(s, axis=-1, keepdims=True)
                p = jnp.exp(s)
                p = p * pl.reciprocal(jnp.sum(p, axis=-1, keepdims=True),
                                      approx=True)
                ctx = jnp.dot(p, vh, preferred_element_type=jnp.float32)
                attnbuf[b * S:(b + 1) * S, h * dh:(h + 1) * dh] = ctx

        # output projection + residual + layernorm (all fused)
        o = jnp.dot(attnbuf[...], wo_ref[l],
                    preferred_element_type=jnp.float32) + bo_ref[l]
        x1 = ln(x + o, ln1_g_ref[l], ln1_b_ref[l])

        # FFN (ReLU) + residual + layernorm
        hmid = jnp.maximum(
            jnp.dot(x1, w1_ref[l], preferred_element_type=jnp.float32)
            + b1_ref[l], 0.0)
        h2 = jnp.dot(hmid, w2_ref[l],
                     preferred_element_type=jnp.float32) + b2_ref[l]
        xbuf[...] = ln(x1 + h2, ln2_g_ref[l], ln2_b_ref[l])

    # ---- final LayerNorm of the encoder stack ---------------------------------
    o_ref[...] = ln(xbuf[...], lnf_g_ref[...], lnf_b_ref[...])


# --------------------------- wrapper (thin XLA glue) ---------------------------

def encoder_greedy_forward(cfg, w, X_small, X_large, X_pos, X_next_pos):
    T, B, C, P = X_small.shape[:4]
    d = cfg["d_model"]
    S = T + 1

    # 2x2x2 neighborhood unfold of X_large (same permute as the PyTorch module)
    Xl = X_large.reshape(T, B, C, 2, P, 2, P, 2, P)
    Xl = jnp.transpose(Xl, (0, 1, 2, 3, 5, 7, 4, 6, 8)).reshape(T, B, 8 * C, P, P, P)
    X = jnp.concatenate([X_small, Xl], axis=2)                  # (T, B, 9C, P, P, P)
    # batch-major flatten: row = b*T + t, features = (9C, P, P, P) row-major
    Xf = jnp.transpose(X, (1, 0, 2, 3, 4, 5)).reshape(B * T, 9 * C * P ** 3)

    # positions (incl. the "next" position token), batch-major: row = b*S + s
    pos_seq = jnp.concatenate([X_pos, X_next_pos], axis=0)      # (S, B, 3)
    pos_bm = jnp.transpose(pos_seq, (1, 0, 2)).reshape(B * S, 3)

    inputs = (Xf, pos_bm,
              w["patch_w"], w["patch_b"],
              w["pos_w"], w["pos_b"],
              w["wqkv"], w["bqkv"], w["wo"], w["bo"],
              w["w1"], w["b1"], w["w2"], w["b2"],
              w["ln1_g"], w["ln1_b"], w["ln2_g"], w["ln2_b"],
              w["lnf_g"], w["lnf_b"])

    kern = functools.partial(_encoder_kernel, T=T, B=B, d=d,
                             nhead=cfg["nhead"], nlayers=cfg["num_layers"],
                             eps=1e-5)

    def full_spec(a):
        nd = a.ndim
        return pl.BlockSpec(a.shape, lambda i, _nd=nd: (0,) * _nd)

    out = pl.pallas_call(
        kern,
        out_shape=jax.ShapeDtypeStruct((B * S, d), jnp.float32),
        grid=(1,),
        in_specs=[full_spec(a) for a in inputs],
        out_specs=pl.BlockSpec((B * S, d), lambda i: (0, 0)),
        scratch_shapes=[pltpu.VMEM((B * S, d), jnp.float32),   # token buffer
                        pltpu.VMEM((B * S, d), jnp.float32)],  # attention output
        compiler_params=pltpu.CompilerParams(
            dimension_semantics=("arbitrary",)),  # single core: B*S=10 is tiny
    )(*inputs)

    # X_emb[-1, ...] in (S, B, d) order == last sequence element per batch
    return out.reshape(B, S, d)[:, -1, :]


# ------------------------------ parameter init ---------------------------------

def init_weights(cfg, key):
    C, d, P = cfg["in_channels"], cfg["d_model"], cfg["patch_size"]
    ff, L = cfg["dim_feedforward"], cfg["num_layers"]
    kin = 9 * C * P ** 3

    def dense(k, shape, scale=0.02):
        return scale * jax.random.normal(k, shape, dtype=jnp.float32)

    keys = jax.random.split(key, 8)
    w = {
        # patch projection stored bf16 (MXU bf16 inputs, f32 accumulation)
        "patch_w": dense(keys[0], (kin, d)).astype(jnp.bfloat16),
        "patch_b": jnp.zeros((1, d), jnp.float32),
        "pos_w": dense(keys[1], (3, d)),
        "pos_b": jnp.zeros((1, d), jnp.float32),
        # per-layer weights stacked along a leading L axis
        "wqkv": dense(keys[2], (L, d, 3 * d)),
        "bqkv": jnp.zeros((L, 1, 3 * d), jnp.float32),
        "wo": dense(keys[3], (L, d, d)),
        "bo": jnp.zeros((L, 1, d), jnp.float32),
        "w1": dense(keys[4], (L, d, ff)),
        "b1": jnp.zeros((L, 1, ff), jnp.float32),
        "w2": dense(keys[5], (L, ff, d)),
        "b2": jnp.zeros((L, 1, d), jnp.float32),
        "ln1_g": jnp.ones((L, 1, d), jnp.float32),
        "ln1_b": jnp.zeros((L, 1, d), jnp.float32),
        "ln2_g": jnp.ones((L, 1, d), jnp.float32),
        "ln2_b": jnp.zeros((L, 1, d), jnp.float32),
        "lnf_g": jnp.ones((1, d), jnp.float32),
        "lnf_b": jnp.zeros((1, d), jnp.float32),
    }
    return w


# ----------------------------------- main ---------------------------------------

if __name__ == "__main__":
    cfg = dict(in_channels=2, d_model=32, patch_size=4, nhead=4,
               dim_feedforward=64, dropout=0.0, num_layers=2, if_pos_enc=True)

    T, B, C, P = 4, 2, cfg["in_channels"], cfg["patch_size"]

    key = jax.random.PRNGKey(0)
    kw, k1, k2, k3, k4 = jax.random.split(key, 5)
    weights = init_weights(cfg, kw)

    X_small = jax.random.normal(k1, (T, B, C, P, P, P), dtype=jnp.float32)
    X_large = jax.random.normal(k2, (T, B, C, 2 * P, 2 * P, 2 * P), dtype=jnp.float32)
    X_pos = jax.random.normal(k3, (T, B, 3), dtype=jnp.float32)
    X_next_pos = jax.random.normal(k4, (1, B, 3), dtype=jnp.float32)

    fwd = jax.jit(lambda w, a, b, c, e: encoder_greedy_forward(cfg, w, a, b, c, e))
    out = fwd(weights, X_small, X_large, X_pos, X_next_pos)
    out = jax.block_until_ready(out)

    assert out.shape == (B, cfg["d_model"]), out.shape
    assert bool(jnp.all(jnp.isfinite(out)))
    print("KERNEL_OK")
</pallas_src>

<mosaic_0001>
module attributes {stable_mosaic.version = 11 : i64} {
  func.func @_encoder_kernel(%arg0: i32, %arg1: memref<8x1152xf32, #tpu.memory_space<vmem>>, %arg2: memref<10x3xf32, #tpu.memory_space<vmem>>, %arg3: memref<1152x32xbf16, #tpu.memory_space<vmem>>, %arg4: memref<1x32xf32, #tpu.memory_space<vmem>>, %arg5: memref<3x32xf32, #tpu.memory_space<vmem>>, %arg6: memref<1x32xf32, #tpu.memory_space<vmem>>, %arg7: memref<2x32x96xf32, #tpu.memory_space<vmem>>, %arg8: memref<2x1x96xf32, #tpu.memory_space<vmem>>, %arg9: memref<2x32x32xf32, #tpu.memory_space<vmem>>, %arg10: memref<2x1x32xf32, #tpu.memory_space<vmem>>, %arg11: memref<2x32x64xf32, #tpu.memory_space<vmem>>, %arg12: memref<2x1x64xf32, #tpu.memory_space<vmem>>, %arg13: memref<2x64x32xf32, #tpu.memory_space<vmem>>, %arg14: memref<2x1x32xf32, #tpu.memory_space<vmem>>, %arg15: memref<2x1x32xf32, #tpu.memory_space<vmem>>, %arg16: memref<2x1x32xf32, #tpu.memory_space<vmem>>, %arg17: memref<2x1x32xf32, #tpu.memory_space<vmem>>, %arg18: memref<2x1x32xf32, #tpu.memory_space<vmem>>, %arg19: memref<1x32xf32, #tpu.memory_space<vmem>>, %arg20: memref<1x32xf32, #tpu.memory_space<vmem>>, %arg21: memref<10x32xf32, #tpu.memory_space<vmem>>, %arg22: memref<10x32xf32, #tpu.memory_space<vmem>>, %arg23: memref<10x32xf32, #tpu.memory_space<vmem>>) attributes {dimension_semantics = [#tpu.dimension_semantics<arbitrary>], iteration_bounds = array<i64: 1>, scalar_prefetch = 0 : i64, scratch_operands = 2 : i64, tpu.core_type = #tpu.core_type<tc>, window_params = [{pipeline_mode = #tpu.pipeline_mode<synchronous>, transform_indices = @transform_0, window_bounds = array<i64: 8, 1152>}, {pipeline_mode = #tpu.pipeline_mode<synchronous>, transform_indices = @transform_1, window_bounds = array<i64: 10, 3>}, {pipeline_mode = #tpu.pipeline_mode<synchronous>, transform_indices = @transform_2, window_bounds = array<i64: 1152, 32>}, {pipeline_mode = #tpu.pipeline_mode<synchronous>, transform_indices = @transform_3, window_bounds = array<i64: 1, 32>}, {pipeline_mode = #tpu.pipeline_mode<synchronous>, transform_indices = @transform_4, window_bounds = array<i64: 3, 32>}, {pipeline_mode = #tpu.pipeline_mode<synchronous>, transform_indices = @transform_5, window_bounds = array<i64: 1, 32>}, {pipeline_mode = #tpu.pipeline_mode<synchronous>, transform_indices = @transform_6, window_bounds = array<i64: 2, 32, 96>}, {pipeline_mode = #tpu.pipeline_mode<synchronous>, transform_indices = @transform_7, window_bounds = array<i64: 2, 1, 96>}, {pipeline_mode = #tpu.pipeline_mode<synchronous>, transform_indices = @transform_8, window_bounds = array<i64: 2, 32, 32>}, {pipeline_mode = #tpu.pipeline_mode<synchronous>, transform_indices = @transform_9, window_bounds = array<i64: 2, 1, 32>}, {pipeline_mode = #tpu.pipeline_mode<synchronous>, transform_indices = @transform_10, window_bounds = array<i64: 2, 32, 64>}, {pipeline_mode = #tpu.pipeline_mode<synchronous>, transform_indices = @transform_11, window_bounds = array<i64: 2, 1, 64>}, {pipeline_mode = #tpu.pipeline_mode<synchronous>, transform_indices = @transform_12, window_bounds = array<i64: 2, 64, 32>}, {pipeline_mode = #tpu.pipeline_mode<synchronous>, transform_indices = @transform_13, window_bounds = array<i64: 2, 1, 32>}, {pipeline_mode = #tpu.pipeline_mode<synchronous>, transform_indices = @transform_14, window_bounds = array<i64: 2, 1, 32>}, {pipeline_mode = #tpu.pipeline_mode<synchronous>, transform_indices = @transform_15, window_bounds = array<i64: 2, 1, 32>}, {pipeline_mode = #tpu.pipeline_mode<synchronous>, transform_indices = @transform_16, window_bounds = array<i64: 2, 1, 32>}, {pipeline_mode = #tpu.pipeline_mode<synchronous>, transform_indices = @transform_17, window_bounds = array<i64: 2, 1, 32>}, {pipeline_mode = #tpu.pipeline_mode<synchronous>, transform_indices = @transform_18, window_bounds = array<i64: 1, 32>}, {pipeline_mode = #tpu.pipeline_mode<synchronous>, transform_indices = @transform_19, window_bounds = array<i64: 1, 32>}, {pipeline_mode = #tpu.pipeline_mode<synchronous>, transform_indices = @transform_20, window_bounds = array<i64: 10, 32>}]} {
    %c0 = arith.constant 0 : index
    %c0_0 = arith.constant 0 : index
    %0 = vector.load %arg1[%c0, %c0_0] : memref<8x1152xf32, #tpu.memory_space<vmem>>, vector<8x1152xf32>
    %1 = arith.truncf %0 : vector<8x1152xf32> to vector<8x1152xbf16>
    %c0_1 = arith.constant 0 : index
    %c0_2 = arith.constant 0 : index
    %2 = vector.load %arg3[%c0_1, %c0_2] : memref<1152x32xbf16, #tpu.memory_space<vmem>>, vector<1152x32xbf16>
    %cst = arith.constant dense<0.000000e+00> : vector<8x32xf32>
    %3 = tpu.matmul %1, %2, %cst {dimension_numbers = #tpu.dot_dimension_numbers<[1], [0], [0], [1], [0, 0, 1, 1], [], []>} : vector<8x1152xbf16>, vector<1152x32xbf16>, vector<8x32xf32> -> vector<8x32xf32>
    %c0_3 = arith.constant 0 : index
    %c0_4 = arith.constant 0 : index
    %4 = vector.load %arg4[%c0_3, %c0_4] : memref<1x32xf32, #tpu.memory_space<vmem>>, vector<1x32xf32>
    %5 = vector.broadcast %4 : vector<1x32xf32> to vector<8x32xf32>
    %6 = arith.addf %3, %5 : vector<8x32xf32>
    %7 = arith.mulf %6, %6 : vector<8x32xf32>
    %cst_5 = arith.constant dense<0.000000e+00> : vector<8xf32>
    %8 = vector.multi_reduction <add>, %7, %cst_5 [1] : vector<8x32xf32> to vector<8xf32>
    %9 = vector.shape_cast %8 : vector<8xf32> to vector<8x1xf32>
    %cst_6 = arith.constant 9.99999996E-13 : f32
    %10 = vector.broadcast %cst_6 : f32 to vector<8x1xf32>
    %11 = arith.addf %9, %10 : vector<8x1xf32>
    %12 = math.rsqrt %11 : vector<8x1xf32>
    %13 = vector.broadcast %12 : vector<8x1xf32> to vector<8x32xf32>
    %14 = arith.mulf %6, %13 : vector<8x32xf32>
    %c0_7 = arith.constant 0 : index
    %c0_8 = arith.constant 0 : index
    %15 = vector.load %arg2[%c0_7, %c0_8] : memref<10x3xf32, #tpu.memory_space<vmem>>, vector<10x3xf32>
    %c0_9 = arith.constant 0 : index
    %c0_10 = arith.constant 0 : index
    %16 = vector.load %arg5[%c0_9, %c0_10] : memref<3x32xf32, #tpu.memory_space<vmem>>, vector<3x32xf32>
    %cst_11 = arith.constant dense<0.000000e+00> : vector<10x32xf32>
    %17 = tpu.matmul %15, %16, %cst_11 {dimension_numbers = #tpu.dot_dimension_numbers<[1], [0], [0], [1], [0, 0, 1, 1], [], []>} : vector<10x3xf32>, vector<3x32xf32>, vector<10x32xf32> -> vector<10x32xf32>
    %c0_12 = arith.constant 0 : index
    %c0_13 = arith.constant 0 : index
    %18 = vector.load %arg6[%c0_12, %c0_13] : memref<1x32xf32, #tpu.memory_space<vmem>>, vector<1x32xf32>
    %19 = vector.broadcast %18 : vector<1x32xf32> to vector<10x32xf32>
    %20 = arith.addf %17, %19 : vector<10x32xf32>
    %c0_14 = arith.constant 0 : index
    %c0_15 = arith.constant 0 : index
    %21 = vector.load %arg22[%c0_14, %c0_15] : memref<10x32xf32, #tpu.memory_space<vmem>>, vector<10x32xf32>
    tpu.vector_store %arg22[%c0_14, %c0_15], %20 {strides = array<i32>} : memref<10x32xf32, #tpu.memory_space<vmem>>, vector<10x32xf32>,
    %c0_16 = arith.constant 0 : index
    %c0_17 = arith.constant 0 : index
    %22 = vector.load %arg22[%c0_16, %c0_17] : memref<10x32xf32, #tpu.memory_space<vmem>>, vector<4x32xf32>
    %23 = vector.extract_strided_slice %14 {offsets = [0, 0], sizes = [4, 32], strides = [1, 1]} : vector<8x32xf32> to vector<4x32xf32>
    %24 = arith.addf %22, %23 : vector<4x32xf32>
    %c0_18 = arith.constant 0 : index
    %c0_19 = arith.constant 0 : index
    %25 = vector.load %arg22[%c0_18, %c0_19] : memref<10x32xf32, #tpu.memory_space<vmem>>, vector<4x32xf32>
    tpu.vector_store %arg22[%c0_18, %c0_19], %24 {strides = array<i32>} : memref<10x32xf32, #tpu.memory_space<vmem>>, vector<4x32xf32>,
    %c5 = arith.constant 5 : index
    %c0_20 = arith.constant 0 : index
    %26 = vector.load %arg22[%c5, %c0_20] : memref<10x32xf32, #tpu.memory_space<vmem>>, vector<4x32xf32>
    %27 = vector.extract_strided_slice %14 {offsets = [4, 0], sizes = [4, 32], strides = [1, 1]} : vector<8x32xf32> to vector<4x32xf32>
    %28 = arith.addf %26, %27 : vector<4x32xf32>
    %c5_21 = arith.constant 5 : index
    %c0_22 = arith.constant 0 : index
    %29 = vector.load %arg22[%c5_21, %c0_22] : memref<10x32xf32, #tpu.memory_space<vmem>>, vector<4x32xf32>
    tpu.vector_store %arg22[%c5_21, %c0_22], %28 {strides = array<i32>} : memref<10x32xf32, #tpu.memory_space<vmem>>, vector<4x32xf32>,
    %c0_23 = arith.constant 0 : index
    %c0_24 = arith.constant 0 : index
    %30 = vector.load %arg22[%c0_23, %c0_24] : memref<10x32xf32, #tpu.memory_space<vmem>>, vector<10x32xf32>
    %c0_25 = arith.constant 0 : index
    %c0_26 = arith.constant 0 : index
    %c0_27 = arith.constant 0 : index
    %31 = vector.load %arg7[%c0_25, %c0_26, %c0_27] : memref<2x32x96xf32, #tpu.memory_space<vmem>>, vector<1x32x96xf32>
    %32 = vector.shape_cast %31 : vector<1x32x96xf32> to vector<32x96xf32>
    %cst_28 = arith.constant dense<0.000000e+00> : vector<10x96xf32>
    %33 = tpu.matmul %30, %32, %cst_28 {dimension_numbers = #tpu.dot_dimension_numbers<[1], [0], [0], [1], [0, 0, 1, 1], [], []>} : vector<10x32xf32>, vector<32x96xf32>, vector<10x96xf32> -> vector<10x96xf32>
    %c0_29 = arith.constant 0 : index
    %c0_30 = arith.constant 0 : index
    %c0_31 = arith.constant 0 : index
    %34 = vector.load %arg8[%c0_29, %c0_30, %c0_31] : memref<2x1x96xf32, #tpu.memory_space<vmem>>, vector<1x1x96xf32>
    %35 = vector.shape_cast %34 : vector<1x1x96xf32> to vector<1x96xf32>
    %36 = vector.broadcast %35 : vector<1x96xf32> to vector<10x96xf32>
    %37 = arith.addf %33, %36 : vector<10x96xf32>
    %38 = vector.extract_strided_slice %37 {offsets = [0, 0], sizes = [10, 32], strides = [1, 1]} : vector<10x96xf32> to vector<10x32xf32>
    %39 = vector.extract_strided_slice %37 {offsets = [0, 32], sizes = [10, 32], strides = [1, 1]} : vector<10x96xf32> to vector<10x32xf32>
    %40 = vector.extract_strided_slice %37 {offsets = [0, 64], sizes = [10, 32], strides = [1, 1]} : vector<10x96xf32> to vector<10x32xf32>
    %41 = vector.extract_strided_slice %38 {offsets = [0, 0], sizes = [5, 32], strides = [1, 1]} : vector<10x32xf32> to vector<5x32xf32>
    %42 = vector.extract_strided_slice %39 {offsets = [0, 0], sizes = [5, 32], strides = [1, 1]} : vector<10x32xf32> to vector<5x32xf32>
    %43 = vector.extract_strided_slice %40 {offsets = [0, 0], sizes = [5, 32], strides = [1, 1]} : vector<10x32xf32> to vector<5x32xf32>
    %44 = vector.extract_strided_slice %41 {offsets = [0, 0], sizes = [5, 8], strides = [1, 1]} : vector<5x32xf32> to vector<5x8xf32>
    %45 = vector.extract_strided_slice %42 {offsets = [0, 0], sizes = [5, 8], strides = [1, 1]} : vector<5x32xf32> to vector<5x8xf32>
    %46 = vector.extract_strided_slice %43 {offsets = [0, 0], sizes = [5, 8], strides = [1, 1]} : vector<5x32xf32> to vector<5x8xf32>
    %47 = tpu.transpose %45, [1, 0] : vector<5x8xf32> -> vector<8x5xf32>
    %cst_32 = arith.constant dense<0.000000e+00> : vector<5x5xf32>
    %48 = tpu.matmul %44, %47, %cst_32 {dimension_numbers = #tpu.dot_dimension_numbers<[1], [0], [0], [1], [0, 0, 1, 1], [], []>} : vector<5x8xf32>, vector<8x5xf32>, vector<5x5xf32> -> vector<5x5xf32>
    %cst_33 = arith.constant 0.353553385 : f32
    %49 = vector.broadcast %cst_33 : f32 to vector<5x5xf32>
    %50 = arith.mulf %48, %49 : vector<5x5xf32>
    %cst_34 = arith.constant dense<0xFF800000> : vector<5xf32>
    %51 = vector.multi_reduction <maximumf>, %50, %cst_34 [1] : vector<5x5xf32> to vector<5xf32>
    %52 = vector.shape_cast %51 : vector<5xf32> to vector<5x1xf32>
    %53 = vector.broadcast %52 : vector<5x1xf32> to vector<5x5xf32>
    %54 = arith.subf %50, %53 : vector<5x5xf32>
    %55 = math.exp %54 : vector<5x5xf32>
    %cst_35 = arith.constant dense<0.000000e+00> : vector<5xf32>
    %56 = vector.multi_reduction <add>, %55, %cst_35 [1] : vector<5x5xf32> to vector<5xf32>
    %57 = vector.shape_cast %56 : vector<5xf32> to vector<5x1xf32>
    %58 = tpu.reciprocal %57 {approx = true} : vector<5x1xf32> -> vector<5x1xf32>
    %59 = vector.broadcast %58 : vector<5x1xf32> to vector<5x5xf32>
    %60 = arith.mulf %55, %59 : vector<5x5xf32>
    %cst_36 = arith.constant dense<0.000000e+00> : vector<5x8xf32>
    %61 = tpu.matmul %60, %46, %cst_36 {dimension_numbers = #tpu.dot_dimension_numbers<[1], [0], [0], [1], [0, 0, 1, 1], [], []>} : vector<5x5xf32>, vector<5x8xf32>, vector<5x8xf32> -> vector<5x8xf32>
    %c0_37 = arith.constant 0 : index
    %c0_38 = arith.constant 0 : index
    %62 = vector.load %arg23[%c0_37, %c0_38] : memref<10x32xf32, #tpu.memory_space<vmem>>, vector<5x8xf32>
    tpu.vector_store %arg23[%c0_37, %c0_38], %61 {strides = array<i32>} : memref<10x32xf32, #tpu.memory_space<vmem>>, vector<5x8xf32>,
    %63 = vector.extract_strided_slice %41 {offsets = [0, 8], sizes = [5, 8], strides = [1, 1]} : vector<5x32xf32> to vector<5x8xf32>
    %64 = vector.extract_strided_slice %42 {offsets = [0, 8], sizes = [5, 8], strides = [1, 1]} : vector<5x32xf32> to vector<5x8xf32>
    %65 = vector.extract_strided_slice %43 {offsets = [0, 8], sizes = [5, 8], strides = [1, 1]} : vector<5x32xf32> to vector<5x8xf32>
    %66 = tpu.transpose %64, [1, 0] : vector<5x8xf32> -> vector<8x5xf32>
    %cst_39 = arith.constant dense<0.000000e+00> : vector<5x5xf32>
    %67 = tpu.matmul %63, %66, %cst_39 {dimension_numbers = #tpu.dot_dimension_numbers<[1], [0], [0], [1], [0, 0, 1, 1], [], []>} : vector<5x8xf32>, vector<8x5xf32>, vector<5x5xf32> -> vector<5x5xf32>
    %cst_40 = arith.constant 0.353553385 : f32
    %68 = vector.broadcast %cst_40 : f32 to vector<5x5xf32>
    %69 = arith.mulf %67, %68 : vector<5x5xf32>
    %cst_41 = arith.constant dense<0xFF800000> : vector<5xf32>
    %70 = vector.multi_reduction <maximumf>, %69, %cst_41 [1] : vector<5x5xf32> to vector<5xf32>
    %71 = vector.shape_cast %70 : vector<5xf32> to vector<5x1xf32>
    %72 = vector.broadcast %71 : vector<5x1xf32> to vector<5x5xf32>
    %73 = arith.subf %69, %72 : vector<5x5xf32>
    %74 = math.exp %73 : vector<5x5xf32>
    %cst_42 = arith.constant dense<0.000000e+00> : vector<5xf32>
    %75 = vector.multi_reduction <add>, %74, %cst_42 [1] : vector<5x5xf32> to vector<5xf32>
    %76 = vector.shape_cast %75 : vector<5xf32> to vector<5x1xf32>
    %77 = tpu.reciprocal %76 {approx = true} : vector<5x1xf32> -> vector<5x1xf32>
    %78 = vector.broadcast %77 : vector<5x1xf32> to vector<5x5xf32>
    %79 = arith.mulf %74, %78 : vector<5x5xf32>
    %cst_43 = arith.constant dense<0.000000e+00> : vector<5x8xf32>
    %80 = tpu.matmul %79, %65, %cst_43 {dimension_numbers = #tpu.dot_dimension_numbers<[1], [0], [0], [1], [0, 0, 1, 1], [], []>} : vector<5x5xf32>, vector<5x8xf32>, vector<5x8xf32> -> vector<5x8xf32>
    %c0_44 = arith.constant 0 : index
    %c8 = arith.constant 8 : index
    %81 = vector.load %arg23[%c0_44, %c8] : memref<10x32xf32, #tpu.memory_space<vmem>>, vector<5x8xf32>
    tpu.vector_store %arg23[%c0_44, %c8], %80 {strides = array<i32>} : memref<10x32xf32, #tpu.memory_space<vmem>>, vector<5x8xf32>,
    %82 = vector.extract_strided_slice %41 {offsets = [0, 16], sizes = [5, 8], strides = [1, 1]} : vector<5x32xf32> to vector<5x8xf32>
    %83 = vector.extract_strided_slice %42 {offsets = [0, 16], sizes = [5, 8], strides = [1, 1]} : vector<5x32xf32> to vector<5x8xf32>
    %84 = vector.extract_strided_slice %43 {offsets = [0, 16], sizes = [5, 8], strides = [1, 1]} : vector<5x32xf32> to vector<5x8xf32>
    %85 = tpu.transpose %83, [1, 0] : vector<5x8xf32> -> vector<8x5xf32>
    %cst_45 = arith.constant dense<0.000000e+00> : vector<5x5xf32>
    %86 = tpu.matmul %82, %85, %cst_45 {dimension_numbers = #tpu.dot_dimension_numbers<[1], [0], [0], [1], [0, 0, 1, 1], [], []>} : vector<5x8xf32>, vector<8x5xf32>, vector<5x5xf32> -> vector<5x5xf32>
    %cst_46 = arith.constant 0.353553385 : f32
    %87 = vector.broadcast %cst_46 : f32 to vector<5x5xf32>
    %88 = arith.mulf %86, %87 : vector<5x5xf32>
    %cst_47 = arith.constant dense<0xFF800000> : vector<5xf32>
    %89 = vector.multi_reduction <maximumf>, %88, %cst_47 [1] : vector<5x5xf32> to vector<5xf32>
    %90 = vector.shape_cast %89 : vector<5xf32> to vector<5x1xf32>
    %91 = vector.broadcast %90 : vector<5x1xf32> to vector<5x5xf32>
    %92 = arith.subf %88, %91 : vector<5x5xf32>
    %93 = math.exp %92 : vector<5x5xf32>
    %cst_48 = arith.constant dense<0.000000e+00> : vector<5xf32>
    %94 = vector.multi_reduction <add>, %93, %cst_48 [1] : vector<5x5xf32> to vector<5xf32>
    %95 = vector.shape_cast %94 : vector<5xf32> to vector<5x1xf32>
    %96 = tpu.reciprocal %95 {approx = true} : vector<5x1xf32> -> vector<5x1xf32>
    %97 = vector.broadcast %96 : vector<5x1xf32> to vector<5x5xf32>
    %98 = arith.mulf %93, %97 : vector<5x5xf32>
    %cst_49 = arith.constant dense<0.000000e+00> : vector<5x8xf32>
    %99 = tpu.matmul %98, %84, %cst_49 {dimension_numbers = #tpu.dot_dimension_numbers<[1], [0], [0], [1], [0, 0, 1, 1], [], []>} : vector<5x5xf32>, vector<5x8xf32>, vector<5x8xf32> -> vector<5x8xf32>
    %c0_50 = arith.constant 0 : index
    %c16 = arith.constant 16 : index
    %100 = vector.load %arg23[%c0_50, %c16] : memref<10x32xf32, #tpu.memory_space<vmem>>, vector<5x8xf32>
    tpu.vector_store %arg23[%c0_50, %c16], %99 {strides = array<i32>} : memref<10x32xf32, #tpu.memory_space<vmem>>, vector<5x8xf32>,
    %101 = vector.extract_strided_slice %41 {offsets = [0, 24], sizes = [5, 8], strides = [1, 1]} : vector<5x32xf32> to vector<5x8xf32>
    %102 = vector.extract_strided_slice %42 {offsets = [0, 24], sizes = [5, 8], strides = [1, 1]} : vector<5x32xf32> to vector<5x8xf32>
    %103 = vector.extract_strided_slice %43 {offsets = [0, 24], sizes = [5, 8], strides = [1, 1]} : vector<5x32xf32> to vector<5x8xf32>
    %104 = tpu.transpose %102, [1, 0] : vector<5x8xf32> -> vector<8x5xf32>
    %cst_51 = arith.constant dense<0.000000e+00> : vector<5x5xf32>
    %105 = tpu.matmul %101, %104, %cst_51 {dimension_numbers = #tpu.dot_dimension_numbers<[1], [0], [0], [1], [0, 0, 1, 1], [], []>} : vector<5x8xf32>, vector<8x5xf32>, vector<5x5xf32> -> vector<5x5xf32>
    %cst_52 = arith.constant 0.353553385 : f32
    %106 = vector.broadcast %cst_52 : f32 to vector<5x5xf32>
    %107 = arith.mulf %105, %106 : vector<5x5xf32>
    %cst_53 = arith.constant dense<0xFF800000> : vector<5xf32>
    %108 = vector.multi_reduction <maximumf>, %107, %cst_53 [1] : vector<5x5xf32> to vector<5xf32>
    %109 = vector.shape_cast %108 : vector<5xf32> to vector<5x1xf32>
    %110 = vector.broadcast %109 : vector<5x1xf32> to vector<5x5xf32>
    %111 = arith.subf %107, %110 : vector<5x5xf32>
    %112 = math.exp %111 : vector<5x5xf32>
    %cst_54 = arith.constant dense<0.000000e+00> : vector<5xf32>
    %113 = vector.multi_reduction <add>, %112, %cst_54 [1] : vector<5x5xf32> to vector<5xf32>
    %114 = vector.shape_cast %113 : vector<5xf32> to vector<5x1xf32>
    %115 = tpu.reciprocal %114 {approx = true} : vector<5x1xf32> -> vector<5x1xf32>
    %116 = vector.broadcast %115 : vector<5x1xf32> to vector<5x5xf32>
    %117 = arith.mulf %112, %116 : vector<5x5xf32>
    %cst_55 = arith.constant dense<0.000000e+00> : vector<5x8xf32>
    %118 = tpu.matmul %117, %103, %cst_55 {dimension_numbers = #tpu.dot_dimension_numbers<[1], [0], [0], [1], [0, 0, 1, 1], [], []>} : vector<5x5xf32>, vector<5x8xf32>, vector<5x8xf32> -> vector<5x8xf32>
    %c0_56 = arith.constant 0 : index
    %c24 = arith.constant 24 : index
    %119 = vector.load %arg23[%c0_56, %c24] : memref<10x32xf32, #tpu.memory_space<vmem>>, vector<5x8xf32>
    tpu.vector_store %arg23[%c0_56, %c24], %118 {strides = array<i32>} : memref<10x32xf32, #tpu.memory_space<vmem>>, vector<5x8xf32>,
    %120 = vector.extract_strided_slice %38 {offsets = [5, 0], sizes = [5, 32], strides = [1, 1]} : vector<10x32xf32> to vector<5x32xf32>
    %121 = vector.extract_strided_slice %39 {offsets = [5, 0], sizes = [5, 32], strides = [1, 1]} : vector<10x32xf32> to vector<5x32xf32>
    %122 = vector.extract_strided_slice %40 {offsets = [5, 0], sizes = [5, 32], strides = [1, 1]} : vector<10x32xf32> to vector<5x32xf32>
    %123 = vector.extract_strided_slice %120 {offsets = [0, 0], sizes = [5, 8], strides = [1, 1]} : vector<5x32xf32> to vector<5x8xf32>
    %124 = vector.extract_strided_slice %121 {offsets = [0, 0], sizes = [5, 8], strides = [1, 1]} : vector<5x32xf32> to vector<5x8xf32>
    %125 = vector.extract_strided_slice %122 {offsets = [0, 0], sizes = [5, 8], strides = [1, 1]} : vector<5x32xf32> to vector<5x8xf32>
    %126 = tpu.transpose %124, [1, 0] : vector<5x8xf32> -> vector<8x5xf32>
    %cst_57 = arith.constant dense<0.000000e+00> : vector<5x5xf32>
    %127 = tpu.matmul %123, %126, %cst_57 {dimension_numbers = #tpu.dot_dimension_numbers<[1], [0], [0], [1], [0, 0, 1, 1], [], []>} : vector<5x8xf32>, vector<8x5xf32>, vector<5x5xf32> -> vector<5x5xf32>
    %cst_58 = arith.constant 0.353553385 : f32
    %128 = vector.broadcast %cst_58 : f32 to vector<5x5xf32>
    %129 = arith.mulf %127, %128 : vector<5x5xf32>
    %cst_59 = arith.constant dense<0xFF800000> : vector<5xf32>
    %130 = vector.multi_reduction <maximumf>, %129, %cst_59 [1] : vector<5x5xf32> to vector<5xf32>
    %131 = vector.shape_cast %130 : vector<5xf32> to vector<5x1xf32>
    %132 = vector.broadcast %131 : vector<5x1xf32> to vector<5x5xf32>
    %133 = arith.subf %129, %132 : vector<5x5xf32>
    %134 = math.exp %133 : vector<5x5xf32>
    %cst_60 = arith.constant dense<0.000000e+00> : vector<5xf32>
    %135 = vector.multi_reduction <add>, %134, %cst_60 [1] : vector<5x5xf32> to vector<5xf32>
    %136 = vector.shape_cast %135 : vector<5xf32> to vector<5x1xf32>
    %137 = tpu.reciprocal %136 {approx = true} : vector<5x1xf32> -> vector<5x1xf32>
    %138 = vector.broadcast %137 : vector<5x1xf32> to vector<5x5xf32>
    %139 = arith.mulf %134, %138 : vector<5x5xf32>
    %cst_61 = arith.constant dense<0.000000e+00> : vector<5x8xf32>
    %140 = tpu.matmul %139, %125, %cst_61 {dimension_numbers = #tpu.dot_dimension_numbers<[1], [0], [0], [1], [0, 0, 1, 1], [], []>} : vector<5x5xf32>, vector<5x8xf32>, vector<5x8xf32> -> vector<5x8xf32>
    %c5_62 = arith.constant 5 : index
    %c0_63 = arith.constant 0 : index
    %141 = vector.load %arg23[%c5_62, %c0_63] : memref<10x32xf32, #tpu.memory_space<vmem>>, vector<5x8xf32>
    tpu.vector_store %arg23[%c5_62, %c0_63], %140 {strides = array<i32>} : memref<10x32xf32, #tpu.memory_space<vmem>>, vector<5x8xf32>,
    %142 = vector.extract_strided_slice %120 {offsets = [0, 8], sizes = [5, 8], strides = [1, 1]} : vector<5x32xf32> to vector<5x8xf32>
    %143 = vector.extract_strided_slice %121 {offsets = [0, 8], sizes = [5, 8], strides = [1, 1]} : vector<5x32xf32> to vector<5x8xf32>
    %144 = vector.extract_strided_slice %122 {offsets = [0, 8], sizes = [5, 8], strides = [1, 1]} : vector<5x32xf32> to vector<5x8xf32>
    %145 = tpu.transpose %143, [1, 0] : vector<5x8xf32> -> vector<8x5xf32>
    %cst_64 = arith.constant dense<0.000000e+00> : vector<5x5xf32>
    %146 = tpu.matmul %142, %145, %cst_64 {dimension_numbers = #tpu.dot_dimension_numbers<[1], [0], [0], [1], [0, 0, 1, 1], [], []>} : vector<5x8xf32>, vector<8x5xf32>, vector<5x5xf32> -> vector<5x5xf32>
    %cst_65 = arith.constant 0.353553385 : f32
    %147 = vector.broadcast %cst_65 : f32 to vector<5x5xf32>
    %148 = arith.mulf %146, %147 : vector<5x5xf32>
    %cst_66 = arith.constant dense<0xFF800000> : vector<5xf32>
    %149 = vector.multi_reduction <maximumf>, %148, %cst_66 [1] : vector<5x5xf32> to vector<5xf32>
    %150 = vector.shape_cast %149 : vector<5xf32> to vector<5x1xf32>
    %151 = vector.broadcast %150 : vector<5x1xf32> to vector<5x5xf32>
    %152 = arith.subf %148, %151 : vector<5x5xf32>
    %153 = math.exp %152 : vector<5x5xf32>
    %cst_67 = arith.constant dense<0.000000e+00> : vector<5xf32>
    %154 = vector.multi_reduction <add>, %153, %cst_67 [1] : vector<5x5xf32> to vector<5xf32>
    %155 = vector.shape_cast %154 : vector<5xf32> to vector<5x1xf32>
    %156 = tpu.reciprocal %155 {approx = true} : vector<5x1xf32> -> vector<5x1xf32>
    %157 = vector.broadcast %156 : vector<5x1xf32> to vector<5x5xf32>
    %158 = arith.mulf %153, %157 : vector<5x5xf32>
    %cst_68 = arith.constant dense<0.000000e+00> : vector<5x8xf32>
    %159 = tpu.matmul %158, %144, %cst_68 {dimension_numbers = #tpu.dot_dimension_numbers<[1], [0], [0], [1], [0, 0, 1, 1], [], []>} : vector<5x5xf32>, vector<5x8xf32>, vector<5x8xf32> -> vector<5x8xf32>
    %c5_69 = arith.constant 5 : index
    %c8_70 = arith.constant 8 : index
    %160 = vector.load %arg23[%c5_69, %c8_70] : memref<10x32xf32, #tpu.memory_space<vmem>>, vector<5x8xf32>
    tpu.vector_store %arg23[%c5_69, %c8_70], %159 {strides = array<i32>} : memref<10x32xf32, #tpu.memory_space<vmem>>, vector<5x8xf32>,
    %161 = vector.extract_strided_slice %120 {offsets = [0, 16], sizes = [5, 8], strides = [1, 1]} : vector<5x32xf32> to vector<5x8xf32>
    %162 = vector.extract_strided_slice %121 {offsets = [0, 16], sizes = [5, 8], strides = [1, 1]} : vector<5x32xf32> to vector<5x8xf32>
    %163 = vector.extract_strided_slice %122 {offsets = [0, 16], sizes = [5, 8], strides = [1, 1]} : vector<5x32xf32> to vector<5x8xf32>
    %164 = tpu.transpose %162, [1, 0] : vector<5x8xf32> -> vector<8x5xf32>
    %cst_71 = arith.constant dense<0.000000e+00> : vector<5x5xf32>
    %165 = tpu.matmul %161, %164, %cst_71 {dimension_numbers = #tpu.dot_dimension_numbers<[1], [0], [0], [1], [0, 0, 1, 1], [], []>} : vector<5x8xf32>, vector<8x5xf32>, vector<5x5xf32> -> vector<5x5xf32>
    %cst_72 = arith.constant 0.353553385 : f32
    %166 = vector.broadcast %cst_72 : f32 to vector<5x5xf32>
    %167 = arith.mulf %165, %166 : vector<5x5xf32>
    %cst_73 = arith.constant dense<0xFF800000> : vector<5xf32>
    %168 = vector.multi_reduction <maximumf>, %167, %cst_73 [1] : vector<5x5xf32> to vector<5xf32>
    %169 = vector.shape_cast %168 : vector<5xf32> to vector<5x1xf32>
    %170 = vector.broadcast %169 : vector<5x1xf32> to vector<5x5xf32>
    %171 = arith.subf %167, %170 : vector<5x5xf32>
    %172 = math.exp %171 : vector<5x5xf32>
    %cst_74 = arith.constant dense<0.000000e+00> : vector<5xf32>
    %173 = vector.multi_reduction <add>, %172, %cst_74 [1] : vector<5x5xf32> to vector<5xf32>
    %174 = vector.shape_cast %173 : vector<5xf32> to vector<5x1xf32>
    %175 = tpu.reciprocal %174 {approx = true} : vector<5x1xf32> -> vector<5x1xf32>
    %176 = vector.broadcast %175 : vector<5x1xf32> to vector<5x5xf32>
    %177 = arith.mulf %172, %176 : vector<5x5xf32>
    %cst_75 = arith.constant dense<0.000000e+00> : vector<5x8xf32>
    %178 = tpu.matmul %177, %163, %cst_75 {dimension_numbers = #tpu.dot_dimension_numbers<[1], [0], [0], [1], [0, 0, 1, 1], [], []>} : vector<5x5xf32>, vector<5x8xf32>, vector<5x8xf32> -> vector<5x8xf32>
    %c5_76 = arith.constant 5 : index
    %c16_77 = arith.constant 16 : index
    %179 = vector.load %arg23[%c5_76, %c16_77] : memref<10x32xf32, #tpu.memory_space<vmem>>, vector<5x8xf32>
    tpu.vector_store %arg23[%c5_76, %c16_77], %178 {strides = array<i32>} : memref<10x32xf32, #tpu.memory_space<vmem>>, vector<5x8xf32>,
    %180 = vector.extract_strided_slice %120 {offsets = [0, 24], sizes = [5, 8], strides = [1, 1]} : vector<5x32xf32> to vector<5x8xf32>
    %181 = vector.extract_strided_slice %121 {offsets = [0, 24], sizes = [5, 8], strides = [1, 1]} : vector<5x32xf32> to vector<5x8xf32>
    %182 = vector.extract_strided_slice %122 {offsets = [0, 24], sizes = [5, 8], strides = [1, 1]} : vector<5x32xf32> to vector<5x8xf32>
    %183 = tpu.transpose %181, [1, 0] : vector<5x8xf32> -> vector<8x5xf32>
    %cst_78 = arith.constant dense<0.000000e+00> : vector<5x5xf32>
    %184 = tpu.matmul %180, %183, %cst_78 {dimension_numbers = #tpu.dot_dimension_numbers<[1], [0], [0], [1], [0, 0, 1, 1], [], []>} : vector<5x8xf32>, vector<8x5xf32>, vector<5x5xf32> -> vector<5x5xf32>
    %cst_79 = arith.constant 0.353553385 : f32
    %185 = vector.broadcast %cst_79 : f32 to vector<5x5xf32>
    %186 = arith.mulf %184, %185 : vector<5x5xf32>
    %cst_80 = arith.constant dense<0xFF800000> : vector<5xf32>
    %187 = vector.multi_reduction <maximumf>, %186, %cst_80 [1] : vector<5x5xf32> to vector<5xf32>
    %188 = vector.shape_cast %187 : vector<5xf32> to vector<5x1xf32>
    %189 = vector.broadcast %188 : vector<5x1xf32> to vector<5x5xf32>
    %190 = arith.subf %186, %189 : vector<5x5xf32>
    %191 = math.exp %190 : vector<5x5xf32>
    %cst_81 = arith.constant dense<0.000000e+00> : vector<5xf32>
    %192 = vector.multi_reduction <add>, %191, %cst_81 [1] : vector<5x5xf32> to vector<5xf32>
    %193 = vector.shape_cast %192 : vector<5xf32> to vector<5x1xf32>
    %194 = tpu.reciprocal %193 {approx = true} : vector<5x1xf32> -> vector<5x1xf32>
    %195 = vector.broadcast %194 : vector<5x1xf32> to vector<5x5xf32>
    %196 = arith.mulf %191, %195 : vector<5x5xf32>
    %cst_82 = arith.constant dense<0.000000e+00> : vector<5x8xf32>
    %197 = tpu.matmul %196, %182, %cst_82 {dimension_numbers = #tpu.dot_dimension_numbers<[1], [0], [0], [1], [0, 0, 1, 1], [], []>} : vector<5x5xf32>, vector<5x8xf32>, vector<5x8xf32> -> vector<5x8xf32>
    %c5_83 = arith.constant 5 : index
    %c24_84 = arith.constant 24 : index
    %198 = vector.load %arg23[%c5_83, %c24_84] : memref<10x32xf32, #tpu.memory_space<vmem>>, vector<5x8xf32>
    tpu.vector_store %arg23[%c5_83, %c24_84], %197 {strides = array<i32>} : memref<10x32xf32, #tpu.memory_space<vmem>>, vector<5x8xf32>,
    %c0_85 = arith.constant 0 : index
    %c0_86 = arith.constant 0 : index
    %199 = vector.load %arg23[%c0_85, %c0_86] : memref<10x32xf32, #tpu.memory_space<vmem>>, vector<10x32xf32>
    %c0_87 = arith.constant 0 : index
    %c0_88 = arith.constant 0 : index
    %c0_89 = arith.constant 0 : index
    %200 = vector.load %arg9[%c0_87, %c0_88, %c0_89] : memref<2x32x32xf32, #tpu.memory_space<vmem>>, vector<1x32x32xf32>
    %201 = vector.shape_cast %200 : vector<1x32x32xf32> to vector<32x32xf32>
    %cst_90 = arith.constant dense<0.000000e+00> : vector<10x32xf32>
    %202 = tpu.matmul %199, %201, %cst_90 {dimension_numbers = #tpu.dot_dimension_numbers<[1], [0], [0], [1], [0, 0, 1, 1], [], []>} : vector<10x32xf32>, vector<32x32xf32>, vector<10x32xf32> -> vector<10x32xf32>
    %c0_91 = arith.constant 0 : index
    %c0_92 = arith.constant 0 : index
    %c0_93 = arith.constant 0 : index
    %203 = vector.load %arg10[%c0_91, %c0_92, %c0_93] : memref<2x1x32xf32, #tpu.memory_space<vmem>>, vector<1x1x32xf32>
    %204 = vector.shape_cast %203 : vector<1x1x32xf32> to vector<1x32xf32>
    %205 = vector.broadcast %204 : vector<1x32xf32> to vector<10x32xf32>
    %206 = arith.addf %202, %205 : vector<10x32xf32>
    %207 = arith.addf %30, %206 : vector<10x32xf32>
    %c0_94 = arith.constant 0 : index
    %c0_95 = arith.constant 0 : index
    %c0_96 = arith.constant 0 : index
    %208 = vector.load %arg15[%c0_94, %c0_95, %c0_96] : memref<2x1x32xf32, #tpu.memory_space<vmem>>, vector<1x1x32xf32>
    %209 = vector.shape_cast %208 : vector<1x1x32xf32> to vector<1x32xf32>
    %c0_97 = arith.constant 0 : index
    %c0_98 = arith.constant 0 : index
    %c0_99 = arith.constant 0 : index
    %210 = vector.load %arg16[%c0_97, %c0_98, %c0_99] : memref<2x1x32xf32, #tpu.memory_space<vmem>>, vector<1x1x32xf32>
    %211 = vector.shape_cast %210 : vector<1x1x32xf32> to vector<1x32xf32>
    %cst_100 = arith.constant dense<0.000000e+00> : vector<10xf32>
    %212 = vector.multi_reduction <add>, %207, %cst_100 [1] : vector<10x32xf32> to vector<10xf32>
    %213 = vector.shape_cast %212 : vector<10xf32> to vector<10x1xf32>
    %cst_101 = arith.constant 3.200000e+01 : f32
    %214 = vector.broadcast %cst_101 : f32 to vector<10x1xf32>
    %215 = arith.divf %213, %214 : vector<10x1xf32>
    %216 = vector.broadcast %215 : vector<10x1xf32> to vector<10x32xf32>
    %217 = arith.subf %207, %216 : vector<10x32xf32>
    %218 = arith.mulf %217, %217 : vector<10x32xf32>
    %cst_102 = arith.constant dense<0.000000e+00> : vector<10xf32>
    %219 = vector.multi_reduction <add>, %218, %cst_102 [1] : vector<10x32xf32> to vector<10xf32>
    %220 = vector.shape_cast %219 : vector<10xf32> to vector<10x1xf32>
    %cst_103 = arith.constant 3.200000e+01 : f32
    %221 = vector.broadcast %cst_103 : f32 to vector<10x1xf32>
    %222 = arith.divf %220, %221 : vector<10x1xf32>
    %cst_104 = arith.constant 9.99999974E-6 : f32
    %223 = vector.broadcast %cst_104 : f32 to vector<10x1xf32>
    %224 = arith.addf %222, %223 : vector<10x1xf32>
    %225 = math.rsqrt %224 : vector<10x1xf32>
    %226 = vector.broadcast %225 : vector<10x1xf32> to vector<10x32xf32>
    %227 = arith.mulf %217, %226 : vector<10x32xf32>
    %228 = vector.broadcast %209 : vector<1x32xf32> to vector<10x32xf32>
    %229 = arith.mulf %227, %228 : vector<10x32xf32>
    %230 = vector.broadcast %211 : vector<1x32xf32> to vector<10x32xf32>
    %231 = arith.addf %229, %230 : vector<10x32xf32>
    %c0_105 = arith.constant 0 : index
    %c0_106 = arith.constant 0 : index
    %c0_107 = arith.constant 0 : index
    %232 = vector.load %arg11[%c0_105, %c0_106, %c0_107] : memref<2x32x64xf32, #tpu.memory_space<vmem>>, vector<1x32x64xf32>
    %233 = vector.shape_cast %232 : vector<1x32x64xf32> to vector<32x64xf32>
    %cst_108 = arith.constant dense<0.000000e+00> : vector<10x64xf32>
    %234 = tpu.matmul %231, %233, %cst_108 {dimension_numbers = #tpu.dot_dimension_numbers<[1], [0], [0], [1], [0, 0, 1, 1], [], []>} : vector<10x32xf32>, vector<32x64xf32>, vector<10x64xf32> -> vector<10x64xf32>
    %c0_109 = arith.constant 0 : index
    %c0_110 = arith.constant 0 : index
    %c0_111 = arith.constant 0 : index
    %235 = vector.load %arg12[%c0_109, %c0_110, %c0_111] : memref<2x1x64xf32, #tpu.memory_space<vmem>>, vector<1x1x64xf32>
    %236 = vector.shape_cast %235 : vector<1x1x64xf32> to vector<1x64xf32>
    %237 = vector.broadcast %236 : vector<1x64xf32> to vector<10x64xf32>
    %238 = arith.addf %234, %237 : vector<10x64xf32>
    %cst_112 = arith.constant 0.000000e+00 : f32
    %239 = vector.broadcast %cst_112 : f32 to vector<10x64xf32>
    %240 = arith.maximumf %238, %239 : vector<10x64xf32>
    %c0_113 = arith.constant 0 : index
    %c0_114 = arith.constant 0 : index
    %c0_115 = arith.constant 0 : index
    %241 = vector.load %arg13[%c0_113, %c0_114, %c0_115] : memref<2x64x32xf32, #tpu.memory_space<vmem>>, vector<1x64x32xf32>
    %242 = vector.shape_cast %241 : vector<1x64x32xf32> to vector<64x32xf32>
    %cst_116 = arith.constant dense<0.000000e+00> : vector<10x32xf32>
    %243 = tpu.matmul %240, %242, %cst_116 {dimension_numbers = #tpu.dot_dimension_numbers<[1], [0], [0], [1], [0, 0, 1, 1], [], []>} : vector<10x64xf32>, vector<64x32xf32>, vector<10x32xf32> -> vector<10x32xf32>
    %c0_117 = arith.constant 0 : index
    %c0_118 = arith.constant 0 : index
    %c0_119 = arith.constant 0 : index
    %244 = vector.load %arg14[%c0_117, %c0_118, %c0_119] : memref<2x1x32xf32, #tpu.memory_space<vmem>>, vector<1x1x32xf32>
    %245 = vector.shape_cast %244 : vector<1x1x32xf32> to vector<1x32xf32>
    %246 = vector.broadcast %245 : vector<1x32xf32> to vector<10x32xf32>
    %247 = arith.addf %243, %246 : vector<10x32xf32>
    %248 = arith.addf %231, %247 : vector<10x32xf32>
    %c0_120 = arith.constant 0 : index
    %c0_121 = arith.constant 0 : index
    %c0_122 = arith.constant 0 : index
    %249 = vector.load %arg17[%c0_120, %c0_121, %c0_122] : memref<2x1x32xf32, #tpu.memory_space<vmem>>, vector<1x1x32xf32>
    %250 = vector.shape_cast %249 : vector<1x1x32xf32> to vector<1x32xf32>
    %c0_123 = arith.constant 0 : index
    %c0_124 = arith.constant 0 : index
    %c0_125 = arith.constant 0 : index
    %251 = vector.load %arg18[%c0_123, %c0_124, %c0_125] : memref<2x1x32xf32, #tpu.memory_space<vmem>>, vector<1x1x32xf32>
    %252 = vector.shape_cast %251 : vector<1x1x32xf32> to vector<1x32xf32>
    %cst_126 = arith.constant dense<0.000000e+00> : vector<10xf32>
    %253 = vector.multi_reduction <add>, %248, %cst_126 [1] : vector<10x32xf32> to vector<10xf32>
    %254 = vector.shape_cast %253 : vector<10xf32> to vector<10x1xf32>
    %cst_127 = arith.constant 3.200000e+01 : f32
    %255 = vector.broadcast %cst_127 : f32 to vector<10x1xf32>
    %256 = arith.divf %254, %255 : vector<10x1xf32>
    %257 = vector.broadcast %256 : vector<10x1xf32> to vector<10x32xf32>
    %258 = arith.subf %248, %257 : vector<10x32xf32>
    %259 = arith.mulf %258, %258 : vector<10x32xf32>
    %cst_128 = arith.constant dense<0.000000e+00> : vector<10xf32>
    %260 = vector.multi_reduction <add>, %259, %cst_128 [1] : vector<10x32xf32> to vector<10xf32>
    %261 = vector.shape_cast %260 : vector<10xf32> to vector<10x1xf32>
    %cst_129 = arith.constant 3.200000e+01 : f32
    %262 = vector.broadcast %cst_129 : f32 to vector<10x1xf32>
    %263 = arith.divf %261, %262 : vector<10x1xf32>
    %cst_130 = arith.constant 9.99999974E-6 : f32
    %264 = vector.broadcast %cst_130 : f32 to vector<10x1xf32>
    %265 = arith.addf %263, %264 : vector<10x1xf32>
    %266 = math.rsqrt %265 : vector<10x1xf32>
    %267 = vector.broadcast %266 : vector<10x1xf32> to vector<10x32xf32>
    %268 = arith.mulf %258, %267 : vector<10x32xf32>
    %269 = vector.broadcast %250 : vector<1x32xf32> to vector<10x32xf32>
    %270 = arith.mulf %268, %269 : vector<10x32xf32>
    %271 = vector.broadcast %252 : vector<1x32xf32> to vector<10x32xf32>
    %272 = arith.addf %270, %271 : vector<10x32xf32>
    %c0_131 = arith.constant 0 : index
    %c0_132 = arith.constant 0 : index
    %273 = vector.load %arg22[%c0_131, %c0_132] : memref<10x32xf32, #tpu.memory_space<vmem>>, vector<10x32xf32>
    tpu.vector_store %arg22[%c0_131, %c0_132], %272 {strides = array<i32>} : memref<10x32xf32, #tpu.memory_space<vmem>>, vector<10x32xf32>,
    %c0_133 = arith.constant 0 : index
    %c0_134 = arith.constant 0 : index
    %274 = vector.load %arg22[%c0_133, %c0_134] : memref<10x32xf32, #tpu.memory_space<vmem>>, vector<10x32xf32>
    %c1 = arith.constant 1 : index
    %c0_135 = arith.constant 0 : index
    %c0_136 = arith.constant 0 : index
    %275 = vector.load %arg7[%c1, %c0_135, %c0_136] : memref<2x32x96xf32, #tpu.memory_space<vmem>>, vector<1x32x96xf32>
    %276 = vector.shape_cast %275 : vector<1x32x96xf32> to vector<32x96xf32>
    %cst_137 = arith.constant dense<0.000000e+00> : vector<10x96xf32>
    %277 = tpu.matmul %274, %276, %cst_137 {dimension_numbers = #tpu.dot_dimension_numbers<[1], [0], [0], [1], [0, 0, 1, 1], [], []>} : vector<10x32xf32>, vector<32x96xf32>, vector<10x96xf32> -> vector<10x96xf32>
    %c1_138 = arith.constant 1 : index
    %c0_139 = arith.constant 0 : index
    %c0_140 = arith.constant 0 : index
    %278 = vector.load %arg8[%c1_138, %c0_139, %c0_140] : memref<2x1x96xf32, #tpu.memory_space<vmem>>, vector<1x1x96xf32>
    %279 = vector.shape_cast %278 : vector<1x1x96xf32> to vector<1x96xf32>
    %280 = vector.broadcast %279 : vector<1x96xf32> to vector<10x96xf32>
    %281 = arith.addf %277, %280 : vector<10x96xf32>
    %282 = vector.extract_strided_slice %281 {offsets = [0, 0], sizes = [10, 32], strides = [1, 1]} : vector<10x96xf32> to vector<10x32xf32>
    %283 = vector.extract_strided_slice %281 {offsets = [0, 32], sizes = [10, 32], strides = [1, 1]} : vector<10x96xf32> to vector<10x32xf32>
    %284 = vector.extract_strided_slice %281 {offsets = [0, 64], sizes = [10, 32], strides = [1, 1]} : vector<10x96xf32> to vector<10x32xf32>
    %285 = vector.extract_strided_slice %282 {offsets = [0, 0], sizes = [5, 32], strides = [1, 1]} : vector<10x32xf32> to vector<5x32xf32>
    %286 = vector.extract_strided_slice %283 {offsets = [0, 0], sizes = [5, 32], strides = [1, 1]} : vector<10x32xf32> to vector<5x32xf32>
    %287 = vector.extract_strided_slice %284 {offsets = [0, 0], sizes = [5, 32], strides = [1, 1]} : vector<10x32xf32> to vector<5x32xf32>
    %288 = vector.extract_strided_slice %285 {offsets = [0, 0], sizes = [5, 8], strides = [1, 1]} : vector<5x32xf32> to vector<5x8xf32>
    %289 = vector.extract_strided_slice %286 {offsets = [0, 0], sizes = [5, 8], strides = [1, 1]} : vector<5x32xf32> to vector<5x8xf32>
    %290 = vector.extract_strided_slice %287 {offsets = [0, 0], sizes = [5, 8], strides = [1, 1]} : vector<5x32xf32> to vector<5x8xf32>
    %291 = tpu.transpose %289, [1, 0] : vector<5x8xf32> -> vector<8x5xf32>
    %cst_141 = arith.constant dense<0.000000e+00> : vector<5x5xf32>
    %292 = tpu.matmul %288, %291, %cst_141 {dimension_numbers = #tpu.dot_dimension_numbers<[1], [0], [0], [1], [0, 0, 1, 1], [], []>} : vector<5x8xf32>, vector<8x5xf32>, vector<5x5xf32> -> vector<5x5xf32>
    %cst_142 = arith.constant 0.353553385 : f32
    %293 = vector.broadcast %cst_142 : f32 to vector<5x5xf32>
    %294 = arith.mulf %292, %293 : vector<5x5xf32>
    %cst_143 = arith.constant dense<0xFF800000> : vector<5xf32>
    %295 = vector.multi_reduction <maximumf>, %294, %cst_143 [1] : vector<5x5xf32> to vector<5xf32>
    %296 = vector.shape_cast %295 : vector<5xf32> to vector<5x1xf32>
    %297 = vector.broadcast %296 : vector<5x1xf32> to vector<5x5xf32>
    %298 = arith.subf %294, %297 : vector<5x5xf32>
    %299 = math.exp %298 : vector<5x5xf32>
    %cst_144 = arith.constant dense<0.000000e+00> : vector<5xf32>
    %300 = vector.multi_reduction <add>, %299, %cst_144 [1] : vector<5x5xf32> to vector<5xf32>
    %301 = vector.shape_cast %300 : vector<5xf32> to vector<5x1xf32>
    %302 = tpu.reciprocal %301 {approx = true} : vector<5x1xf32> -> vector<5x1xf32>
    %303 = vector.broadcast %302 : vector<5x1xf32> to vector<5x5xf32>
    %304 = arith.mulf %299, %303 : vector<5x5xf32>
    %cst_145 = arith.constant dense<0.000000e+00> : vector<5x8xf32>
    %305 = tpu.matmul %304, %290, %cst_145 {dimension_numbers = #tpu.dot_dimension_numbers<[1], [0], [0], [1], [0, 0, 1, 1], [], []>} : vector<5x5xf32>, vector<5x8xf32>, vector<5x8xf32> -> vector<5x8xf32>
    %c0_146 = arith.constant 0 : index
    %c0_147 = arith.constant 0 : index
    %306 = vector.load %arg23[%c0_146, %c0_147] : memref<10x32xf32, #tpu.memory_space<vmem>>, vector<5x8xf32>
    tpu.vector_store %arg23[%c0_146, %c0_147], %305 {strides = array<i32>} : memref<10x32xf32, #tpu.memory_space<vmem>>, vector<5x8xf32>,
    %307 = vector.extract_strided_slice %285 {offsets = [0, 8], sizes = [5, 8], strides = [1, 1]} : vector<5x32xf32> to vector<5x8xf32>
    %308 = vector.extract_strided_slice %286 {offsets = [0, 8], sizes = [5, 8], strides = [1, 1]} : vector<5x32xf32> to vector<5x8xf32>
    %309 = vector.extract_strided_slice %287 {offsets = [0, 8], sizes = [5, 8], strides = [1, 1]} : vector<5x32xf32> to vector<5x8xf32>
    %310 = tpu.transpose %308, [1, 0] : vector<5x8xf32> -> vector<8x5xf32>
    %cst_148 = arith.constant dense<0.000000e+00> : vector<5x5xf32>
    %311 = tpu.matmul %307, %310, %cst_148 {dimension_numbers = #tpu.dot_dimension_numbers<[1], [0], [0], [1], [0, 0, 1, 1], [], []>} : vector<5x8xf32>, vector<8x5xf32>, vector<5x5xf32> -> vector<5x5xf32>
    %cst_149 = arith.constant 0.353553385 : f32
    %312 = vector.broadcast %cst_149 : f32 to vector<5x5xf32>
    %313 = arith.mulf %311, %312 : vector<5x5xf32>
    %cst_150 = arith.constant dense<0xFF800000> : vector<5xf32>
    %314 = vector.multi_reduction <maximumf>, %313, %cst_150 [1] : vector<5x5xf32> to vector<5xf32>
    %315 = vector.shape_cast %314 : vector<5xf32> to vector<5x1xf32>
    %316 = vector.broadcast %315 : vector<5x1xf32> to vector<5x5xf32>
    %317 = arith.subf %313, %316 : vector<5x5xf32>
    %318 = math.exp %317 : vector<5x5xf32>
    %cst_151 = arith.constant dense<0.000000e+00> : vector<5xf32>
    %319 = vector.multi_reduction <add>, %318, %cst_151 [1] : vector<5x5xf32> to vector<5xf32>
    %320 = vector.shape_cast %319 : vector<5xf32> to vector<5x1xf32>
    %321 = tpu.reciprocal %320 {approx = true} : vector<5x1xf32> -> vector<5x1xf32>
    %322 = vector.broadcast %321 : vector<5x1xf32> to vector<5x5xf32>
    %323 = arith.mulf %318, %322 : vector<5x5xf32>
    %cst_152 = arith.constant dense<0.000000e+00> : vector<5x8xf32>
    %324 = tpu.matmul %323, %309, %cst_152 {dimension_numbers = #tpu.dot_dimension_numbers<[1], [0], [0], [1], [0, 0, 1, 1], [], []>} : vector<5x5xf32>, vector<5x8xf32>, vector<5x8xf32> -> vector<5x8xf32>
    %c0_153 = arith.constant 0 : index
    %c8_154 = arith.constant 8 : index
    %325 = vector.load %arg23[%c0_153, %c8_154] : memref<10x32xf32, #tpu.memory_space<vmem>>, vector<5x8xf32>
    tpu.vector_store %arg23[%c0_153, %c8_154], %324 {strides = array<i32>} : memref<10x32xf32, #tpu.memory_space<vmem>>, vector<5x8xf32>,
    %326 = vector.extract_strided_slice %285 {offsets = [0, 16], sizes = [5, 8], strides = [1, 1]} : vector<5x32xf32> to vector<5x8xf32>
    %327 = vector.extract_strided_slice %286 {offsets = [0, 16], sizes = [5, 8], strides = [1, 1]} : vector<5x32xf32> to vector<5x8xf32>
    %328 = vector.extract_strided_slice %287 {offsets = [0, 16], sizes = [5, 8], strides = [1, 1]} : vector<5x32xf32> to vector<5x8xf32>
    %329 = tpu.transpose %327, [1, 0] : vector<5x8xf32> -> vector<8x5xf32>
    %cst_155 = arith.constant dense<0.000000e+00> : vector<5x5xf32>
    %330 = tpu.matmul %326, %329, %cst_155 {dimension_numbers = #tpu.dot_dimension_numbers<[1], [0], [0], [1], [0, 0, 1, 1], [], []>} : vector<5x8xf32>, vector<8x5xf32>, vector<5x5xf32> -> vector<5x5xf32>
    %cst_156 = arith.constant 0.353553385 : f32
    %331 = vector.broadcast %cst_156 : f32 to vector<5x5xf32>
    %332 = arith.mulf %330, %331 : vector<5x5xf32>
    %cst_157 = arith.constant dense<0xFF800000> : vector<5xf32>
    %333 = vector.multi_reduction <maximumf>, %332, %cst_157 [1] : vector<5x5xf32> to vector<5xf32>
    %334 = vector.shape_cast %333 : vector<5xf32> to vector<5x1xf32>
    %335 = vector.broadcast %334 : vector<5x1xf32> to vector<5x5xf32>
    %336 = arith.subf %332, %335 : vector<5x5xf32>
    %337 = math.exp %336 : vector<5x5xf32>
    %cst_158 = arith.constant dense<0.000000e+00> : vector<5xf32>
    %338 = vector.multi_reduction <add>, %337, %cst_158 [1] : vector<5x5xf32> to vector<5xf32>
    %339 = vector.shape_cast %338 : vector<5xf32> to vector<5x1xf32>
    %340 = tpu.reciprocal %339 {approx = true} : vector<5x1xf32> -> vector<5x1xf32>
    %341 = vector.broadcast %340 : vector<5x1xf32> to vector<5x5xf32>
    %342 = arith.mulf %337, %341 : vector<5x5xf32>
    %cst_159 = arith.constant dense<0.000000e+00> : vector<5x8xf32>
    %343 = tpu.matmul %342, %328, %cst_159 {dimension_numbers = #tpu.dot_dimension_numbers<[1], [0], [0], [1], [0, 0, 1, 1], [], []>} : vector<5x5xf32>, vector<5x8xf32>, vector<5x8xf32> -> vector<5x8xf32>
    %c0_160 = arith.constant 0 : index
    %c16_161 = arith.constant 16 : index
    %344 = vector.load %arg23[%c0_160, %c16_161] : memref<10x32xf32, #tpu.memory_space<vmem>>, vector<5x8xf32>
    tpu.vector_store %arg23[%c0_160, %c16_161], %343 {strides = array<i32>} : memref<10x32xf32, #tpu.memory_space<vmem>>, vector<5x8xf32>,
    %345 = vector.extract_strided_slice %285 {offsets = [0, 24], sizes = [5, 8], strides = [1, 1]} : vector<5x32xf32> to vector<5x8xf32>
    %346 = vector.extract_strided_slice %286 {offsets = [0, 24], sizes = [5, 8], strides = [1, 1]} : vector<5x32xf32> to vector<5x8xf32>
    %347 = vector.extract_strided_slice %287 {offsets = [0, 24], sizes = [5, 8], strides = [1, 1]} : vector<5x32xf32> to vector<5x8xf32>
    %348 = tpu.transpose %346, [1, 0] : vector<5x8xf32> -> vector<8x5xf32>
    %cst_162 = arith.constant dense<0.000000e+00> : vector<5x5xf32>
    %349 = tpu.matmul %345, %348, %cst_162 {dimension_numbers = #tpu.dot_dimension_numbers<[1], [0], [0], [1], [0, 0, 1, 1], [], []>} : vector<5x8xf32>, vector<8x5xf32>, vector<5x5xf32> -> vector<5x5xf32>
    %cst_163 = arith.constant 0.353553385 : f32
    %350 = vector.broadcast %cst_163 : f32 to vector<5x5xf32>
    %351 = arith.mulf %349, %350 : vector<5x5xf32>
    %cst_164 = arith.constant dense<0xFF800000> : vector<5xf32>
    %352 = vector.multi_reduction <maximumf>, %351, %cst_164 [1] : vector<5x5xf32> to vector<5xf32>
    %353 = vector.shape_cast %352 : vector<5xf32> to vector<5x1xf32>
    %354 = vector.broadcast %353 : vector<5x1xf32> to vector<5x5xf32>
    %355 = arith.subf %351, %354 : vector<5x5xf32>
    %356 = math.exp %355 : vector<5x5xf32>
    %cst_165 = arith.constant dense<0.000000e+00> : vector<5xf32>
    %357 = vector.multi_reduction <add>, %356, %cst_165 [1] : vector<5x5xf32> to vector<5xf32>
    %358 = vector.shape_cast %357 : vector<5xf32> to vector<5x1xf32>
    %359 = tpu.reciprocal %358 {approx = true} : vector<5x1xf32> -> vector<5x1xf32>
    %360 = vector.broadcast %359 : vector<5x1xf32> to vector<5x5xf32>
    %361 = arith.mulf %356, %360 : vector<5x5xf32>
    %cst_166 = arith.constant dense<0.000000e+00> : vector<5x8xf32>
    %362 = tpu.matmul %361, %347, %cst_166 {dimension_numbers = #tpu.dot_dimension_numbers<[1], [0], [0], [1], [0, 0, 1, 1], [], []>} : vector<5x5xf32>, vector<5x8xf32>, vector<5x8xf32> -> vector<5x8xf32>
    %c0_167 = arith.constant 0 : index
    %c24_168 = arith.constant 24 : index
    %363 = vector.load %arg23[%c0_167, %c24_168] : memref<10x32xf32, #tpu.memory_space<vmem>>, vector<5x8xf32>
    tpu.vector_store %arg23[%c0_167, %c24_168], %362 {strides = array<i32>} : memref<10x32xf32, #tpu.memory_space<vmem>>, vector<5x8xf32>,
    %364 = vector.extract_strided_slice %282 {offsets = [5, 0], sizes = [5, 32], strides = [1, 1]} : vector<10x32xf32> to vector<5x32xf32>
    %365 = vector.extract_strided_slice %283 {offsets = [5, 0], sizes = [5, 32], strides = [1, 1]} : vector<10x32xf32> to vector<5x32xf32>
    %366 = vector.extract_strided_slice %284 {offsets = [5, 0], sizes = [5, 32], strides = [1, 1]} : vector<10x32xf32> to vector<5x32xf32>
    %367 = vector.extract_strided_slice %364 {offsets = [0, 0], sizes = [5, 8], strides = [1, 1]} : vector<5x32xf32> to vector<5x8xf32>
    %368 = vector.extract_strided_slice %365 {offsets = [0, 0], sizes = [5, 8], strides = [1, 1]} : vector<5x32xf32> to vector<5x8xf32>
    %369 = vector.extract_strided_slice %366 {offsets = [0, 0], sizes = [5, 8], strides = [1, 1]} : vector<5x32xf32> to vector<5x8xf32>
    %370 = tpu.transpose %368, [1, 0] : vector<5x8xf32> -> vector<8x5xf32>
    %cst_169 = arith.constant dense<0.000000e+00> : vector<5x5xf32>
    %371 = tpu.matmul %367, %370, %cst_169 {dimension_numbers = #tpu.dot_dimension_numbers<[1], [0], [0], [1], [0, 0, 1, 1], [], []>} : vector<5x8xf32>, vector<8x5xf32>, vector<5x5xf32> -> vector<5x5xf32>
    %cst_170 = arith.constant 0.353553385 : f32
    %372 = vector.broadcast %cst_170 : f32 to vector<5x5xf32>
    %373 = arith.mulf %371, %372 : vector<5x5xf32>
    %cst_171 = arith.constant dense<0xFF800000> : vector<5xf32>
    %374 = vector.multi_reduction <maximumf>, %373, %cst_171 [1] : vector<5x5xf32> to vector<5xf32>
    %375 = vector.shape_cast %374 : vector<5xf32> to vector<5x1xf32>
    %376 = vector.broadcast %375 : vector<5x1xf32> to vector<5x5xf32>
    %377 = arith.subf %373, %376 : vector<5x5xf32>
    %378 = math.exp %377 : vector<5x5xf32>
    %cst_172 = arith.constant dense<0.000000e+00> : vector<5xf32>
    %379 = vector.multi_reduction <add>, %378, %cst_172 [1] : vector<5x5xf32> to vector<5xf32>
    %380 = vector.shape_cast %379 : vector<5xf32> to vector<5x1xf32>
    %381 = tpu.reciprocal %380 {approx = true} : vector<5x1xf32> -> vector<5x1xf32>
    %382 = vector.broadcast %381 : vector<5x1xf32> to vector<5x5xf32>
    %383 = arith.mulf %378, %382 : vector<5x5xf32>
    %cst_173 = arith.constant dense<0.000000e+00> : vector<5x8xf32>
    %384 = tpu.matmul %383, %369, %cst_173 {dimension_numbers = #tpu.dot_dimension_numbers<[1], [0], [0], [1], [0, 0, 1, 1], [], []>} : vector<5x5xf32>, vector<5x8xf32>, vector<5x8xf32> -> vector<5x8xf32>
    %c5_174 = arith.constant 5 : index
    %c0_175 = arith.constant 0 : index
    %385 = vector.load %arg23[%c5_174, %c0_175] : memref<10x32xf32, #tpu.memory_space<vmem>>, vector<5x8xf32>
    tpu.vector_store %arg23[%c5_174, %c0_175], %384 {strides = array<i32>} : memref<10x32xf32, #tpu.memory_space<vmem>>, vector<5x8xf32>,
    %386 = vector.extract_strided_slice %364 {offsets = [0, 8], sizes = [5, 8], strides = [1, 1]} : vector<5x32xf32> to vector<5x8xf32>
    %387 = vector.extract_strided_slice %365 {offsets = [0, 8], sizes = [5, 8], strides = [1, 1]} : vector<5x32xf32> to vector<5x8xf32>
    %388 = vector.extract_strided_slice %366 {offsets = [0, 8], sizes = [5, 8], strides = [1, 1]} : vector<5x32xf32> to vector<5x8xf32>
    %389 = tpu.transpose %387, [1, 0] : vector<5x8xf32> -> vector<8x5xf32>
    %cst_176 = arith.constant dense<0.000000e+00> : vector<5x5xf32>
    %390 = tpu.matmul %386, %389, %cst_176 {dimension_numbers = #tpu.dot_dimension_numbers<[1], [0], [0], [1], [0, 0, 1, 1], [], []>} : vector<5x8xf32>, vector<8x5xf32>, vector<5x5xf32> -> vector<5x5xf32>
    %cst_177 = arith.constant 0.353553385 : f32
    %391 = vector.broadcast %cst_177 : f32 to vector<5x5xf32>
    %392 = arith.mulf %390, %391 : vector<5x5xf32>
    %cst_178 = arith.constant dense<0xFF800000> : vector<5xf32>
    %393 = vector.multi_reduction <maximumf>, %392, %cst_178 [1] : vector<5x5xf32> to vector<5xf32>
    %394 = vector.shape_cast %393 : vector<5xf32> to vector<5x1xf32>
    %395 = vector.broadcast %394 : vector<5x1xf32> to vector<5x5xf32>
    %396 = arith.subf %392, %395 : vector<5x5xf32>
    %397 = math.exp %396 : vector<5x5xf32>
    %cst_179 = arith.constant dense<0.000000e+00> : vector<5xf32>
    %398 = vector.multi_reduction <add>, %397, %cst_179 [1] : vector<5x5xf32> to vector<5xf32>
    %399 = vector.shape_cast %398 : vector<5xf32> to vector<5x1xf32>
    %400 = tpu.reciprocal %399 {approx = true} : vector<5x1xf32> -> vector<5x1xf32>
    %401 = vector.broadcast %400 : vector<5x1xf32> to vector<5x5xf32>
    %402 = arith.mulf %397, %401 : vector<5x5xf32>
    %cst_180 = arith.constant dense<0.000000e+00> : vector<5x8xf32>
    %403 = tpu.matmul %402, %388, %cst_180 {dimension_numbers = #tpu.dot_dimension_numbers<[1], [0], [0], [1], [0, 0, 1, 1], [], []>} : vector<5x5xf32>, vector<5x8xf32>, vector<5x8xf32> -> vector<5x8xf32>
    %c5_181 = arith.constant 5 : index
    %c8_182 = arith.constant 8 : index
    %404 = vector.load %arg23[%c5_181, %c8_182] : memref<10x32xf32, #tpu.memory_space<vmem>>, vector<5x8xf32>
    tpu.vector_store %arg23[%c5_181, %c8_182], %403 {strides = array<i32>} : memref<10x32xf32, #tpu.memory_space<vmem>>, vector<5x8xf32>,
    %405 = vector.extract_strided_slice %364 {offsets = [0, 16], sizes = [5, 8], strides = [1, 1]} : vector<5x32xf32> to vector<5x8xf32>
    %406 = vector.extract_strided_slice %365 {offsets = [0, 16], sizes = [5, 8], strides = [1, 1]} : vector<5x32xf32> to vector<5x8xf32>
    %407 = vector.extract_strided_slice %366 {offsets = [0, 16], sizes = [5, 8], strides = [1, 1]} : vector<5x32xf32> to vector<5x8xf32>
    %408 = tpu.transpose %406, [1, 0] : vector<5x8xf32> -> vector<8x5xf32>
    %cst_183 = arith.constant dense<0.000000e+00> : vector<5x5xf32>
    %409 = tpu.matmul %405, %408, %cst_183 {dimension_numbers = #tpu.dot_dimension_numbers<[1], [0], [0], [1], [0, 0, 1, 1], [], []>} : vector<5x8xf32>, vector<8x5xf32>, vector<5x5xf32> -> vector<5x5xf32>
    %cst_184 = arith.constant 0.353553385 : f32
    %410 = vector.broadcast %cst_184 : f32 to vector<5x5xf32>
    %411 = arith.mulf %409, %410 : vector<5x5xf32>
    %cst_185 = arith.constant dense<0xFF800000> : vector<5xf32>
    %412 = vector.multi_reduction <maximumf>, %411, %cst_185 [1] : vector<5x5xf32> to vector<5xf32>
    %413 = vector.shape_cast %412 : vector<5xf32> to vector<5x1xf32>
    %414 = vector.broadcast %413 : vector<5x1xf32> to vector<5x5xf32>
    %415 = arith.subf %411, %414 : vector<5x5xf32>
    %416 = math.exp %415 : vector<5x5xf32>
    %cst_186 = arith.constant dense<0.000000e+00> : vector<5xf32>
    %417 = vector.multi_reduction <add>, %416, %cst_186 [1] : vector<5x5xf32> to vector<5xf32>
    %418 = vector.shape_cast %417 : vector<5xf32> to vector<5x1xf32>
    %419 = tpu.reciprocal %418 {approx = true} : vector<5x1xf32> -> vector<5x1xf32>
    %420 = vector.broadcast %419 : vector<5x1xf32> to vector<5x5xf32>
    %421 = arith.mulf %416, %420 : vector<5x5xf32>
    %cst_187 = arith.constant dense<0.000000e+00> : vector<5x8xf32>
    %422 = tpu.matmul %421, %407, %cst_187 {dimension_numbers = #tpu.dot_dimension_numbers<[1], [0], [0], [1], [0, 0, 1, 1], [], []>} : vector<5x5xf32>, vector<5x8xf32>, vector<5x8xf32> -> vector<5x8xf32>
    %c5_188 = arith.constant 5 : index
    %c16_189 = arith.constant 16 : index
    %423 = vector.load %arg23[%c5_188, %c16_189] : memref<10x32xf32, #tpu.memory_space<vmem>>, vector<5x8xf32>
    tpu.vector_store %arg23[%c5_188, %c16_189], %422 {strides = array<i32>} : memref<10x32xf32, #tpu.memory_space<vmem>>, vector<5x8xf32>,
    %424 = vector.extract_strided_slice %364 {offsets = [0, 24], sizes = [5, 8], strides = [1, 1]} : vector<5x32xf32> to vector<5x8xf32>
    %425 = vector.extract_strided_slice %365 {offsets = [0, 24], sizes = [5, 8], strides = [1, 1]} : vector<5x32xf32> to vector<5x8xf32>
    %426 = vector.extract_strided_slice %366 {offsets = [0, 24], sizes = [5, 8], strides = [1, 1]} : vector<5x32xf32> to vector<5x8xf32>
    %427 = tpu.transpose %425, [1, 0] : vector<5x8xf32> -> vector<8x5xf32>
    %cst_190 = arith.constant dense<0.000000e+00> : vector<5x5xf32>
    %428 = tpu.matmul %424, %427, %cst_190 {dimension_numbers = #tpu.dot_dimension_numbers<[1], [0], [0], [1], [0, 0, 1, 1], [], []>} : vector<5x8xf32>, vector<8x5xf32>, vector<5x5xf32> -> vector<5x5xf32>
    %cst_191 = arith.constant 0.353553385 : f32
    %429 = vector.broadcast %cst_191 : f32 to vector<5x5xf32>
    %430 = arith.mulf %428, %429 : vector<5x5xf32>
    %cst_192 = arith.constant dense<0xFF800000> : vector<5xf32>
    %431 = vector.multi_reduction <maximumf>, %430, %cst_192 [1] : vector<5x5xf32> to vector<5xf32>
    %432 = vector.shape_cast %431 : vector<5xf32> to vector<5x1xf32>
    %433 = vector.broadcast %432 : vector<5x1xf32> to vector<5x5xf32>
    %434 = arith.subf %430, %433 : vector<5x5xf32>
    %435 = math.exp %434 : vector<5x5xf32>
    %cst_193 = arith.constant dense<0.000000e+00> : vector<5xf32>
    %436 = vector.multi_reduction <add>, %435, %cst_193 [1] : vector<5x5xf32> to vector<5xf32>
    %437 = vector.shape_cast %436 : vector<5xf32> to vector<5x1xf32>
    %438 = tpu.reciprocal %437 {approx = true} : vector<5x1xf32> -> vector<5x1xf32>
    %439 = vector.broadcast %438 : vector<5x1xf32> to vector<5x5xf32>
    %440 = arith.mulf %435, %439 : vector<5x5xf32>
    %cst_194 = arith.constant dense<0.000000e+00> : vector<5x8xf32>
    %441 = tpu.matmul %440, %426, %cst_194 {dimension_numbers = #tpu.dot_dimension_numbers<[1], [0], [0], [1], [0, 0, 1, 1], [], []>} : vector<5x5xf32>, vector<5x8xf32>, vector<5x8xf32> -> vector<5x8xf32>
    %c5_195 = arith.constant 5 : index
    %c24_196 = arith.constant 24 : index
    %442 = vector.load %arg23[%c5_195, %c24_196] : memref<10x32xf32, #tpu.memory_space<vmem>>, vector<5x8xf32>
    tpu.vector_store %arg23[%c5_195, %c24_196], %441 {strides = array<i32>} : memref<10x32xf32, #tpu.memory_space<vmem>>, vector<5x8xf32>,
    %c0_197 = arith.constant 0 : index
    %c0_198 = arith.constant 0 : index
    %443 = vector.load %arg23[%c0_197, %c0_198] : memref<10x32xf32, #tpu.memory_space<vmem>>, vector<10x32xf32>
    %c1_199 = arith.constant 1 : index
    %c0_200 = arith.constant 0 : index
    %c0_201 = arith.constant 0 : index
    %444 = vector.load %arg9[%c1_199, %c0_200, %c0_201] : memref<2x32x32xf32, #tpu.memory_space<vmem>>, vector<1x32x32xf32>
    %445 = vector.shape_cast %444 : vector<1x32x32xf32> to vector<32x32xf32>
    %cst_202 = arith.constant dense<0.000000e+00> : vector<10x32xf32>
    %446 = tpu.matmul %443, %445, %cst_202 {dimension_numbers = #tpu.dot_dimension_numbers<[1], [0], [0], [1], [0, 0, 1, 1], [], []>} : vector<10x32xf32>, vector<32x32xf32>, vector<10x32xf32> -> vector<10x32xf32>
    %c1_203 = arith.constant 1 : index
    %c0_204 = arith.constant 0 : index
    %c0_205 = arith.constant 0 : index
    %447 = vector.load %arg10[%c1_203, %c0_204, %c0_205] : memref<2x1x32xf32, #tpu.memory_space<vmem>>, vector<1x1x32xf32>
    %448 = vector.shape_cast %447 : vector<1x1x32xf32> to vector<1x32xf32>
    %449 = vector.broadcast %448 : vector<1x32xf32> to vector<10x32xf32>
    %450 = arith.addf %446, %449 : vector<10x32xf32>
    %451 = arith.addf %274, %450 : vector<10x32xf32>
    %c1_206 = arith.constant 1 : index
    %c0_207 = arith.constant 0 : index
    %c0_208 = arith.constant 0 : index
    %452 = vector.load %arg15[%c1_206, %c0_207, %c0_208] : memref<2x1x32xf32, #tpu.memory_space<vmem>>, vector<1x1x32xf32>
    %453 = vector.shape_cast %452 : vector<1x1x32xf32> to vector<1x32xf32>
    %c1_209 = arith.constant 1 : index
    %c0_210 = arith.constant 0 : index
    %c0_211 = arith.constant 0 : index
    %454 = vector.load %arg16[%c1_209, %c0_210, %c0_211] : memref<2x1x32xf32, #tpu.memory_space<vmem>>, vector<1x1x32xf32>
    %455 = vector.shape_cast %454 : vector<1x1x32xf32> to vector<1x32xf32>
    %cst_212 = arith.constant dense<0.000000e+00> : vector<10xf32>
    %456 = vector.multi_reduction <add>, %451, %cst_212 [1] : vector<10x32xf32> to vector<10xf32>
    %457 = vector.shape_cast %456 : vector<10xf32> to vector<10x1xf32>
    %cst_213 = arith.constant 3.200000e+01 : f32
    %458 = vector.broadcast %cst_213 : f32 to vector<10x1xf32>
    %459 = arith.divf %457, %458 : vector<10x1xf32>
    %460 = vector.broadcast %459 : vector<10x1xf32> to vector<10x32xf32>
    %461 = arith.subf %451, %460 : vector<10x32xf32>
    %462 = arith.mulf %461, %461 : vector<10x32xf32>
    %cst_214 = arith.constant dense<0.000000e+00> : vector<10xf32>
    %463 = vector.multi_reduction <add>, %462, %cst_214 [1] : vector<10x32xf32> to vector<10xf32>
    %464 = vector.shape_cast %463 : vector<10xf32> to vector<10x1xf32>
    %cst_215 = arith.constant 3.200000e+01 : f32
    %465 = vector.broadcast %cst_215 : f32 to vector<10x1xf32>
    %466 = arith.divf %464, %465 : vector<10x1xf32>
    %cst_216 = arith.constant 9.99999974E-6 : f32
    %467 = vector.broadcast %cst_216 : f32 to vector<10x1xf32>
    %468 = arith.addf %466, %467 : vector<10x1xf32>
    %469 = math.rsqrt %468 : vector<10x1xf32>
    %470 = vector.broadcast %469 : vector<10x1xf32> to vector<10x32xf32>
    %471 = arith.mulf %461, %470 : vector<10x32xf32>
    %472 = vector.broadcast %453 : vector<1x32xf32> to vector<10x32xf32>
    %473 = arith.mulf %471, %472 : vector<10x32xf32>
    %474 = vector.broadcast %455 : vector<1x32xf32> to vector<10x32xf32>
    %475 = arith.addf %473, %474 : vector<10x32xf32>
    %c1_217 = arith.constant 1 : index
    %c0_218 = arith.constant 0 : index
    %c0_219 = arith.constant 0 : index
    %476 = vector.load %arg11[%c1_217, %c0_218, %c0_219] : memref<2x32x64xf32, #tpu.memory_space<vmem>>, vector<1x32x64xf32>
    %477 = vector.shape_cast %476 : vector<1x32x64xf32> to vector<32x64xf32>
    %cst_220 = arith.constant dense<0.000000e+00> : vector<10x64xf32>
    %478 = tpu.matmul %475, %477, %cst_220 {dimension_numbers = #tpu.dot_dimension_numbers<[1], [0], [0], [1], [0, 0, 1, 1], [], []>} : vector<10x32xf32>, vector<32x64xf32>, vector<10x64xf32> -> vector<10x64xf32>
    %c1_221 = arith.constant 1 : index
    %c0_222 = arith.constant 0 : index
    %c0_223 = arith.constant 0 : index
    %479 = vector.load %arg12[%c1_221, %c0_222, %c0_223] : memref<2x1x64xf32, #tpu.memory_space<vmem>>, vector<1x1x64xf32>
    %480 = vector.shape_cast %479 : vector<1x1x64xf32> to vector<1x64xf32>
    %481 = vector.broadcast %480 : vector<1x64xf32> to vector<10x64xf32>
    %482 = arith.addf %478, %481 : vector<10x64xf32>
    %cst_224 = arith.constant 0.000000e+00 : f32
    %483 = vector.broadcast %cst_224 : f32 to vector<10x64xf32>
    %484 = arith.maximumf %482, %483 : vector<10x64xf32>
    %c1_225 = arith.constant 1 : index
    %c0_226 = arith.constant 0 : index
    %c0_227 = arith.constant 0 : index
    %485 = vector.load %arg13[%c1_225, %c0_226, %c0_227] : memref<2x64x32xf32, #tpu.memory_space<vmem>>, vector<1x64x32xf32>
    %486 = vector.shape_cast %485 : vector<1x64x32xf32> to vector<64x32xf32>
    %cst_228 = arith.constant dense<0.000000e+00> : vector<10x32xf32>
    %487 = tpu.matmul %484, %486, %cst_228 {dimension_numbers = #tpu.dot_dimension_numbers<[1], [0], [0], [1], [0, 0, 1, 1], [], []>} : vector<10x64xf32>, vector<64x32xf32>, vector<10x32xf32> -> vector<10x32xf32>
    %c1_229 = arith.constant 1 : index
    %c0_230 = arith.constant 0 : index
    %c0_231 = arith.constant 0 : index
    %488 = vector.load %arg14[%c1_229, %c0_230, %c0_231] : memref<2x1x32xf32, #tpu.memory_space<vmem>>, vector<1x1x32xf32>
    %489 = vector.shape_cast %488 : vector<1x1x32xf32> to vector<1x32xf32>
    %490 = vector.broadcast %489 : vector<1x32xf32> to vector<10x32xf32>
    %491 = arith.addf %487, %490 : vector<10x32xf32>
    %492 = arith.addf %475, %491 : vector<10x32xf32>
    %c1_232 = arith.constant 1 : index
    %c0_233 = arith.constant 0 : index
    %c0_234 = arith.constant 0 : index
    %493 = vector.load %arg17[%c1_232, %c0_233, %c0_234] : memref<2x1x32xf32, #tpu.memory_space<vmem>>, vector<1x1x32xf32>
    %494 = vector.shape_cast %493 : vector<1x1x32xf32> to vector<1x32xf32>
    %c1_235 = arith.constant 1 : index
    %c0_236 = arith.constant 0 : index
    %c0_237 = arith.constant 0 : index
    %495 = vector.load %arg18[%c1_235, %c0_236, %c0_237] : memref<2x1x32xf32, #tpu.memory_space<vmem>>, vector<1x1x32xf32>
    %496 = vector.shape_cast %495 : vector<1x1x32xf32> to vector<1x32xf32>
    %cst_238 = arith.constant dense<0.000000e+00> : vector<10xf32>
    %497 = vector.multi_reduction <add>, %492, %cst_238 [1] : vector<10x32xf32> to vector<10xf32>
    %498 = vector.shape_cast %497 : vector<10xf32> to vector<10x1xf32>
    %cst_239 = arith.constant 3.200000e+01 : f32
    %499 = vector.broadcast %cst_239 : f32 to vector<10x1xf32>
    %500 = arith.divf %498, %499 : vector<10x1xf32>
    %501 = vector.broadcast %500 : vector<10x1xf32> to vector<10x32xf32>
    %502 = arith.subf %492, %501 : vector<10x32xf32>
    %503 = arith.mulf %502, %502 : vector<10x32xf32>
    %cst_240 = arith.constant dense<0.000000e+00> : vector<10xf32>
    %504 = vector.multi_reduction <add>, %503, %cst_240 [1] : vector<10x32xf32> to vector<10xf32>
    %505 = vector.shape_cast %504 : vector<10xf32> to vector<10x1xf32>
    %cst_241 = arith.constant 3.200000e+01 : f32
    %506 = vector.broadcast %cst_241 : f32 to vector<10x1xf32>
    %507 = arith.divf %505, %506 : vector<10x1xf32>
    %cst_242 = arith.constant 9.99999974E-6 : f32
    %508 = vector.broadcast %cst_242 : f32 to vector<10x1xf32>
    %509 = arith.addf %507, %508 : vector<10x1xf32>
    %510 = math.rsqrt %509 : vector<10x1xf32>
    %511 = vector.broadcast %510 : vector<10x1xf32> to vector<10x32xf32>
    %512 = arith.mulf %502, %511 : vector<10x32xf32>
    %513 = vector.broadcast %494 : vector<1x32xf32> to vector<10x32xf32>
    %514 = arith.mulf %512, %513 : vector<10x32xf32>
    %515 = vector.broadcast %496 : vector<1x32xf32> to vector<10x32xf32>
    %516 = arith.addf %514, %515 : vector<10x32xf32>
    %c0_243 = arith.constant 0 : index
    %c0_244 = arith.constant 0 : index
    %517 = vector.load %arg22[%c0_243, %c0_244] : memref<10x32xf32, #tpu.memory_space<vmem>>, vector<10x32xf32>
    tpu.vector_store %arg22[%c0_243, %c0_244], %516 {strides = array<i32>} : memref<10x32xf32, #tpu.memory_space<vmem>>, vector<10x32xf32>,
    %c0_245 = arith.constant 0 : index
    %c0_246 = arith.constant 0 : index
    %518 = vector.load %arg22[%c0_245, %c0_246] : memref<10x32xf32, #tpu.memory_space<vmem>>, vector<10x32xf32>
    %c0_247 = arith.constant 0 : index
    %c0_248 = arith.constant 0 : index
    %519 = vector.load %arg19[%c0_247, %c0_248] : memref<1x32xf32, #tpu.memory_space<vmem>>, vector<1x32xf32>
    %c0_249 = arith.constant 0 : index
    %c0_250 = arith.constant 0 : index
    %520 = vector.load %arg20[%c0_249, %c0_250] : memref<1x32xf32, #tpu.memory_space<vmem>>, vector<1x32xf32>
    %cst_251 = arith.constant dense<0.000000e+00> : vector<10xf32>
    %521 = vector.multi_reduction <add>, %518, %cst_251 [1] : vector<10x32xf32> to vector<10xf32>
    %522 = vector.shape_cast %521 : vector<10xf32> to vector<10x1xf32>
    %cst_252 = arith.constant 3.200000e+01 : f32
    %523 = vector.broadcast %cst_252 : f32 to vector<10x1xf32>
    %524 = arith.divf %522, %523 : vector<10x1xf32>
    %525 = vector.broadcast %524 : vector<10x1xf32> to vector<10x32xf32>
    %526 = arith.subf %518, %525 : vector<10x32xf32>
    %527 = arith.mulf %526, %526 : vector<10x32xf32>
    %cst_253 = arith.constant dense<0.000000e+00> : vector<10xf32>
    %528 = vector.multi_reduction <add>, %527, %cst_253 [1] : vector<10x32xf32> to vector<10xf32>
    %529 = vector.shape_cast %528 : vector<10xf32> to vector<10x1xf32>
    %cst_254 = arith.constant 3.200000e+01 : f32
    %530 = vector.broadcast %cst_254 : f32 to vector<10x1xf32>
    %531 = arith.divf %529, %530 : vector<10x1xf32>
    %cst_255 = arith.constant 9.99999974E-6 : f32
    %532 = vector.broadcast %cst_255 : f32 to vector<10x1xf32>
    %533 = arith.addf %531, %532 : vector<10x1xf32>
    %534 = math.rsqrt %533 : vector<10x1xf32>
    %535 = vector.broadcast %534 : vector<10x1xf32> to vector<10x32xf32>
    %536 = arith.mulf %526, %535 : vector<10x32xf32>
    %537 = vector.broadcast %519 : vector<1x32xf32> to vector<10x32xf32>
    %538 = arith.mulf %536, %537 : vector<10x32xf32>
    %539 = vector.broadcast %520 : vector<1x32xf32> to vector<10x32xf32>
    %540 = arith.addf %538, %539 : vector<10x32xf32>
    %c0_256 = arith.constant 0 : index
    %c0_257 = arith.constant 0 : index
    %541 = vector.load %arg21[%c0_256, %c0_257] : memref<10x32xf32, #tpu.memory_space<vmem>>, vector<10x32xf32>
    tpu.vector_store %arg21[%c0_256, %c0_257], %540 {strides = array<i32>} : memref<10x32xf32, #tpu.memory_space<vmem>>, vector<10x32xf32>,
    return
  }
  func.func @transform_0(%arg0: i32) -> (i32, i32) {
    %c0_i32 = arith.constant 0 : i32
    %c0_i32_0 = arith.constant 0 : i32
    %c0_i32_1 = arith.constant 0 : i32
    return %c0_i32, %c0_i32_0 : i32, i32
  }
  func.func @transform_1(%arg0: i32) -> (i32, i32) {
    %c0_i32 = arith.constant 0 : i32
    %c0_i32_0 = arith.constant 0 : i32
    %c0_i32_1 = arith.constant 0 : i32
    return %c0_i32, %c0_i32_0 : i32, i32
  }
  func.func @transform_2(%arg0: i32) -> (i32, i32) {
    %c0_i32 = arith.constant 0 : i32
    %c0_i32_0 = arith.constant 0 : i32
    %c0_i32_1 = arith.constant 0 : i32
    return %c0_i32, %c0_i32_0 : i32, i32
  }
  func.func @transform_3(%arg0: i32) -> (i32, i32) {
    %c0_i32 = arith.constant 0 : i32
    %c0_i32_0 = arith.constant 0 : i32
    %c0_i32_1 = arith.constant 0 : i32
    return %c0_i32, %c0_i32_0 : i32, i32
  }
  func.func @transform_4(%arg0: i32) -> (i32, i32) {
    %c0_i32 = arith.constant 0 : i32
    %c0_i32_0 = arith.constant 0 : i32
    %c0_i32_1 = arith.constant 0 : i32
    return %c0_i32, %c0_i32_0 : i32, i32
  }
  func.func @transform_5(%arg0: i32) -> (i32, i32) {
    %c0_i32 = arith.constant 0 : i32
    %c0_i32_0 = arith.constant 0 : i32
    %c0_i32_1 = arith.constant 0 : i32
    return %c0_i32, %c0_i32_0 : i32, i32
  }
  func.func @transform_6(%arg0: i32) -> (i32, i32, i32) {
    %c0_i32 = arith.constant 0 : i32
    %c0_i32_0 = arith.constant 0 : i32
    %c0_i32_1 = arith.constant 0 : i32
    %c0_i32_2 = arith.constant 0 : i32
    return %c0_i32, %c0_i32_0, %c0_i32_1 : i32, i32, i32
  }
  func.func @transform_7(%arg0: i32) -> (i32, i32, i32) {
    %c0_i32 = arith.constant 0 : i32
    %c0_i32_0 = arith.constant 0 : i32
    %c0_i32_1 = arith.constant 0 : i32
    %c0_i32_2 = arith.constant 0 : i32
    return %c0_i32, %c0_i32_0, %c0_i32_1 : i32, i32, i32
  }
  func.func @transform_8(%arg0: i32) -> (i32, i32, i32) {
    %c0_i32 = arith.constant 0 : i32
    %c0_i32_0 = arith.constant 0 : i32
    %c0_i32_1 = arith.constant 0 : i32
    %c0_i32_2 = arith.constant 0 : i32
    return %c0_i32, %c0_i32_0, %c0_i32_1 : i32, i32, i32
  }
  func.func @transform_9(%arg0: i32) -> (i32, i32, i32) {
    %c0_i32 = arith.constant 0 : i32
    %c0_i32_0 = arith.constant 0 : i32
    %c0_i32_1 = arith.constant 0 : i32
    %c0_i32_2 = arith.constant 0 : i32
    return %c0_i32, %c0_i32_0, %c0_i32_1 : i32, i32, i32
  }
  func.func @transform_10(%arg0: i32) -> (i32, i32, i32) {
    %c0_i32 = arith.constant 0 : i32
    %c0_i32_0 = arith.constant 0 : i32
    %c0_i32_1 = arith.constant 0 : i32
    %c0_i32_2 = arith.constant 0 : i32
    return %c0_i32, %c0_i32_0, %c0_i32_1 : i32, i32, i32
  }
  func.func @transform_11(%arg0: i32) -> (i32, i32, i32) {
    %c0_i32 = arith.constant 0 : i32
    %c0_i32_0 = arith.constant 0 : i32
    %c0_i32_1 = arith.constant 0 : i32
    %c0_i32_2 = arith.constant 0 : i32
    return %c0_i32, %c0_i32_0, %c0_i32_1 : i32, i32, i32
  }
  func.func @transform_12(%arg0: i32) -> (i32, i32, i32) {
    %c0_i32 = arith.constant 0 : i32
    %c0_i32_0 = arith.constant 0 : i32
    %c0_i32_1 = arith.constant 0 : i32
    %c0_i32_2 = arith.constant 0 : i32
    return %c0_i32, %c0_i32_0, %c0_i32_1 : i32, i32, i32
  }
  func.func @transform_13(%arg0: i32) -> (i32, i32, i32) {
    %c0_i32 = arith.constant 0 : i32
    %c0_i32_0 = arith.constant 0 : i32
    %c0_i32_1 = arith.constant 0 : i32
    %c0_i32_2 = arith.constant 0 : i32
    return %c0_i32, %c0_i32_0, %c0_i32_1 : i32, i32, i32
  }
  func.func @transform_14(%arg0: i32) -> (i32, i32, i32) {
    %c0_i32 = arith.constant 0 : i32
    %c0_i32_0 = arith.constant 0 : i32
    %c0_i32_1 = arith.constant 0 : i32
    %c0_i32_2 = arith.constant 0 : i32
    return %c0_i32, %c0_i32_0, %c0_i32_1 : i32, i32, i32
  }
  func.func @transform_15(%arg0: i32) -> (i32, i32, i32) {
    %c0_i32 = arith.constant 0 : i32
    %c0_i32_0 = arith.constant 0 : i32
    %c0_i32_1 = arith.constant 0 : i32
    %c0_i32_2 = arith.constant 0 : i32
    return %c0_i32, %c0_i32_0, %c0_i32_1 : i32, i32, i32
  }
  func.func @transform_16(%arg0: i32) -> (i32, i32, i32) {
    %c0_i32 = arith.constant 0 : i32
    %c0_i32_0 = arith.constant 0 : i32
    %c0_i32_1 = arith.constant 0 : i32
    %c0_i32_2 = arith.constant 0 : i32
    return %c0_i32, %c0_i32_0, %c0_i32_1 : i32, i32, i32
  }
  func.func @transform_17(%arg0: i32) -> (i32, i32, i32) {
    %c0_i32 = arith.constant 0 : i32
    %c0_i32_0 = arith.constant 0 : i32
    %c0_i32_1 = arith.constant 0 : i32
    %c0_i32_2 = arith.constant 0 : i32
    return %c0_i32, %c0_i32_0, %c0_i32_1 : i32, i32, i32
  }
  func.func @transform_18(%arg0: i32) -> (i32, i32) {
    %c0_i32 = arith.constant 0 : i32
    %c0_i32_0 = arith.constant 0 : i32
    %c0_i32_1 = arith.constant 0 : i32
    return %c0_i32, %c0_i32_0 : i32, i32
  }
  func.func @transform_19(%arg0: i32) -> (i32, i32) {
    %c0_i32 = arith.constant 0 : i32
    %c0_i32_0 = arith.constant 0 : i32
    %c0_i32_1 = arith.constant 0 : i32
    return %c0_i32, %c0_i32_0 : i32, i32
  }
  func.func @transform_20(%arg0: i32) -> (i32, i32) {
    %c0_i32 = arith.constant 0 : i32
    %c0_i32_0 = arith.constant 0 : i32
    %c0_i32_1 = arith.constant 0 : i32
    return %c0_i32, %c0_i32_0 : i32, i32
  }
}

</mosaic_0001>

<llo_original>
// kernel: _lambda_.1
$region0: #{_lambda_.1}
  #allocation0 [shape = 'u32[]', space=smem, size = 0x4, offset = 0x4, fixed_abs, tag = 'smem constant byte address 0x4 - core index']
  #allocation1 [shape = 'u32[72,128]{1,0:T(1,128)}', space=vmem, size = 0x9000, scoped, tag = 'internal scratch']
  #allocation2 [shape = 'f32[10,32]{1,0:T(8,128)}', space=vmem, size = 0x2000, scoped, tag = 'scratch operand']
  #allocation3 [shape = 'f32[10,32]{1,0:T(8,128)}', space=vmem, size = 0x2000, scoped, tag = 'scratch operand']
  %s0 = inlined_call_operand.vmem [shape: f32[8,1152], index: 0, kind: input, shape index: {}]
  %s1 = inlined_call_operand.vmem [shape: f32[10,3], index: 1, kind: input, shape index: {}]
  %s2 = inlined_call_operand.vmem [shape: bf16[1152,32], index: 2, kind: input, shape index: {}]
  %s3 = inlined_call_operand.vmem [shape: f32[1,32], index: 3, kind: input, shape index: {}]
  %s4 = inlined_call_operand.vmem [shape: f32[3,32], index: 4, kind: input, shape index: {}]
  %s5 = inlined_call_operand.vmem [shape: f32[1,32], index: 5, kind: input, shape index: {}]
  %s6 = inlined_call_operand.vmem [shape: f32[2,32,96], index: 6, kind: input, shape index: {}]
  %s7 = inlined_call_operand.vmem [shape: f32[2,1,96], index: 7, kind: input, shape index: {}]
  %s8 = inlined_call_operand.vmem [shape: f32[2,32,32], index: 8, kind: input, shape index: {}]
  %s9 = inlined_call_operand.vmem [shape: f32[2,1,32], index: 9, kind: input, shape index: {}]
  %s10 = inlined_call_operand.vmem [shape: f32[2,32,64], index: 10, kind: input, shape index: {}]
  %s11 = inlined_call_operand.vmem [shape: f32[2,1,64], index: 11, kind: input, shape index: {}]
  %s12 = inlined_call_operand.vmem [shape: f32[2,64,32], index: 12, kind: input, shape index: {}]
  %s13 = inlined_call_operand.vmem [shape: f32[2,1,32], index: 13, kind: input, shape index: {}]
  %s14 = inlined_call_operand.vmem [shape: f32[2,1,32], index: 14, kind: input, shape index: {}]
  %s15 = inlined_call_operand.vmem [shape: f32[2,1,32], index: 15, kind: input, shape index: {}]
  %s16 = inlined_call_operand.vmem [shape: f32[2,1,32], index: 16, kind: input, shape index: {}]
  %s17 = inlined_call_operand.vmem [shape: f32[2,1,32], index: 17, kind: input, shape index: {}]
  %s18 = inlined_call_operand.vmem [shape: f32[1,32], index: 18, kind: input, shape index: {}]
  %s19 = inlined_call_operand.vmem [shape: f32[1,32], index: 19, kind: input, shape index: {}]
  %s20 = inlined_call_operand.vmem [shape: f32[10,32], index: 20, kind: output, shape index: {}]
  %s21 = sld [smem:[#allocation0]]
  $region90: #{_lambda_.1} parent=0
    _
  %s23 = ssub.s32 1, %s21
  %s24 = scalar_select 0, %s23, %s21
  // Predicated region
  $region2: #{_lambda_.1} parent=0 // pred_check
    _
  $region3: #{_lambda_.1} parent=0 // pred_check_branch
    %26 = sbr.rel (0) target = $region5
  $region4: #{_lambda_.1} parent=0 // pred_region
    _
  $region5: #{_lambda_.1} parent=0 // pred_fallthru
    _
  // Predicated region
  $region6: #{_lambda_.1} parent=0 // pred_check
    _
  $region7: #{_lambda_.1} parent=0 // pred_check_branch
    %28 = sbr.rel (0) target = $region9
  $region8: #{_lambda_.1} parent=0 // pred_region
    _
  $region9: #{_lambda_.1} parent=0 // pred_fallthru
    _
  // Predicated region
  $region10: #{_lambda_.1} parent=0 // pred_check
    _
  $region11: #{_lambda_.1} parent=0 // pred_check_branch
    %30 = sbr.rel (0) target = $region13
  $region12: #{_lambda_.1} parent=0 // pred_region
    _
  $region13: #{_lambda_.1} parent=0 // pred_fallthru
    _
  // Predicated region
  $region14: #{_lambda_.1} parent=0 // pred_check
    _
  $region15: #{_lambda_.1} parent=0 // pred_check_branch
    %32 = sbr.rel (0) target = $region17
  $region16: #{_lambda_.1} parent=0 // pred_region
    _
  $region17: #{_lambda_.1} parent=0 // pred_fallthru
    _
  // Predicated region
  $region18: #{_lambda_.1} parent=0 // pred_check
    _
  $region19: #{_lambda_.1} parent=0 // pred_check_branch
    %34 = sbr.rel (0) target = $region21
  $region20: #{_lambda_.1} parent=0 // pred_region
    _
  $region21: #{_lambda_.1} parent=0 // pred_fallthru
    _
  // Predicated region
  $region22: #{_lambda_.1} parent=0 // pred_check
    _
  $region23: #{_lambda_.1} parent=0 // pred_check_branch
    %36 = sbr.rel (0) target = $region25
  $region24: #{_lambda_.1} parent=0 // pred_region
    _
  $region25: #{_lambda_.1} parent=0 // pred_fallthru
    _
  // Predicated region
  $region26: #{_lambda_.1} parent=0 // pred_check
    _
  $region27: #{_lambda_.1} parent=0 // pred_check_branch
    %38 = sbr.rel (0) target = $region29
  $region28: #{_lambda_.1} parent=0 // pred_region
    _
  $region29: #{_lambda_.1} parent=0 // pred_fallthru
    _
  // Predicated region
  $region30: #{_lambda_.1} parent=0 // pred_check
    _
  $region31: #{_lambda_.1} parent=0 // pred_check_branch
    %40 = sbr.rel (0) target = $region33
  $region32: #{_lambda_.1} parent=0 // pred_region
    _
  $region33: #{_lambda_.1} parent=0 // pred_fallthru
    _
  // Predicated region
  $region34: #{_lambda_.1} parent=0 // pred_check
    _
  $region35: #{_lambda_.1} parent=0 // pred_check_branch
    %42 = sbr.rel (0) target = $region37
  $region36: #{_lambda_.1} parent=0 // pred_region
    _
  $region37: #{_lambda_.1} parent=0 // pred_fallthru
    _
  // Predicated region
  $region38: #{_lambda_.1} parent=0 // pred_check
    _
  $region39: #{_lambda_.1} parent=0 // pred_check_branch
    %44 = sbr.rel (0) target = $region41
  $region40: #{_lambda_.1} parent=0 // pred_region
    _
  $region41: #{_lambda_.1} parent=0 // pred_fallthru
    _
  // Predicated region
  $region42: #{_lambda_.1} parent=0 // pred_check
    _
  $region43: #{_lambda_.1} parent=0 // pred_check_branch
    %46 = sbr.rel (0) target = $region45
  $region44: #{_lambda_.1} parent=0 // pred_region
    _
  $region45: #{_lambda_.1} parent=0 // pred_fallthru
    _
  // Predicated region
  $region46: #{_lambda_.1} parent=0 // pred_check
    _
  $region47: #{_lambda_.1} parent=0 // pred_check_branch
    %48 = sbr.rel (0) target = $region49
  $region48: #{_lambda_.1} parent=0 // pred_region
    _
  $region49: #{_lambda_.1} parent=0 // pred_fallthru
    _
  // Predicated region
  $region50: #{_lambda_.1} parent=0 // pred_check
    _
  $region51: #{_lambda_.1} parent=0 // pred_check_branch
    %50 = sbr.rel (0) target = $region53
  $region52: #{_lambda_.1} parent=0 // pred_region
    _
  $region53: #{_lambda_.1} parent=0 // pred_fallthru
    _
  // Predicated region
  $region54: #{_lambda_.1} parent=0 // pred_check
    _
  $region55: #{_lambda_.1} parent=0 // pred_check_branch
    %52 = sbr.rel (0) target = $region57
  $region56: #{_lambda_.1} parent=0 // pred_region
    _
  $region57: #{_lambda_.1} parent=0 // pred_fallthru
    _
  // Predicated region
  $region58: #{_lambda_.1} parent=0 // pred_check
    _
  $region59: #{_lambda_.1} parent=0 // pred_check_branch
    %54 = sbr.rel (0) target = $region61
  $region60: #{_lambda_.1} parent=0 // pred_region
    _
  $region61: #{_lambda_.1} parent=0 // pred_fallthru
    _
  // Predicated region
  $region62: #{_lambda_.1} parent=0 // pred_check
    _
  $region63: #{_lambda_.1} parent=0 // pred_check_branch
    %56 = sbr.rel (0) target = $region65
  $region64: #{_lambda_.1} parent=0 // pred_region
    _
  $region65: #{_lambda_.1} parent=0 // pred_fallthru
    _
  // Predicated region
  $region66: #{_lambda_.1} parent=0 // pred_check
    _
  $region67: #{_lambda_.1} parent=0 // pred_check_branch
    %58 = sbr.rel (0) target = $region69
  $region68: #{_lambda_.1} parent=0 // pred_region
    _
  $region69: #{_lambda_.1} parent=0 // pred_fallthru
    _
  // Predicated region
  $region70: #{_lambda_.1} parent=0 // pred_check
    _
  $region71: #{_lambda_.1} parent=0 // pred_check_branch
    %60 = sbr.rel (0) target = $region73
  $region72: #{_lambda_.1} parent=0 // pred_region
    _
  $region73: #{_lambda_.1} parent=0 // pred_fallthru
    _
  // Predicated region
  $region74: #{_lambda_.1} parent=0 // pred_check
    _
  $region75: #{_lambda_.1} parent=0 // pred_check_branch
    %62 = sbr.rel (0) target = $region77
  $region76: #{_lambda_.1} parent=0 // pred_region
    _
  $region77: #{_lambda_.1} parent=0 // pred_fallthru
    _
  // Predicated region
  $region78: #{_lambda_.1} parent=0 // pred_check
    _
  $region79: #{_lambda_.1} parent=0 // pred_check_branch
    %64 = sbr.rel (0) target = $region81
  $region80: #{_lambda_.1} parent=0 // pred_region
    _
  $region81: #{_lambda_.1} parent=0 // pred_fallthru
    _
  %v65 = vld [vmem:[%s0] sm:$0xff]
  %v66 = vld [vmem:[%s0 + $0x8] sm:$0xff]
  %v67 = vld [vmem:[%s0 + $0x10] sm:$0xff]
  %v68 = vld [vmem:[%s0 + $0x18] sm:$0xff]
  %v69 = vld [vmem:[%s0 + $0x20] sm:$0xff]
  %v70 = vld [vmem:[%s0 + $0x28] sm:$0xff]
  %v71 = vld [vmem:[%s0 + $0x30] sm:$0xff]
  %v72 = vld [vmem:[%s0 + $0x38] sm:$0xff]
  %v73 = vld [vmem:[%s0 + $0x40] sm:$0xff]
  %v74 = vpack.c.bf16 %v65, %v65
  %v75 = vpack.c.bf16 %v66, %v66
  %v76 = vpack.c.bf16 %v67, %v67
  %v77 = vpack.c.bf16 %v68, %v68
  %v78 = vpack.c.bf16 %v69, %v69
  %v79 = vpack.c.bf16 %v70, %v70
  %v80 = vpack.c.bf16 %v71, %v71
  %v81 = vpack.c.bf16 %v72, %v72
  %v82 = vpack.c.bf16 %v73, %v73
  %v83 = vld [vmem:[%s2] sm:$0xf]
  %v84 = vld [vmem:[%s2 + $0x4] sm:$0xf]
  %v85 = vld [vmem:[%s2 + $0x8] sm:$0xf]
  %v86 = vld [vmem:[%s2 + $0xc] sm:$0xf]
  %v87 = vld [vmem:[%s2 + $0x10] sm:$0xf]
  %v88 = vld [vmem:[%s2 + $0x14] sm:$0xf]
  %v89 = vld [vmem:[%s2 + $0x18] sm:$0xf]
  %v90 = vld [vmem:[%s2 + $0x1c] sm:$0xf]
  %v91 = vld [vmem:[%s2 + $0x20] sm:$0xf]
  %v92 = vld [vmem:[%s2 + $0x24] sm:$0xf]
  %v93 = vld [vmem:[%s2 + $0x28] sm:$0xf]
  %v94 = vld [vmem:[%s2 + $0x2c] sm:$0xf]
  %v95 = vld [vmem:[%s2 + $0x30] sm:$0xf]
  %v96 = vld [vmem:[%s2 + $0x34] sm:$0xf]
  %v97 = vld [vmem:[%s2 + $0x38] sm:$0xf]
  %v98 = vld [vmem:[%s2 + $0x3c] sm:$0xf]
  %v99 = vld [vmem:[%s2 + $0x40] sm:$0xf]
  %v100 = vld [vmem:[%s2 + $0x44] sm:$0xf]
  %v101 = vld [vmem:[%s2 + $0x48] sm:$0xf]
  %v102 = vld [vmem:[%s2 + $0x4c] sm:$0xf]
  %v103 = vld [vmem:[%s2 + $0x50] sm:$0xf]
  %v104 = vld [vmem:[%s2 + $0x54] sm:$0xf]
  %v105 = vld [vmem:[%s2 + $0x58] sm:$0xf]
  %v106 = vld [vmem:[%s2 + $0x5c] sm:$0xf]
  %v107 = vld [vmem:[%s2 + $0x60] sm:$0xf]
  %v108 = vld [vmem:[%s2 + $0x64] sm:$0xf]
  %v109 = vld [vmem:[%s2 + $0x68] sm:$0xf]
  %v110 = vld [vmem:[%s2 + $0x6c] sm:$0xf]
  %v111 = vld [vmem:[%s2 + $0x70] sm:$0xf]
  %v112 = vld [vmem:[%s2 + $0x74] sm:$0xf]
  %v113 = vld [vmem:[%s2 + $0x78] sm:$0xf]
  %v114 = vld [vmem:[%s2 + $0x7c] sm:$0xf]
  %v115 = vld [vmem:[%s2 + $0x80] sm:$0xf]
  %v116 = vld [vmem:[%s2 + $0x84] sm:$0xf]
  %v117 = vld [vmem:[%s2 + $0x88] sm:$0xf]
  %v118 = vld [vmem:[%s2 + $0x8c] sm:$0xf]
  %v119 = vld [vmem:[%s2 + $0x90] sm:$0xf]
  %v120 = vld [vmem:[%s2 + $0x94] sm:$0xf]
  %v121 = vld [vmem:[%s2 + $0x98] sm:$0xf]
  %v122 = vld [vmem:[%s2 + $0x9c] sm:$0xf]
  %v123 = vld [vmem:[%s2 + $0xa0] sm:$0xf]
  %v124 = vld [vmem:[%s2 + $0xa4] sm:$0xf]
  %v125 = vld [vmem:[%s2 + $0xa8] sm:$0xf]
  %v126 = vld [vmem:[%s2 + $0xac] sm:$0xf]
  %v127 = vld [vmem:[%s2 + $0xb0] sm:$0xf]
  %v128 = vld [vmem:[%s2 + $0xb4] sm:$0xf]
  %v129 = vld [vmem:[%s2 + $0xb8] sm:$0xf]
  %v130 = vld [vmem:[%s2 + $0xbc] sm:$0xf]
  %v131 = vld [vmem:[%s2 + $0xc0] sm:$0xf]
  %v132 = vld [vmem:[%s2 + $0xc4] sm:$0xf]
  %v133 = vld [vmem:[%s2 + $0xc8] sm:$0xf]
  %v134 = vld [vmem:[%s2 + $0xcc] sm:$0xf]
  %v135 = vld [vmem:[%s2 + $0xd0] sm:$0xf]
  %v136 = vld [vmem:[%s2 + $0xd4] sm:$0xf]
  %v137 = vld [vmem:[%s2 + $0xd8] sm:$0xf]
  %v138 = vld [vmem:[%s2 + $0xdc] sm:$0xf]
  %v139 = vld [vmem:[%s2 + $0xe0] sm:$0xf]
  %v140 = vld [vmem:[%s2 + $0xe4] sm:$0xf]
  %v141 = vld [vmem:[%s2 + $0xe8] sm:$0xf]
  %v142 = vld [vmem:[%s2 + $0xec] sm:$0xf]
  %v143 = vld [vmem:[%s2 + $0xf0] sm:$0xf]
  %v144 = vld [vmem:[%s2 + $0xf4] sm:$0xf]
  %v145 = vld [vmem:[%s2 + $0xf8] sm:$0xf]
  %v146 = vld [vmem:[%s2 + $0xfc] sm:$0xf]
  %v147 = vld [vmem:[%s2 + $0x100] sm:$0xf]
  %v148 = vld [vmem:[%s2 + $0x104] sm:$0xf]
  %v149 = vld [vmem:[%s2 + $0x108] sm:$0xf]
  %v150 = vld [vmem:[%s2 + $0x10c] sm:$0xf]
  %v151 = vld [vmem:[%s2 + $0x110] sm:$0xf]
  %v152 = vld [vmem:[%s2 + $0x114] sm:$0xf]
  %v153 = vld [vmem:[%s2 + $0x118] sm:$0xf]
  %v154 = vld [vmem:[%s2 + $0x11c] sm:$0xf]
  %v155 = vld [vmem:[%s2 + $0x120] sm:$0xf]
  %v156 = vld [vmem:[%s2 + $0x124] sm:$0xf]
  %v157 = vld [vmem:[%s2 + $0x128] sm:$0xf]
  %v158 = vld [vmem:[%s2 + $0x12c] sm:$0xf]
  %v159 = vld [vmem:[%s2 + $0x130] sm:$0xf]
  %v160 = vld [vmem:[%s2 + $0x134] sm:$0xf]
  %v161 = vld [vmem:[%s2 + $0x138] sm:$0xf]
  %v162 = vld [vmem:[%s2 + $0x13c] sm:$0xf]
  %v163 = vld [vmem:[%s2 + $0x140] sm:$0xf]
  %v164 = vld [vmem:[%s2 + $0x144] sm:$0xf]
  %v165 = vld [vmem:[%s2 + $0x148] sm:$0xf]
  %v166 = vld [vmem:[%s2 + $0x14c] sm:$0xf]
  %v167 = vld [vmem:[%s2 + $0x150] sm:$0xf]
  %v168 = vld [vmem:[%s2 + $0x154] sm:$0xf]
  %v169 = vld [vmem:[%s2 + $0x158] sm:$0xf]
  %v170 = vld [vmem:[%s2 + $0x15c] sm:$0xf]
  %v171 = vld [vmem:[%s2 + $0x160] sm:$0xf]
  %v172 = vld [vmem:[%s2 + $0x164] sm:$0xf]
  %v173 = vld [vmem:[%s2 + $0x168] sm:$0xf]
  %v174 = vld [vmem:[%s2 + $0x16c] sm:$0xf]
  %v175 = vld [vmem:[%s2 + $0x170] sm:$0xf]
  %v176 = vld [vmem:[%s2 + $0x174] sm:$0xf]
  %v177 = vld [vmem:[%s2 + $0x178] sm:$0xf]
  %v178 = vld [vmem:[%s2 + $0x17c] sm:$0xf]
  %v179 = vld [vmem:[%s2 + $0x180] sm:$0xf]
  %v180 = vld [vmem:[%s2 + $0x184] sm:$0xf]
  %v181 = vld [vmem:[%s2 + $0x188] sm:$0xf]
  %v182 = vld [vmem:[%s2 + $0x18c] sm:$0xf]
  %v183 = vld [vmem:[%s2 + $0x190] sm:$0xf]
  %v184 = vld [vmem:[%s2 + $0x194] sm:$0xf]
  %v185 = vld [vmem:[%s2 + $0x198] sm:$0xf]
  %v186 = vld [vmem:[%s2 + $0x19c] sm:$0xf]
  %v187 = vld [vmem:[%s2 + $0x1a0] sm:$0xf]
  %v188 = vld [vmem:[%s2 + $0x1a4] sm:$0xf]
  %v189 = vld [vmem:[%s2 + $0x1a8] sm:$0xf]
  %v190 = vld [vmem:[%s2 + $0x1ac] sm:$0xf]
  %v191 = vld [vmem:[%s2 + $0x1b0] sm:$0xf]
  %v192 = vld [vmem:[%s2 + $0x1b4] sm:$0xf]
  %v193 = vld [vmem:[%s2 + $0x1b8] sm:$0xf]
  %v194 = vld [vmem:[%s2 + $0x1bc] sm:$0xf]
  %v195 = vld [vmem:[%s2 + $0x1c0] sm:$0xf]
  %v196 = vld [vmem:[%s2 + $0x1c4] sm:$0xf]
  %v197 = vld [vmem:[%s2 + $0x1c8] sm:$0xf]
  %v198 = vld [vmem:[%s2 + $0x1cc] sm:$0xf]
  %v199 = vld [vmem:[%s2 + $0x1d0] sm:$0xf]
  %v200 = vld [vmem:[%s2 + $0x1d4] sm:$0xf]
  %v201 = vld [vmem:[%s2 + $0x1d8] sm:$0xf]
  %v202 = vld [vmem:[%s2 + $0x1dc] sm:$0xf]
  %v203 = vld [vmem:[%s2 + $0x1e0] sm:$0xf]
  %v204 = vld [vmem:[%s2 + $0x1e4] sm:$0xf]
  %v205 = vld [vmem:[%s2 + $0x1e8] sm:$0xf]
  %v206 = vld [vmem:[%s2 + $0x1ec] sm:$0xf]
  %v207 = vld [vmem:[%s2 + $0x1f0] sm:$0xf]
  %v208 = vld [vmem:[%s2 + $0x1f4] sm:$0xf]
  %v209 = vld [vmem:[%s2 + $0x1f8] sm:$0xf]
  %v210 = vld [vmem:[%s2 + $0x1fc] sm:$0xf]
  %v211 = vld [vmem:[%s2 + $0x200] sm:$0xf]
  %v212 = vld [vmem:[%s2 + $0x204] sm:$0xf]
  %v213 = vld [vmem:[%s2 + $0x208] sm:$0xf]
  %v214 = vld [vmem:[%s2 + $0x20c] sm:$0xf]
  %v215 = vld [vmem:[%s2 + $0x210] sm:$0xf]
  %v216 = vld [vmem:[%s2 + $0x214] sm:$0xf]
  %v217 = vld [vmem:[%s2 + $0x218] sm:$0xf]
  %v218 = vld [vmem:[%s2 + $0x21c] sm:$0xf]
  %v219 = vld [vmem:[%s2 + $0x220] sm:$0xf]
  %v220 = vld [vmem:[%s2 + $0x224] sm:$0xf]
  %v221 = vld [vmem:[%s2 + $0x228] sm:$0xf]
  %v222 = vld [vmem:[%s2 + $0x22c] sm:$0xf]
  %v223 = vld [vmem:[%s2 + $0x230] sm:$0xf]
  %v224 = vld [vmem:[%s2 + $0x234] sm:$0xf]
  %v225 = vld [vmem:[%s2 + $0x238] sm:$0xf]
  %v226 = vld [vmem:[%s2 + $0x23c] sm:$0xf]
  %v227 = vld [vmem:[%s3] sm:$0x1]
  %v229 = vperm.slane %v227, 0
  %v375 = vunpack.c.l.b16 %v83
  %v376 = vunpack.c.l.b16 %v84
  %v377 = vunpack.c.l.b16 %v85
  %v378 = vunpack.c.l.b16 %v86
  %v379 = vunpack.c.l.b16 %v87
  %v380 = vunpack.c.l.b16 %v88
  %v381 = vunpack.c.l.b16 %v89
  %v382 = vunpack.c.l.b16 %v90
  %v383 = vunpack.c.l.b16 %v91
  %v384 = vunpack.c.l.b16 %v92
  %v385 = vunpack.c.l.b16 %v93
  %v386 = vunpack.c.l.b16 %v94
  %v387 = vunpack.c.l.b16 %v95
  %v388 = vunpack.c.l.b16 %v96
  %v389 = vunpack.c.l.b16 %v97
  %v390 = vunpack.c.l.b16 %v98
  %v391 = vunpack.c.l.b16 %v99
  %v392 = vunpack.c.l.b16 %v100
  %v393 = vunpack.c.l.b16 %v101
  %v394 = vunpack.c.l.b16 %v102
  %v395 = vunpack.c.l.b16 %v103
  %v396 = vunpack.c.l.b16 %v104
  %v397 = vunpack.c.l.b16 %v105
  %v398 = vunpack.c.l.b16 %v106
  %v399 = vunpack.c.l.b16 %v107
  %v400 = vunpack.c.l.b16 %v108
  %v401 = vunpack.c.l.b16 %v109
  %v402 = vunpack.c.l.b16 %v110
  %v403 = vunpack.c.l.b16 %v111
  %v404 = vunpack.c.l.b16 %v112
  %v405 = vunpack.c.l.b16 %v113
  %v406 = vunpack.c.l.b16 %v114
  %v407 = vunpack.c.l.b16 %v115
  %v408 = vunpack.c.l.b16 %v116
  %v409 = vunpack.c.l.b16 %v117
  %v410 = vunpack.c.l.b16 %v118
  %v411 = vunpack.c.l.b16 %v119
  %v412 = vunpack.c.l.b16 %v120
  %v413 = vunpack.c.l.b16 %v121
  %v414 = vunpack.c.l.b16 %v122
  %v415 = vunpack.c.l.b16 %v123
  %v416 = vunpack.c.l.b16 %v124
  %v417 = vunpack.c.l.b16 %v125
  %v418 = vunpack.c.l.b16 %v126
  %v419 = vunpack.c.l.b16 %v127
  %v420 = vunpack.c.l.b16 %v128
  %v421 = vunpack.c.l.b16 %v129
  %v422 = vunpack.c.l.b16 %v130
  %v423 = vunpack.c.l.b16 %v131
  %v424 = vunpack.c.l.b16 %v132
  %v425 = vunpack.c.l.b16 %v133
  %v426 = vunpack.c.l.b16 %v134
  %v427 = vunpack.c.l.b16 %v135
  %v428 = vunpack.c.l.b16 %v136
  %v429 = vunpack.c.l.b16 %v137
  %v430 = vunpack.c.l.b16 %v138
  %v431 = vunpack.c.l.b16 %v139
  %v432 = vunpack.c.l.b16 %v140
  %v433 = vunpack.c.l.b16 %v141
  %v434 = vunpack.c.l.b16 %v142
  %v435 = vunpack.c.l.b16 %v143
  %v436 = vunpack.c.l.b16 %v144
  %v437 = vunpack.c.l.b16 %v145
  %v438 = vunpack.c.l.b16 %v146
  %v439 = vunpack.c.l.b16 %v147
  %v440 = vunpack.c.l.b16 %v148
  %v441 = vunpack.c.l.b16 %v149
  %v442 = vunpack.c.l.b16 %v150
  %v443 = vunpack.c.l.b16 %v151
  %v444 = vunpack.c.l.b16 %v152
  %v445 = vunpack.c.l.b16 %v153
  %v446 = vunpack.c.l.b16 %v154
  %v447 = vunpack.c.l.b16 %v155
  %v448 = vunpack.c.l.b16 %v156
  %v449 = vunpack.c.l.b16 %v157
  %v450 = vunpack.c.l.b16 %v158
  %v451 = vunpack.c.l.b16 %v159
  %v452 = vunpack.c.l.b16 %v160
  %v453 = vunpack.c.l.b16 %v161
  %v454 = vunpack.c.l.b16 %v162
  %v455 = vunpack.c.l.b16 %v163
  %v456 = vunpack.c.l.b16 %v164
  %v457 = vunpack.c.l.b16 %v165
  %v458 = vunpack.c.l.b16 %v166
  %v459 = vunpack.c.l.b16 %v167
  %v460 = vunpack.c.l.b16 %v168
  %v461 = vunpack.c.l.b16 %v169
  %v462 = vunpack.c.l.b16 %v170
  %v463 = vunpack.c.l.b16 %v171
  %v464 = vunpack.c.l.b16 %v172
  %v465 = vunpack.c.l.b16 %v173
  %v466 = vunpack.c.l.b16 %v174
  %v467 = vunpack.c.l.b16 %v175
  %v468 = vunpack.c.l.b16 %v176
  %v469 = vunpack.c.l.b16 %v177
  %v470 = vunpack.c.l.b16 %v178
  %v471 = vunpack.c.l.b16 %v179
  %v472 = vunpack.c.l.b16 %v180
  %v473 = vunpack.c.l.b16 %v181
  %v474 = vunpack.c.l.b16 %v182
  %v475 = vunpack.c.l.b16 %v183
  %v476 = vunpack.c.l.b16 %v184
  %v477 = vunpack.c.l.b16 %v185
  %v478 = vunpack.c.l.b16 %v186
  %v479 = vunpack.c.l.b16 %v187
  %v480 = vunpack.c.l.b16 %v188
  %v481 = vunpack.c.l.b16 %v189
  %v482 = vunpack.c.l.b16 %v190
  %v483 = vunpack.c.l.b16 %v191
  %v484 = vunpack.c.l.b16 %v192
  %v485 = vunpack.c.l.b16 %v193
  %v486 = vunpack.c.l.b16 %v194
  %v487 = vunpack.c.l.b16 %v195
  %v488 = vunpack.c.l.b16 %v196
  %v489 = vunpack.c.l.b16 %v197
  %v490 = vunpack.c.l.b16 %v198
  %v491 = vunpack.c.l.b16 %v199
  %v492 = vunpack.c.l.b16 %v200
  %v493 = vunpack.c.l.b16 %v201
  %v494 = vunpack.c.l.b16 %v202
  %v495 = vunpack.c.l.b16 %v203
  %v496 = vunpack.c.l.b16 %v204
  %v497 = vunpack.c.l.b16 %v205
  %v498 = vunpack.c.l.b16 %v206
  %v499 = vunpack.c.l.b16 %v207
  %v500 = vunpack.c.l.b16 %v208
  %v501 = vunpack.c.l.b16 %v209
  %v502 = vunpack.c.l.b16 %v210
  %v503 = vunpack.c.l.b16 %v211
  %v504 = vunpack.c.l.b16 %v212
  %v505 = vunpack.c.l.b16 %v213
  %v506 = vunpack.c.l.b16 %v214
  %v507 = vunpack.c.l.b16 %v215
  %v508 = vunpack.c.l.b16 %v216
  %v509 = vunpack.c.l.b16 %v217
  %v510 = vunpack.c.l.b16 %v218
  %v511 = vunpack.c.l.b16 %v219
  %v512 = vunpack.c.l.b16 %v220
  %v513 = vunpack.c.l.b16 %v221
  %v514 = vunpack.c.l.b16 %v222
  %v515 = vunpack.c.l.b16 %v223
  %v516 = vunpack.c.l.b16 %v224
  %v517 = vunpack.c.l.b16 %v225
  %v518 = vunpack.c.l.b16 %v226
  %v519 = vpack.c.b16 %v376, %v375
  %v520 = vpack.c.b16 %v378, %v377
  %v521 = vpack.c.b16 %v380, %v379
  %v522 = vpack.c.b16 %v382, %v381
  %v523 = vpack.c.b16 %v384, %v383
  %v524 = vpack.c.b16 %v386, %v385
  %v525 = vpack.c.b16 %v388, %v387
  %v526 = vpack.c.b16 %v390, %v389
  %v527 = vpack.c.b16 %v392, %v391
  %v528 = vpack.c.b16 %v394, %v393
  %v529 = vpack.c.b16 %v396, %v395
  %v530 = vpack.c.b16 %v398, %v397
  %v531 = vpack.c.b16 %v400, %v399
  %v532 = vpack.c.b16 %v402, %v401
  %v533 = vpack.c.b16 %v404, %v403
  %v534 = vpack.c.b16 %v406, %v405
  %v535 = vpack.c.b16 %v408, %v407
  %v536 = vpack.c.b16 %v410, %v409
  %v537 = vpack.c.b16 %v412, %v411
  %v538 = vpack.c.b16 %v414, %v413
  %v539 = vpack.c.b16 %v416, %v415
  %v540 = vpack.c.b16 %v418, %v417
  %v541 = vpack.c.b16 %v420, %v419
  %v542 = vpack.c.b16 %v422, %v421
  %v543 = vpack.c.b16 %v424, %v423
  %v544 = vpack.c.b16 %v426, %v425
  %v545 = vpack.c.b16 %v428, %v427
  %v546 = vpack.c.b16 %v430, %v429
  %v547 = vpack.c.b16 %v432, %v431
  %v548 = vpack.c.b16 %v434, %v433
  %v549 = vpack.c.b16 %v436, %v435
  %v550 = vpack.c.b16 %v438, %v437
  %v551 = vpack.c.b16 %v440, %v439
  %v552 = vpack.c.b16 %v442, %v441
  %v553 = vpack.c.b16 %v444, %v443
  %v554 = vpack.c.b16 %v446, %v445
  %v555 = vpack.c.b16 %v448, %v447
  %v556 = vpack.c.b16 %v450, %v449
  %v557 = vpack.c.b16 %v452, %v451
  %v558 = vpack.c.b16 %v454, %v453
  %v559 = vpack.c.b16 %v456, %v455
  %v560 = vpack.c.b16 %v458, %v457
  %v561 = vpack.c.b16 %v460, %v459
  %v562 = vpack.c.b16 %v462, %v461
  %v563 = vpack.c.b16 %v464, %v463
  %v564 = vpack.c.b16 %v466, %v465
  %v565 = vpack.c.b16 %v468, %v467
  %v566 = vpack.c.b16 %v470, %v469
  %v567 = vpack.c.b16 %v472, %v471
  %v568 = vpack.c.b16 %v474, %v473
  %v569 = vpack.c.b16 %v476, %v475
  %v570 = vpack.c.b16 %v478, %v477
  %v571 = vpack.c.b16 %v480, %v479
  %v572 = vpack.c.b16 %v482, %v481
  %v573 = vpack.c.b16 %v484, %v483
  %v574 = vpack.c.b16 %v486, %v485
  %v575 = vpack.c.b16 %v488, %v487
  %v576 = vpack.c.b16 %v490, %v489
  %v577 = vpack.c.b16 %v492, %v491
  %v578 = vpack.c.b16 %v494, %v493
  %v579 = vpack.c.b16 %v496, %v495
  %v580 = vpack.c.b16 %v498, %v497
  %v581 = vpack.c.b16 %v500, %v499
  %v582 = vpack.c.b16 %v502, %v501
  %v583 = vpack.c.b16 %v504, %v503
  %v584 = vpack.c.b16 %v506, %v505
  %v585 = vpack.c.b16 %v508, %v507
  %v586 = vpack.c.b16 %v510, %v509
  %v587 = vpack.c.b16 %v512, %v511
  %v588 = vpack.c.b16 %v514, %v513
  %v589 = vpack.c.b16 %v516, %v515
  %v590 = vpack.c.b16 %v518, %v517
  %663 = vmatpush.bf16.msra.mxu0 %v526
  %664 = vmatpush.bf16.msra.mxu0 %v525
  %665 = vmatpush.bf16.msra.mxu0 %v524
  %666 = vmatpush.bf16.msra.mxu0 %v523
  %667 = vmatpush.bf16.msra.mxu0 %v522
  %668 = vmatpush.bf16.msra.mxu0 %v521
  %669 = vmatpush.bf16.msra.mxu0 %v520
  %670 = vmatpush.bf16.msra.mxu0 %v519
  %671 = vmatmul.bf16.gmra.mxu0 %v74
  %v672 = vpop.f32.mrf.mxu0
  %v673 = vadd.f32 %v229, %v672
  %v674 = vpop.f32.mrf.mxu0
  %675 = vdwg.mxu0
  %676 = vmatpush.bf16.msra.mxu0 %v534
  %677 = vmatpush.bf16.msra.mxu0 %v533
  %678 = vmatpush.bf16.msra.mxu0 %v532
  %679 = vmatpush.bf16.msra.mxu0 %v531
  %680 = vmatpush.bf16.msra.mxu0 %v530
  %681 = vmatpush.bf16.msra.mxu0 %v529
  %682 = vmatpush.bf16.msra.mxu0 %v528
  %683 = vmatpush.bf16.msra.mxu0 %v527
  %684 = vmatmul.bf16.gmra.mxu0 %v75
  %v685 = vpop.f32.mrf.mxu0
  %v686 = vadd.f32 %v673, %v685
  %v687 = vpop.f32.mrf.mxu0
  %688 = vdwg.mxu0
  %689 = vmatpush.bf16.msra.mxu0 %v542
  %690 = vmatpush.bf16.msra.mxu0 %v541
  %691 = vmatpush.bf16.msra.mxu0 %v540
  %692 = vmatpush.bf16.msra.mxu0 %v539
  %693 = vmatpush.bf16.msra.mxu0 %v538
  %694 = vmatpush.bf16.msra.mxu0 %v537
  %695 = vmatpush.bf16.msra.mxu0 %v536
  %696 = vmatpush.bf16.msra.mxu0 %v535
  %697 = vmatmul.bf16.gmra.mxu0 %v76
  %v698 = vpop.f32.mrf.mxu0
  %v699 = vadd.f32 %v686, %v698
  %v700 = vpop.f32.mrf.mxu0
  %701 = vdwg.mxu0
  %702 = vmatpush.bf16.msra.mxu0 %v550
  %703 = vmatpush.bf16.msra.mxu0 %v549
  %704 = vmatpush.bf16.msra.mxu0 %v548
  %705 = vmatpush.bf16.msra.mxu0 %v547
  %706 = vmatpush.bf16.msra.mxu0 %v546
  %707 = vmatpush.bf16.msra.mxu0 %v545
  %708 = vmatpush.bf16.msra.mxu0 %v544
  %709 = vmatpush.bf16.msra.mxu0 %v543
  %710 = vmatmul.bf16.gmra.mxu0 %v77
  %v711 = vpop.f32.mrf.mxu0
  %v712 = vadd.f32 %v699, %v711
  %v713 = vpop.f32.mrf.mxu0
  %714 = vdwg.mxu0
  %715 = vmatpush.bf16.msra.mxu0 %v558
  %716 = vmatpush.bf16.msra.mxu0 %v557
  %717 = vmatpush.bf16.msra.mxu0 %v556
  %718 = vmatpush.bf16.msra.mxu0 %v555
  %719 = vmatpush.bf16.msra.mxu0 %v554
  %720 = vmatpush.bf16.msra.mxu0 %v553
  %721 = vmatpush.bf16.msra.mxu0 %v552
  %722 = vmatpush.bf16.msra.mxu0 %v551
  %723 = vmatmul.bf16.gmra.mxu0 %v78
  %v724 = vpop.f32.mrf.mxu0
  %v725 = vadd.f32 %v712, %v724
  %v726 = vpop.f32.mrf.mxu0
  %727 = vdwg.mxu0
  %728 = vmatpush.bf16.msra.mxu0 %v566
  %729 = vmatpush.bf16.msra.mxu0 %v565
  %730 = vmatpush.bf16.msra.mxu0 %v564
  %731 = vmatpush.bf16.msra.mxu0 %v563
  %732 = vmatpush.bf16.msra.mxu0 %v562
  %733 = vmatpush.bf16.msra.mxu0 %v561
  %734 = vmatpush.bf16.msra.mxu0 %v560
  %735 = vmatpush.bf16.msra.mxu0 %v559
  %736 = vmatmul.bf16.gmra.mxu0 %v79
  %v737 = vpop.f32.mrf.mxu0
  %v738 = vadd.f32 %v725, %v737
  %v739 = vpop.f32.mrf.mxu0
  %740 = vdwg.mxu0
  %741 = vmatpush.bf16.msra.mxu0 %v574
  %742 = vmatpush.bf16.msra.mxu0 %v573
  %743 = vmatpush.bf16.msra.mxu0 %v572
  %744 = vmatpush.bf16.msra.mxu0 %v571
  %745 = vmatpush.bf16.msra.mxu0 %v570
  %746 = vmatpush.bf16.msra.mxu0 %v569
  %747 = vmatpush.bf16.msra.mxu0 %v568
  %748 = vmatpush.bf16.msra.mxu0 %v567
  %749 = vmatmul.bf16.gmra.mxu0 %v80
  %v750 = vpop.f32.mrf.mxu0
  %v751 = vadd.f32 %v738, %v750
  %v752 = vpop.f32.mrf.mxu0
  %753 = vdwg.mxu0
  %754 = vmatpush.bf16.msra.mxu0 %v582
  %755 = vmatpush.bf16.msra.mxu0 %v581
  %756 = vmatpush.bf16.msra.mxu0 %v580
  %757 = vmatpush.bf16.msra.mxu0 %v579
  %758 = vmatpush.bf16.msra.mxu0 %v578
  %759 = vmatpush.bf16.msra.mxu0 %v577
  %760 = vmatpush.bf16.msra.mxu0 %v576
  %761 = vmatpush.bf16.msra.mxu0 %v575
  %762 = vmatmul.bf16.gmra.mxu0 %v81
  %v763 = vpop.f32.mrf.mxu0
  %v764 = vadd.f32 %v751, %v763
  %v765 = vpop.f32.mrf.mxu0
  %766 = vdwg.mxu0
  %767 = vmatpush.bf16.msra.mxu0 %v590
  %768 = vmatpush.bf16.msra.mxu0 %v589
  %769 = vmatpush.bf16.msra.mxu0 %v588
  %770 = vmatpush.bf16.msra.mxu0 %v587
  %771 = vmatpush.bf16.msra.mxu0 %v586
  %772 = vmatpush.bf16.msra.mxu0 %v585
  %773 = vmatpush.bf16.msra.mxu0 %v584
  %774 = vmatpush.bf16.msra.mxu0 %v583
  %775 = vmatmul.bf16.gmra.mxu0 %v82
  %v776 = vpop.f32.mrf.mxu0
  %v777 = vadd.f32 %v764, %v776
  %v778 = vpop.f32.mrf.mxu0
  %779 = vdwg.mxu0
  %v780 = vmul.f32 %v777, %v777
  %vm781 = vcmask 261120
  %v782 = vsel %vm781, %v780, 0.0
  %783 = vadd.xlane.f32.xlu0 %v782
  %v784 = vpop.xlane.xlu0 %783
  %v785 = vadd.f32 %v784, 1e-12
  %v786 = vrsqrt.pop %v785
  %v787 = vmul.f32 %v786, %v785
  %v788 = vmul.f32 %v787, %v786
  %v789 = vmul.f32 0.5, %v788
  %v790 = vsub.f32 1.5, %v789
  %v791 = vmul.f32 %v786, %v790
  %vm792 = vweird.f32 %v785
  %vm793 = vweird.f32 %v786
  %vm794 = vmor %vm792, %vm793
  %v795 = vsel %vm794, %v786, %v791
  %v796 = vmul.f32 %v777, %v795
  %v797 = vld [vmem:[%s1] sm:$0xff]
  %v798 = vld [vmem:[%s1 + $0x8] sm:$0x3]
  %v799 = vld [vmem:[%s4] sm:$0x7]
  %v800 = vld [vmem:[%s5] sm:$0x1]
  %v802 = vperm.slane %v800, 0
  %vm804 = vcmask 23552
  %v806 = vsel %vm804, %v797, 0
  %v809 = vsel %vm804, %v798, 0
  %vm811 = vcmask 1042432
  %v813 = vsel %vm811, %v799, 0
  %815 = vmatpush.msra.mxu0 0.0
  %816 = vmatpush.msra.mxu0 0.0
  %817 = vmatpush.msra.mxu0 0.0
  %818 = vmatpush.msra.mxu0 0.0
  %819 = vmatpush.msra.mxu0 0.0
  %820 = vmatpush.msra.mxu0 0.0
  %821 = vmatpush.msra.mxu0 0.0
  %822 = vmatpush.msra.mxu0 0.0
  %823 = vmatpush.msra.mxu0 0.0
  %824 = vmatpush.msra.mxu0 0.0
  %825 = vmatpush.msra.mxu0 0.0
  %826 = vmatpush.msra.mxu0 0.0
  %827 = vmatpush.msra.mxu0 0.0
  %828 = vmatpush.msra.mxu0 0.0
  %829 = vmatpush.msra.mxu0 0.0
  %830 = vmatpush.msra.mxu0 %v813
  %831 = vmatmul.f32.gmra.mxu0 %v806
  %v832 = vpop.f32.mrf.mxu0
  %v833 = vadd.f32 %v802, %v832
  %834 = vmatmul.f32.gmra.mxu0 %v809
  %v835 = vpop.f32.mrf.mxu0
  %v836 = vadd.f32 %v802, %v835
  %837 = vdwg.mxu0
  %838 = vst.msk [vmem:[#allocation2] sm:$0xff] %vm781, %v833
  %vm839 = vcmask 254976
  %840 = vst.msk [vmem:[#allocation2 + $0x8] sm:$0x3] %vm839, %v836
  %v841 = vld [vmem:[#allocation2] sm:$0xf]
  %v842 = vadd.f32 %v841, %v796
  %vm843 = vcmask 257024
  %844 = vst.msk [vmem:[#allocation2] sm:$0xf] %vm843, %v842
  %v845 = vld [vmem:[#allocation2 + $0x5] sm:$0xf]
  %v847 = vrot.slane %v796, 4
  %v849 = vadd.f32 %v845, %v847
  %850 = vst.msk [vmem:[#allocation2 + $0x5] sm:$0xf] %vm843, %v849
  %v851 = vld [vmem:[#allocation2] sm:$0xff]
  %v852 = vld [vmem:[#allocation2 + $0x8] sm:$0x3]
  %v853 = vld [vmem:[%s6] sm:$0xff]
  %v854 = vld [vmem:[%s6 + $0x8] sm:$0xff]
  %v855 = vld [vmem:[%s6 + $0x10] sm:$0xff]
  %v856 = vld [vmem:[%s6 + $0x18] sm:$0xff]
  %v857 = vld [vmem:[%s7] sm:$0x1]
  %v859 = vperm.slane %v857, 0
  %v862 = vsel %vm781, %v851, 0
  %v865 = vsel %vm781, %v852, 0
  %867 = vmatpush.msra.mxu0 0.0
  %868 = vmatpush.msra.mxu0 0.0
  %869 = vmatpush.msra.mxu0 0.0
  %870 = vmatpush.msra.mxu0 0.0
  %871 = vmatpush.msra.mxu0 0.0
  %872 = vmatpush.msra.mxu0 0.0
  %873 = vmatpush.msra.mxu0 0.0
  %874 = vmatpush.msra.mxu0 0.0
  %875 = vmatpush.msra.mxu0 0.0
  %876 = vmatpush.msra.mxu0 0.0
  %877 = vmatpush.msra.mxu0 0.0
  %878 = vmatpush.msra.mxu0 0.0
  %879 = vmatpush.msra.mxu0 %v856
  %880 = vmatpush.msra.mxu0 %v855
  %881 = vmatpush.msra.mxu0 %v854
  %882 = vmatpush.msra.mxu0 %v853
  %883 = vmatmul.f32.gmra.mxu0 %v862
  %v884 = vpop.f32.mrf.mxu0
  %v885 = vadd.f32 %v859, %v884
  %886 = vmatmul.f32.gmra.mxu0 %v865
  %v887 = vpop.f32.mrf.mxu0
  %v888 = vadd.f32 %v859, %v887
  %889 = vdwg.mxu0
  %891 = vrot.lane.b32.xlu0 %v885, 96
  %v892 = vpop.permute.xlu0 %891
  %vm893 = vcmask 64512
  %v894 = vsel %vm893, %v885, 0
  %v896 = vsel %vm893, %v892, 0
  %898 = vmatpush.xpose.msra.mxu0 0.0
  %899 = vmatpush.xpose.msra.mxu0 0.0
  %900 = vmatpush.xpose.msra.mxu0 0.0
  %901 = vmatpush.xpose.msra.mxu0 0.0
  %902 = vmatpush.xpose.msra.mxu0 0.0
  %903 = vmatpush.xpose.msra.mxu0 0.0
  %904 = vmatpush.xpose.msra.mxu0 0.0
  %905 = vmatpush.xpose.msra.mxu0 0.0
  %906 = vmatpush.xpose.msra.mxu0 0.0
  %907 = vmatpush.xpose.msra.mxu0 0.0
  %908 = vmatpush.xpose.msra.mxu0 0.0
  %909 = vmatpush.xpose.msra.mxu0 0.0
  %910 = vmatpush.xpose.msra.mxu0 0.0
  %911 = vmatpush.xpose.msra.mxu0 0.0
  %912 = vmatpush.xpose.msra.mxu0 0.0
  %913 = vmatpush.xpose.msra.mxu0 %v896
  %914 = vmatmul.f32.gmra.mxu0 %v894
  %v915 = vpop.f32.mrf.mxu0
  %v916 = vadd.f32 0.0, %v915
  %917 = vdwg.mxu0
  %v918 = vmul.f32 %v916, 0.35355338
  %vm919 = vcmask 36864
  %v920 = vsel %vm919, %v918, -inf
  %921 = vmax.xlane.f32.xlu0 %v920
  %v922 = vpop.xlane.xlu0 %921
  %v923 = vsub.f32 %v918, %v922
  %v924 = vmul.f32 %v923, 1.442695
  %v925 = vpow.pop %v924
  %v926 = vsel %vm919, %v925, 0.0
  %927 = vadd.xlane.f32.xlu0 %v926
  %v928 = vpop.xlane.xlu0 %927
  %v929 = vrcp.pop %v928
  %v930 = vmul.f32 %v925, %v929
  %931 = vrot.lane.b32.xlu0 %v885, 64
  %v932 = vpop.permute.xlu0 %931
  %vm933 = vcmask 39936
  %v935 = vsel %vm933, %v930, 0
  %vm937 = vcmask 1044480
  %v938 = vsel %vm937, %v932, 0
  %940 = vmatpush.msra.mxu0 0.0
  %941 = vmatpush.msra.mxu0 0.0
  %942 = vmatpush.msra.mxu0 0.0
  %943 = vmatpush.msra.mxu0 0.0
  %944 = vmatpush.msra.mxu0 0.0
  %945 = vmatpush.msra.mxu0 0.0
  %946 = vmatpush.msra.mxu0 0.0
  %947 = vmatpush.msra.mxu0 0.0
  %948 = vmatpush.msra.mxu0 0.0
  %949 = vmatpush.msra.mxu0 0.0
  %950 = vmatpush.msra.mxu0 0.0
  %951 = vmatpush.msra.mxu0 0.0
  %952 = vmatpush.msra.mxu0 0.0
  %953 = vmatpush.msra.mxu0 0.0
  %954 = vmatpush.msra.mxu0 0.0
  %955 = vmatpush.msra.mxu0 %v938
  %956 = vmatmul.f32.gmra.mxu0 %v935
  %v957 = vpop.f32.mrf.mxu0
  %v958 = vadd.f32 0.0, %v957
  %959 = vdwg.mxu0
  %vm960 = vcmask 61440
  %961 = vst.msk [vmem:[#allocation3] sm:$0x1f] %vm960, %v958
  %962 = vrot.lane.b32.xlu0 %v885, 120
  %v963 = vpop.permute.xlu0 %962
  %964 = vrot.lane.b32.xlu0 %v885, 88
  %v965 = vpop.permute.xlu0 %964
  %v966 = vsel %vm893, %v963, 0
  %v968 = vsel %vm893, %v965, 0
  %970 = vmatpush.xpose.msra.mxu0 0.0
  %971 = vmatpush.xpose.msra.mxu0 0.0
  %972 = vmatpush.xpose.msra.mxu0 0.0
  %973 = vmatpush.xpose.msra.mxu0 0.0
  %974 = vmatpush.xpose.msra.mxu0 0.0
  %975 = vmatpush.xpose.msra.mxu0 0.0
  %976 = vmatpush.xpose.msra.mxu0 0.0
  %977 = vmatpush.xpose.msra.mxu0 0.0
  %978 = vmatpush.xpose.msra.mxu0 0.0
  %979 = vmatpush.xpose.msra.mxu0 0.0
  %980 = vmatpush.xpose.msra.mxu0 0.0
  %981 = vmatpush.xpose.msra.mxu0 0.0
  %982 = vmatpush.xpose.msra.mxu0 0.0
  %983 = vmatpush.xpose.msra.mxu0 0.0
  %984 = vmatpush.xpose.msra.mxu0 0.0
  %985 = vmatpush.xpose.msra.mxu0 %v968
  %986 = vmatmul.f32.gmra.mxu0 %v966
  %v987 = vpop.f32.mrf.mxu0
  %v988 = vadd.f32 0.0, %v987
  %989 = vdwg.mxu0
  %v990 = vmul.f32 %v988, 0.35355338
  %v991 = vsel %vm919, %v990, -inf
  %992 = vmax.xlane.f32.xlu0 %v991
  %v993 = vpop.xlane.xlu0 %992
  %v994 = vsub.f32 %v990, %v993
  %v995 = vmul.f32 %v994, 1.442695
  %v996 = vpow.pop %v995
  %v997 = vsel %vm919, %v996, 0.0
  %998 = vadd.xlane.f32.xlu0 %v997
  %v999 = vpop.xlane.xlu0 %998
  %v1000 = vrcp.pop %v999
  %v1001 = vmul.f32 %v996, %v1000
  %1002 = vrot.lane.b32.xlu0 %v885, 56
  %v1003 = vpop.permute.xlu0 %1002
  %v1005 = vsel %vm933, %v1001, 0
  %v1007 = vsel %vm937, %v1003, 0
  %1009 = vmatpush.msra.mxu0 0.0
  %1010 = vmatpush.msra.mxu0 0.0
  %1011 = vmatpush.msra.mxu0 0.0
  %1012 = vmatpush.msra.mxu0 0.0
  %1013 = vmatpush.msra.mxu0 0.0
  %1014 = vmatpush.msra.mxu0 0.0
  %1015 = vmatpush.msra.mxu0 0.0
  %1016 = vmatpush.msra.mxu0 0.0
  %1017 = vmatpush.msra.mxu0 0.0
  %1018 = vmatpush.msra.mxu0 0.0
  %1019 = vmatpush.msra.mxu0 0.0
  %1020 = vmatpush.msra.mxu0 0.0
  %1021 = vmatpush.msra.mxu0 0.0
  %1022 = vmatpush.msra.mxu0 0.0
  %1023 = vmatpush.msra.mxu0 0.0
  %1024 = vmatpush.msra.mxu0 %v1007
  %1025 = vmatmul.f32.gmra.mxu0 %v1005
  %v1026 = vpop.f32.mrf.mxu0
  %v1027 = vadd.f32 0.0, %v1026
  %1028 = vdwg.mxu0
  %1030 = vrot.lane.b32.xlu0 %v1027, 8
  %v1031 = vpop.permute.xlu0 %1030
  %vm1033 = vcmask 127040
  %1034 = vst.msk [vmem:[#allocation3] sm:$0x1f] %vm1033, %v1031
  %1035 = vrot.lane.b32.xlu0 %v885, 112
  %v1036 = vpop.permute.xlu0 %1035
  %1037 = vrot.lane.b32.xlu0 %v885, 80
  %v1038 = vpop.permute.xlu0 %1037
  %v1039 = vsel %vm893, %v1036, 0
  %v1041 = vsel %vm893, %v1038, 0
  %1043 = vmatpush.xpose.msra.mxu0 0.0
  %1044 = vmatpush.xpose.msra.mxu0 0.0
  %1045 = vmatpush.xpose.msra.mxu0 0.0
  %1046 = vmatpush.xpose.msra.mxu0 0.0
  %1047 = vmatpush.xpose.msra.mxu0 0.0
  %1048 = vmatpush.xpose.msra.mxu0 0.0
  %1049 = vmatpush.xpose.msra.mxu0 0.0
  %1050 = vmatpush.xpose.msra.mxu0 0.0
  %1051 = vmatpush.xpose.msra.mxu0 0.0
  %1052 = vmatpush.xpose.msra.mxu0 0.0
  %1053 = vmatpush.xpose.msra.mxu0 0.0
  %1054 = vmatpush.xpose.msra.mxu0 0.0
  %1055 = vmatpush.xpose.msra.mxu0 0.0
  %1056 = vmatpush.xpose.msra.mxu0 0.0
  %1057 = vmatpush.xpose.msra.mxu0 0.0
  %1058 = vmatpush.xpose.msra.mxu0 %v1041
  %1059 = vmatmul.f32.gmra.mxu0 %v1039
  %v1060 = vpop.f32.mrf.mxu0
  %v1061 = vadd.f32 0.0, %v1060
  %1062 = vdwg.mxu0
  %v1063 = vmul.f32 %v1061, 0.35355338
  %v1064 = vsel %vm919, %v1063, -inf
  %1065 = vmax.xlane.f32.xlu0 %v1064
  %v1066 = vpop.xlane.xlu0 %1065
  %v1067 = vsub.f32 %v1063, %v1066
  %v1068 = vmul.f32 %v1067, 1.442695
  %v1069 = vpow.pop %v1068
  %v1070 = vsel %vm919, %v1069, 0.0
  %1071 = vadd.xlane.f32.xlu0 %v1070
  %v1072 = vpop.xlane.xlu0 %1071
  %v1073 = vrcp.pop %v1072
  %v1074 = vmul.f32 %v1069, %v1073
  %1075 = vrot.lane.b32.xlu0 %v885, 48
  %v1076 = vpop.permute.xlu0 %1075
  %v1078 = vsel %vm933, %v1074, 0
  %v1080 = vsel %vm937, %v1076, 0
  %1082 = vmatpush.msra.mxu0 0.0
  %1083 = vmatpush.msra.mxu0 0.0
  %1084 = vmatpush.msra.mxu0 0.0
  %1085 = vmatpush.msra.mxu0 0.0
  %1086 = vmatpush.msra.mxu0 0.0
  %1087 = vmatpush.msra.mxu0 0.0
  %1088 = vmatpush.msra.mxu0 0.0
  %1089 = vmatpush.msra.mxu0 0.0
  %1090 = vmatpush.msra.mxu0 0.0
  %1091 = vmatpush.msra.mxu0 0.0
  %1092 = vmatpush.msra.mxu0 0.0
  %1093 = vmatpush.msra.mxu0 0.0
  %1094 = vmatpush.msra.mxu0 0.0
  %1095 = vmatpush.msra.mxu0 0.0
  %1096 = vmatpush.msra.mxu0 0.0
  %1097 = vmatpush.msra.mxu0 %v1080
  %1098 = vmatmul.f32.gmra.mxu0 %v1078
  %v1099 = vpop.f32.mrf.mxu0
  %v1100 = vadd.f32 0.0, %v1099
  %1101 = vdwg.mxu0
  %1103 = vrot.lane.b32.xlu0 %v1100, 16
  %v1104 = vpop.permute.xlu0 %1103
  %vm1106 = vcmask 192640
  %1107 = vst.msk [vmem:[#allocation3] sm:$0x1f] %vm1106, %v1104
  %1108 = vrot.lane.b32.xlu0 %v885, 104
  %v1109 = vpop.permute.xlu0 %1108
  %1110 = vrot.lane.b32.xlu0 %v885, 72
  %v1111 = vpop.permute.xlu0 %1110
  %v1112 = vsel %vm893, %v1109, 0
  %v1114 = vsel %vm893, %v1111, 0
  %1116 = vmatpush.xpose.msra.mxu0 0.0
  %1117 = vmatpush.xpose.msra.mxu0 0.0
  %1118 = vmatpush.xpose.msra.mxu0 0.0
  %1119 = vmatpush.xpose.msra.mxu0 0.0
  %1120 = vmatpush.xpose.msra.mxu0 0.0
  %1121 = vmatpush.xpose.msra.mxu0 0.0
  %1122 = vmatpush.xpose.msra.mxu0 0.0
  %1123 = vmatpush.xpose.msra.mxu0 0.0
  %1124 = vmatpush.xpose.msra.mxu0 0.0
  %1125 = vmatpush.xpose.msra.mxu0 0.0
  %1126 = vmatpush.xpose.msra.mxu0 0.0
  %1127 = vmatpush.xpose.msra.mxu0 0.0
  %1128 = vmatpush.xpose.msra.mxu0 0.0
  %1129 = vmatpush.xpose.msra.mxu0 0.0
  %1130 = vmatpush.xpose.msra.mxu0 0.0
  %1131 = vmatpush.xpose.msra.mxu0 %v1114
  %1132 = vmatmul.f32.gmra.mxu0 %v1112
  %v1133 = vpop.f32.mrf.mxu0
  %v1134 = vadd.f32 0.0, %v1133
  %1135 = vdwg.mxu0
  %v1136 = vmul.f32 %v1134, 0.35355338
  %v1137 = vsel %vm919, %v1136, -inf
  %1138 = vmax.xlane.f32.xlu0 %v1137
  %v1139 = vpop.xlane.xlu0 %1138
  %v1140 = vsub.f32 %v1136, %v1139
  %v1141 = vmul.f32 %v1140, 1.442695
  %v1142 = vpow.pop %v1141
  %v1143 = vsel %vm919, %v1142, 0.0
  %1144 = vadd.xlane.f32.xlu0 %v1143
  %v1145 = vpop.xlane.xlu0 %1144
  %v1146 = vrcp.pop %v1145
  %v1147 = vmul.f32 %v1142, %v1146
  %1148 = vrot.lane.b32.xlu0 %v885, 40
  %v1149 = vpop.permute.xlu0 %1148
  %v1151 = vsel %vm933, %v1147, 0
  %v1153 = vsel %vm937, %v1149, 0
  %1155 = vmatpush.msra.mxu0 0.0
  %1156 = vmatpush.msra.mxu0 0.0
  %1157 = vmatpush.msra.mxu0 0.0
  %1158 = vmatpush.msra.mxu0 0.0
  %1159 = vmatpush.msra.mxu0 0.0
  %1160 = vmatpush.msra.mxu0 0.0
  %1161 = vmatpush.msra.mxu0 0.0
  %1162 = vmatpush.msra.mxu0 0.0
  %1163 = vmatpush.msra.mxu0 0.0
  %1164 = vmatpush.msra.mxu0 0.0
  %1165 = vmatpush.msra.mxu0 0.0
  %1166 = vmatpush.msra.mxu0 0.0
  %1167 = vmatpush.msra.mxu0 0.0
  %1168 = vmatpush.msra.mxu0 0.0
  %1169 = vmatpush.msra.mxu0 0.0
  %1170 = vmatpush.msra.mxu0 %v1153
  %1171 = vmatmul.f32.gmra.mxu0 %v1151
  %v1172 = vpop.f32.mrf.mxu0
  %v1173 = vadd.f32 0.0, %v1172
  %1174 = vdwg.mxu0
  %1176 = vrot.lane.b32.xlu0 %v1173, 24
  %v1177 = vpop.permute.xlu0 %1176
  %vm1179 = vcmask 258240
  %1180 = vst.msk [vmem:[#allocation3] sm:$0x1f] %vm1179, %v1177
  %v1182 = vrot.slane %v885, 5
  %v1183 = vrot.slane %v888, 5
  %v1184 = vsel %vm811, %v1182, %v1183
  %1185 = vrot.lane.b32.xlu0 %v1184, 96
  %v1186 = vpop.permute.xlu0 %1185
  %v1187 = vsel %vm893, %v1184, 0
  %v1189 = vsel %vm893, %v1186, 0
  %1191 = vmatpush.xpose.msra.mxu0 0.0
  %1192 = vmatpush.xpose.msra.mxu0 0.0
  %1193 = vmatpush.xpose.msra.mxu0 0.0
  %1194 = vmatpush.xpose.msra.mxu0 0.0
  %1195 = vmatpush.xpose.msra.mxu0 0.0
  %1196 = vmatpush.xpose.msra.mxu0 0.0
  %1197 = vmatpush.xpose.msra.mxu0 0.0
  %1198 = vmatpush.xpose.msra.mxu0 0.0
  %1199 = vmatpush.xpose.msra.mxu0 0.0
  %1200 = vmatpush.xpose.msra.mxu0 0.0
  %1201 = vmatpush.xpose.msra.mxu0 0.0
  %1202 = vmatpush.xpose.msra.mxu0 0.0
  %1203 = vmatpush.xpose.msra.mxu0 0.0
  %1204 = vmatpush.xpose.msra.mxu0 0.0
  %1205 = vmatpush.xpose.msra.mxu0 0.0
  %1206 = vmatpush.xpose.msra.mxu0 %v1189
  %1207 = vmatmul.f32.gmra.mxu0 %v1187
  %v1208 = vpop.f32.mrf.mxu0
  %v1209 = vadd.f32 0.0, %v1208
  %1210 = vdwg.mxu0
  %v1211 = vmul.f32 %v1209, 0.35355338
  %v1212 = vsel %vm919, %v1211, -inf
  %1213 = vmax.xlane.f32.xlu0 %v1212
  %v1214 = vpop.xlane.xlu0 %1213
  %v1215 = vsub.f32 %v1211, %v1214
  %v1216 = vmul.f32 %v1215, 1.442695
  %v1217 = vpow.pop %v1216
  %v1218 = vsel %vm919, %v1217, 0.0
  %1219 = vadd.xlane.f32.xlu0 %v1218
  %v1220 = vpop.xlane.xlu0 %1219
  %v1221 = vrcp.pop %v1220
  %v1222 = vmul.f32 %v1217, %v1221
  %1223 = vrot.lane.b32.xlu0 %v1184, 64
  %v1224 = vpop.permute.xlu0 %1223
  %v1226 = vsel %vm933, %v1222, 0
  %v1228 = vsel %vm937, %v1224, 0
  %1230 = vmatpush.msra.mxu0 0.0
  %1231 = vmatpush.msra.mxu0 0.0
  %1232 = vmatpush.msra.mxu0 0.0
  %1233 = vmatpush.msra.mxu0 0.0
  %1234 = vmatpush.msra.mxu0 0.0
  %1235 = vmatpush.msra.mxu0 0.0
  %1236 = vmatpush.msra.mxu0 0.0
  %1237 = vmatpush.msra.mxu0 0.0
  %1238 = vmatpush.msra.mxu0 0.0
  %1239 = vmatpush.msra.mxu0 0.0
  %1240 = vmatpush.msra.mxu0 0.0
  %1241 = vmatpush.msra.mxu0 0.0
  %1242 = vmatpush.msra.mxu0 0.0
  %1243 = vmatpush.msra.mxu0 0.0
  %1244 = vmatpush.msra.mxu0 0.0
  %1245 = vmatpush.msra.mxu0 %v1228
  %1246 = vmatmul.f32.gmra.mxu0 %v1226
  %v1247 = vpop.f32.mrf.mxu0
  %v1248 = vadd.f32 0.0, %v1247
  %1249 = vdwg.mxu0
  %1250 = vst.msk [vmem:[#allocation3 + $0x5] sm:$0x1f] %vm960, %v1248
  %1251 = vrot.lane.b32.xlu0 %v1184, 120
  %v1252 = vpop.permute.xlu0 %1251
  %1253 = vrot.lane.b32.xlu0 %v1184, 88
  %v1254 = vpop.permute.xlu0 %1253
  %v1255 = vsel %vm893, %v1252, 0
  %v1257 = vsel %vm893, %v1254, 0
  %1259 = vmatpush.xpose.msra.mxu0 0.0
  %1260 = vmatpush.xpose.msra.mxu0 0.0
  %1261 = vmatpush.xpose.msra.mxu0 0.0
  %1262 = vmatpush.xpose.msra.mxu0 0.0
  %1263 = vmatpush.xpose.msra.mxu0 0.0
  %1264 = vmatpush.xpose.msra.mxu0 0.0
  %1265 = vmatpush.xpose.msra.mxu0 0.0
  %1266 = vmatpush.xpose.msra.mxu0 0.0
  %1267 = vmatpush.xpose.msra.mxu0 0.0
  %1268 = vmatpush.xpose.msra.mxu0 0.0
  %1269 = vmatpush.xpose.msra.mxu0 0.0
  %1270 = vmatpush.xpose.msra.mxu0 0.0
  %1271 = vmatpush.xpose.msra.mxu0 0.0
  %1272 = vmatpush.xpose.msra.mxu0 0.0
  %1273 = vmatpush.xpose.msra.mxu0 0.0
  %1274 = vmatpush.xpose.msra.mxu0 %v1257
  %1275 = vmatmul.f32.gmra.mxu0 %v1255
  %v1276 = vpop.f32.mrf.mxu0
  %v1277 = vadd.f32 0.0, %v1276
  %1278 = vdwg.mxu0
  %v1279 = vmul.f32 %v1277, 0.35355338
  %v1280 = vsel %vm919, %v1279, -inf
  %1281 = vmax.xlane.f32.xlu0 %v1280
  %v1282 = vpop.xlane.xlu0 %1281
  %v1283 = vsub.f32 %v1279, %v1282
  %v1284 = vmul.f32 %v1283, 1.442695
  %v1285 = vpow.pop %v1284
  %v1286 = vsel %vm919, %v1285, 0.0
  %1287 = vadd.xlane.f32.xlu0 %v1286
  %v1288 = vpop.xlane.xlu0 %1287
  %v1289 = vrcp.pop %v1288
  %v1290 = vmul.f32 %v1285, %v1289
  %1291 = vrot.lane.b32.xlu0 %v1184, 56
  %v1292 = vpop.permute.xlu0 %1291
  %v1294 = vsel %vm933, %v1290, 0
  %v1296 = vsel %vm937, %v1292, 0
  %1298 = vmatpush.msra.mxu0 0.0
  %1299 = vmatpush.msra.mxu0 0.0
  %1300 = vmatpush.msra.mxu0 0.0
  %1301 = vmatpush.msra.mxu0 0.0
  %1302 = vmatpush.msra.mxu0 0.0
  %1303 = vmatpush.msra.mxu0 0.0
  %1304 = vmatpush.msra.mxu0 0.0
  %1305 = vmatpush.msra.mxu0 0.0
  %1306 = vmatpush.msra.mxu0 0.0
  %1307 = vmatpush.msra.mxu0 0.0
  %1308 = vmatpush.msra.mxu0 0.0
  %1309 = vmatpush.msra.mxu0 0.0
  %1310 = vmatpush.msra.mxu0 0.0
  %1311 = vmatpush.msra.mxu0 0.0
  %1312 = vmatpush.msra.mxu0 0.0
  %1313 = vmatpush.msra.mxu0 %v1296
  %1314 = vmatmul.f32.gmra.mxu0 %v1294
  %v1315 = vpop.f32.mrf.mxu0
  %v1316 = vadd.f32 0.0, %v1315
  %1317 = vdwg.mxu0
  %1319 = vrot.lane.b32.xlu0 %v1316, 8
  %v1320 = vpop.permute.xlu0 %1319
  %1322 = vst.msk [vmem:[#allocation3 + $0x5] sm:$0x1f] %vm1033, %v1320
  %1323 = vrot.lane.b32.xlu0 %v1184, 112
  %v1324 = vpop.permute.xlu0 %1323
  %1325 = vrot.lane.b32.xlu0 %v1184, 80
  %v1326 = vpop.permute.xlu0 %1325
  %v1327 = vsel %vm893, %v1324, 0
  %v1329 = vsel %vm893, %v1326, 0
  %1331 = vmatpush.xpose.msra.mxu0 0.0
  %1332 = vmatpush.xpose.msra.mxu0 0.0
  %1333 = vmatpush.xpose.msra.mxu0 0.0
  %1334 = vmatpush.xpose.msra.mxu0 0.0
  %1335 = vmatpush.xpose.msra.mxu0 0.0
  %1336 = vmatpush.xpose.msra.mxu0 0.0
  %1337 = vmatpush.xpose.msra.mxu0 0.0
  %1338 = vmatpush.xpose.msra.mxu0 0.0
  %1339 = vmatpush.xpose.msra.mxu0 0.0
  %1340 = vmatpush.xpose.msra.mxu0 0.0
  %1341 = vmatpush.xpose.msra.mxu0 0.0
  %1342 = vmatpush.xpose.msra.mxu0 0.0
  %1343 = vmatpush.xpose.msra.mxu0 0.0
  %1344 = vmatpush.xpose.msra.mxu0 0.0
  %1345 = vmatpush.xpose.msra.mxu0 0.0
  %1346 = vmatpush.xpose.msra.mxu0 %v1329
  %1347 = vmatmul.f32.gmra.mxu0 %v1327
  %v1348 = vpop.f32.mrf.mxu0
  %v1349 = vadd.f32 0.0, %v1348
  %1350 = vdwg.mxu0
  %v1351 = vmul.f32 %v1349, 0.35355338
  %v1352 = vsel %vm919, %v1351, -inf
  %1353 = vmax.xlane.f32.xlu0 %v1352
  %v1354 = vpop.xlane.xlu0 %1353
  %v1355 = vsub.f32 %v1351, %v1354
  %v1356 = vmul.f32 %v1355, 1.442695
  %v1357 = vpow.pop %v1356
  %v1358 = vsel %vm919, %v1357, 0.0
  %1359 = vadd.xlane.f32.xlu0 %v1358
  %v1360 = vpop.xlane.xlu0 %1359
  %v1361 = vrcp.pop %v1360
  %v1362 = vmul.f32 %v1357, %v1361
  %1363 = vrot.lane.b32.xlu0 %v1184, 48
  %v1364 = vpop.permute.xlu0 %1363
  %v1366 = vsel %vm933, %v1362, 0
  %v1368 = vsel %vm937, %v1364, 0
  %1370 = vmatpush.msra.mxu0 0.0
  %1371 = vmatpush.msra.mxu0 0.0
  %1372 = vmatpush.msra.mxu0 0.0
  %1373 = vmatpush.msra.mxu0 0.0
  %1374 = vmatpush.msra.mxu0 0.0
  %1375 = vmatpush.msra.mxu0 0.0
  %1376 = vmatpush.msra.mxu0 0.0
  %1377 = vmatpush.msra.mxu0 0.0
  %1378 = vmatpush.msra.mxu0 0.0
  %1379 = vmatpush.msra.mxu0 0.0
  %1380 = vmatpush.msra.mxu0 0.0
  %1381 = vmatpush.msra.mxu0 0.0
  %1382 = vmatpush.msra.mxu0 0.0
  %1383 = vmatpush.msra.mxu0 0.0
  %1384 = vmatpush.msra.mxu0 0.0
  %1385 = vmatpush.msra.mxu0 %v1368
  %1386 = vmatmul.f32.gmra.mxu0 %v1366
  %v1387 = vpop.f32.mrf.mxu0
  %v1388 = vadd.f32 0.0, %v1387
  %1389 = vdwg.mxu0
  %1391 = vrot.lane.b32.xlu0 %v1388, 16
  %v1392 = vpop.permute.xlu0 %1391
  %1394 = vst.msk [vmem:[#allocation3 + $0x5] sm:$0x1f] %vm1106, %v1392
  %1395 = vrot.lane.b32.xlu0 %v1184, 104
  %v1396 = vpop.permute.xlu0 %1395
  %1397 = vrot.lane.b32.xlu0 %v1184, 72
  %v1398 = vpop.permute.xlu0 %1397
  %v1399 = vsel %vm893, %v1396, 0
  %v1401 = vsel %vm893, %v1398, 0
  %1403 = vmatpush.xpose.msra.mxu0 0.0
  %1404 = vmatpush.xpose.msra.mxu0 0.0
  %1405 = vmatpush.xpose.msra.mxu0 0.0
  %1406 = vmatpush.xpose.msra.mxu0 0.0
  %1407 = vmatpush.xpose.msra.mxu0 0.0
  %1408 = vmatpush.xpose.msra.mxu0 0.0
  %1409 = vmatpush.xpose.msra.mxu0 0.0
  %1410 = vmatpush.xpose.msra.mxu0 0.0
  %1411 = vmatpush.xpose.msra.mxu0 0.0
  %1412 = vmatpush.xpose.msra.mxu0 0.0
  %1413 = vmatpush.xpose.msra.mxu0 0.0
  %1414 = vmatpush.xpose.msra.mxu0 0.0
  %1415 = vmatpush.xpose.msra.mxu0 0.0
  %1416 = vmatpush.xpose.msra.mxu0 0.0
  %1417 = vmatpush.xpose.msra.mxu0 0.0
  %1418 = vmatpush.xpose.msra.mxu0 %v1401
  %1419 = vmatmul.f32.gmra.mxu0 %v1399
  %v1420 = vpop.f32.mrf.mxu0
  %v1421 = vadd.f32 0.0, %v1420
  %1422 = vdwg.mxu0
  %v1423 = vmul.f32 %v1421, 0.35355338
  %v1424 = vsel %vm919, %v1423, -inf
  %1425 = vmax.xlane.f32.xlu0 %v1424
  %v1426 = vpop.xlane.xlu0 %1425
  %v1427 = vsub.f32 %v1423, %v1426
  %v1428 = vmul.f32 %v1427, 1.442695
  %v1429 = vpow.pop %v1428
  %v1430 = vsel %vm919, %v1429, 0.0
  %1431 = vadd.xlane.f32.xlu0 %v1430
  %v1432 = vpop.xlane.xlu0 %1431
  %v1433 = vrcp.pop %v1432
  %v1434 = vmul.f32 %v1429, %v1433
  %1435 = vrot.lane.b32.xlu0 %v1184, 40
  %v1436 = vpop.permute.xlu0 %1435
  %v1438 = vsel %vm933, %v1434, 0
  %v1440 = vsel %vm937, %v1436, 0
  %1442 = vmatpush.msra.mxu0 0.0
  %1443 = vmatpush.msra.mxu0 0.0
  %1444 = vmatpush.msra.mxu0 0.0
  %1445 = vmatpush.msra.mxu0 0.0
  %1446 = vmatpush.msra.mxu0 0.0
  %1447 = vmatpush.msra.mxu0 0.0
  %1448 = vmatpush.msra.mxu0 0.0
  %1449 = vmatpush.msra.mxu0 0.0
  %1450 = vmatpush.msra.mxu0 0.0
  %1451 = vmatpush.msra.mxu0 0.0
  %1452 = vmatpush.msra.mxu0 0.0
  %1453 = vmatpush.msra.mxu0 0.0
  %1454 = vmatpush.msra.mxu0 0.0
  %1455 = vmatpush.msra.mxu0 0.0
  %1456 = vmatpush.msra.mxu0 0.0
  %1457 = vmatpush.msra.mxu0 %v1440
  %1458 = vmatmul.f32.gmra.mxu0 %v1438
  %v1459 = vpop.f32.mrf.mxu0
  %v1460 = vadd.f32 0.0, %v1459
  %1461 = vdwg.mxu0
  %1463 = vrot.lane.b32.xlu0 %v1460, 24
  %v1464 = vpop.permute.xlu0 %1463
  %1466 = vst.msk [vmem:[#allocation3 + $0x5] sm:$0x1f] %vm1179, %v1464
  %v1467 = vld [vmem:[#allocation3] sm:$0xff]
  %v1468 = vld [vmem:[#allocation3 + $0x8] sm:$0x3]
  %v1469 = vld [vmem:[%s8] sm:$0xff]
  %v1470 = vld [vmem:[%s8 + $0x8] sm:$0xff]
  %v1471 = vld [vmem:[%s8 + $0x10] sm:$0xff]
  %v1472 = vld [vmem:[%s8 + $0x18] sm:$0xff]
  %v1473 = vld [vmem:[%s9] sm:$0x1]
  %v1475 = vperm.slane %v1473, 0
  %v1478 = vsel %vm781, %v1467, 0
  %v1481 = vsel %vm781, %v1468, 0
  %1483 = vmatpush.msra.mxu0 0.0
  %1484 = vmatpush.msra.mxu0 0.0
  %1485 = vmatpush.msra.mxu0 0.0
  %1486 = vmatpush.msra.mxu0 0.0
  %1487 = vmatpush.msra.mxu0 0.0
  %1488 = vmatpush.msra.mxu0 0.0
  %1489 = vmatpush.msra.mxu0 0.0
  %1490 = vmatpush.msra.mxu0 0.0
  %1491 = vmatpush.msra.mxu0 0.0
  %1492 = vmatpush.msra.mxu0 0.0
  %1493 = vmatpush.msra.mxu0 0.0
  %1494 = vmatpush.msra.mxu0 0.0
  %1495 = vmatpush.msra.mxu0 %v1472
  %1496 = vmatpush.msra.mxu0 %v1471
  %1497 = vmatpush.msra.mxu0 %v1470
  %1498 = vmatpush.msra.mxu0 %v1469
  %1499 = vmatmul.f32.gmra.mxu0 %v1478
  %v1500 = vpop.f32.mrf.mxu0
  %v1501 = vadd.f32 %v1475, %v1500
  %1502 = vmatmul.f32.gmra.mxu0 %v1481
  %v1503 = vpop.f32.mrf.mxu0
  %v1504 = vadd.f32 %v1475, %v1503
  %1505 = vdwg.mxu0
  %v1506 = vadd.f32 %v851, %v1501
  %v1507 = vadd.f32 %v852, %v1504
  %v1508 = vld [vmem:[%s14] sm:$0x1]
  %v1509 = vld [vmem:[%s15] sm:$0x1]
  %v1510 = vsel %vm781, %v1506, 0.0
  %1511 = vadd.xlane.f32.xlu0 %v1510
  %v1512 = vpop.xlane.xlu0 %1511
  %v1513 = vsel %vm839, %v1507, 0.0
  %1514 = vadd.xlane.f32.xlu0 %v1513
  %v1515 = vpop.xlane.xlu0 %1514
  %v1516 = vrcp.pop 32.0
  %v1517 = vmul.f32 32.0, %v1516
  %v1518 = vsub.f32 1.0, %v1517
  %v1519 = vmul.f32 %v1516, %v1518
  %v1520 = vadd.f32 %v1516, %v1519
  %vm1521 = vweird.f32 %v1516
  %v1522 = vsel %vm1521, %v1516, %v1520
  %v1523 = vmul.f32 %v1512, %v1522
  %v1524 = vmul.f32 %v1515, %v1522
  %v1525 = vsub.f32 %v1506, %v1523
  %v1526 = vsub.f32 %v1507, %v1524
  %v1527 = vmul.f32 %v1525, %v1525
  %v1528 = vmul.f32 %v1526, %v1526
  %v1529 = vsel %vm781, %v1527, 0.0
  %1530 = vadd.xlane.f32.xlu0 %v1529
  %v1531 = vpop.xlane.xlu0 %1530
  %v1532 = vsel %vm839, %v1528, 0.0
  %1533 = vadd.xlane.f32.xlu0 %v1532
  %v1534 = vpop.xlane.xlu0 %1533
  %v1535 = vmul.f32 %v1531, %v1522
  %v1536 = vmul.f32 %v1534, %v1522
  %v1537 = vadd.f32 %v1535, 1e-05
  %v1538 = vadd.f32 %v1536, 1e-05
  %v1539 = vrsqrt.pop %v1537
  %v1540 = vmul.f32 %v1539, %v1537
  %v1541 = vmul.f32 %v1540, %v1539
  %v1542 = vmul.f32 0.5, %v1541
  %v1543 = vsub.f32 1.5, %v1542
  %v1544 = vmul.f32 %v1539, %v1543
  %vm1545 = vweird.f32 %v1537
  %vm1546 = vweird.f32 %v1539
  %vm1547 = vmor %vm1545, %vm1546
  %v1548 = vsel %vm1547, %v1539, %v1544
  %v1549 = vrsqrt.pop %v1538
  %v1550 = vmul.f32 %v1549, %v1538
  %v1551 = vmul.f32 %v1550, %v1549
  %v1552 = vmul.f32 0.5, %v1551
  %v1553 = vsub.f32 1.5, %v1552
  %v1554 = vmul.f32 %v1549, %v1553
  %vm1555 = vweird.f32 %v1538
  %vm1556 = vweird.f32 %v1549
  %vm1557 = vmor %vm1555, %vm1556
  %v1558 = vsel %vm1557, %v1549, %v1554
  %v1559 = vmul.f32 %v1525, %v1548
  %v1560 = vmul.f32 %v1526, %v1558
  %v1562 = vperm.slane %v1508, 0
  %v1564 = vmul.f32 %v1559, %v1562
  %v1565 = vmul.f32 %v1560, %v1562
  %v1567 = vperm.slane %v1509, 0
  %v1569 = vadd.f32 %v1564, %v1567
  %v1570 = vadd.f32 %v1565, %v1567
  %v1571 = vld [vmem:[%s10] sm:$0xff]
  %v1572 = vld [vmem:[%s10 + $0x8] sm:$0xff]
  %v1573 = vld [vmem:[%s10 + $0x10] sm:$0xff]
  %v1574 = vld [vmem:[%s10 + $0x18] sm:$0xff]
  %v1575 = vld [vmem:[%s11] sm:$0x1]
  %v1577 = vperm.slane %v1575, 0
  %v1580 = vsel %vm781, %v1569, 0
  %v1583 = vsel %vm781, %v1570, 0
  %1585 = vmatpush.msra.mxu0 0.0
  %1586 = vmatpush.msra.mxu0 0.0
  %1587 = vmatpush.msra.mxu0 0.0
  %1588 = vmatpush.msra.mxu0 0.0
  %1589 = vmatpush.msra.mxu0 0.0
  %1590 = vmatpush.msra.mxu0 0.0
  %1591 = vmatpush.msra.mxu0 0.0
  %1592 = vmatpush.msra.mxu0 0.0
  %1593 = vmatpush.msra.mxu0 0.0
  %1594 = vmatpush.msra.mxu0 0.0
  %1595 = vmatpush.msra.mxu0 0.0
  %1596 = vmatpush.msra.mxu0 0.0
  %1597 = vmatpush.msra.mxu0 %v1574
  %1598 = vmatpush.msra.mxu0 %v1573
  %1599 = vmatpush.msra.mxu0 %v1572
  %1600 = vmatpush.msra.mxu0 %v1571
  %1601 = vmatmul.f32.gmra.mxu0 %v1580
  %v1602 = vpop.f32.mrf.mxu0
  %v1603 = vadd.f32 %v1577, %v1602
  %1604 = vmatmul.f32.gmra.mxu0 %v1583
  %v1605 = vpop.f32.mrf.mxu0
  %v1606 = vadd.f32 %v1577, %v1605
  %1607 = vdwg.mxu0
  %v1608 = vmax.f32 %v1603, 0.0
  %v1609 = vmax.f32 %v1606, 0.0
  %v1610 = vld [vmem:[%s12] sm:$0xff]
  %v1611 = vld [vmem:[%s12 + $0x8] sm:$0xff]
  %v1612 = vld [vmem:[%s12 + $0x10] sm:$0xff]
  %v1613 = vld [vmem:[%s12 + $0x18] sm:$0xff]
  %v1614 = vld [vmem:[%s12 + $0x20] sm:$0xff]
  %v1615 = vld [vmem:[%s12 + $0x28] sm:$0xff]
  %v1616 = vld [vmem:[%s12 + $0x30] sm:$0xff]
  %v1617 = vld [vmem:[%s12 + $0x38] sm:$0xff]
  %v1618 = vld [vmem:[%s13] sm:$0x1]
  %v1620 = vperm.slane %v1618, 0
  %vm1622 = vcmask 523264
  %v1624 = vsel %vm1622, %v1608, 0
  %v1627 = vsel %vm1622, %v1609, 0
  %1629 = vmatpush.msra.mxu0 0.0
  %1630 = vmatpush.msra.mxu0 0.0
  %1631 = vmatpush.msra.mxu0 0.0
  %1632 = vmatpush.msra.mxu0 0.0
  %1633 = vmatpush.msra.mxu0 0.0
  %1634 = vmatpush.msra.mxu0 0.0
  %1635 = vmatpush.msra.mxu0 0.0
  %1636 = vmatpush.msra.mxu0 0.0
  %1637 = vmatpush.msra.mxu0 %v1617
  %1638 = vmatpush.msra.mxu0 %v1616
  %1639 = vmatpush.msra.mxu0 %v1615
  %1640 = vmatpush.msra.mxu0 %v1614
  %1641 = vmatpush.msra.mxu0 %v1613
  %1642 = vmatpush.msra.mxu0 %v1612
  %1643 = vmatpush.msra.mxu0 %v1611
  %1644 = vmatpush.msra.mxu0 %v1610
  %1645 = vmatmul.f32.gmra.mxu0 %v1624
  %v1646 = vpop.f32.mrf.mxu0
  %v1647 = vadd.f32 %v1620, %v1646
  %1648 = vmatmul.f32.gmra.mxu0 %v1627
  %v1649 = vpop.f32.mrf.mxu0
  %v1650 = vadd.f32 %v1620, %v1649
  %1651 = vdwg.mxu0
  %v1652 = vadd.f32 %v1569, %v1647
  %v1653 = vadd.f32 %v1570, %v1650
  %v1654 = vld [vmem:[%s16] sm:$0x1]
  %v1655 = vld [vmem:[%s17] sm:$0x1]
  %v1656 = vsel %vm781, %v1652, 0.0
  %1657 = vadd.xlane.f32.xlu0 %v1656
  %v1658 = vpop.xlane.xlu0 %1657
  %v1659 = vsel %vm839, %v1653, 0.0
  %1660 = vadd.xlane.f32.xlu0 %v1659
  %v1661 = vpop.xlane.xlu0 %1660
  %v1662 = vmul.f32 %v1658, %v1522
  %v1663 = vmul.f32 %v1661, %v1522
  %v1664 = vsub.f32 %v1652, %v1662
  %v1665 = vsub.f32 %v1653, %v1663
  %v1666 = vmul.f32 %v1664, %v1664
  %v1667 = vmul.f32 %v1665, %v1665
  %v1668 = vsel %vm781, %v1666, 0.0
  %1669 = vadd.xlane.f32.xlu0 %v1668
  %v1670 = vpop.xlane.xlu0 %1669
  %v1671 = vsel %vm839, %v1667, 0.0
  %1672 = vadd.xlane.f32.xlu0 %v1671
  %v1673 = vpop.xlane.xlu0 %1672
  %v1674 = vmul.f32 %v1670, %v1522
  %v1675 = vmul.f32 %v1673, %v1522
  %v1676 = vadd.f32 %v1674, 1e-05
  %v1677 = vadd.f32 %v1675, 1e-05
  %v1678 = vrsqrt.pop %v1676
  %v1679 = vmul.f32 %v1678, %v1676
  %v1680 = vmul.f32 %v1679, %v1678
  %v1681 = vmul.f32 0.5, %v1680
  %v1682 = vsub.f32 1.5, %v1681
  %v1683 = vmul.f32 %v1678, %v1682
  %vm1684 = vweird.f32 %v1676
  %vm1685 = vweird.f32 %v1678
  %vm1686 = vmor %vm1684, %vm1685
  %v1687 = vsel %vm1686, %v1678, %v1683
  %v1688 = vrsqrt.pop %v1677
  %v1689 = vmul.f32 %v1688, %v1677
  %v1690 = vmul.f32 %v1689, %v1688
  %v1691 = vmul.f32 0.5, %v1690
  %v1692 = vsub.f32 1.5, %v1691
  %v1693 = vmul.f32 %v1688, %v1692
  %vm1694 = vweird.f32 %v1677
  %vm1695 = vweird.f32 %v1688
  %vm1696 = vmor %vm1694, %vm1695
  %v1697 = vsel %vm1696, %v1688, %v1693
  %v1698 = vmul.f32 %v1664, %v1687
  %v1699 = vmul.f32 %v1665, %v1697
  %v1701 = vperm.slane %v1654, 0
  %v1703 = vmul.f32 %v1698, %v1701
  %v1704 = vmul.f32 %v1699, %v1701
  %v1706 = vperm.slane %v1655, 0
  %v1708 = vadd.f32 %v1703, %v1706
  %v1709 = vadd.f32 %v1704, %v1706
  %1710 = vst.msk [vmem:[#allocation2] sm:$0xff] %vm781, %v1708
  %1711 = vst.msk [vmem:[#allocation2 + $0x8] sm:$0x3] %vm839, %v1709
  %v1712 = vld [vmem:[#allocation2] sm:$0xff]
  %v1713 = vld [vmem:[#allocation2 + $0x8] sm:$0x3]
  %s1714 = scalar_lea.vmem %s6, 32
  %v1715 = vld [vmem:[%s1714] sm:$0xff]
  %v1716 = vld [vmem:[%s1714 + $0x8] sm:$0xff]
  %v1717 = vld [vmem:[%s1714 + $0x10] sm:$0xff]
  %v1718 = vld [vmem:[%s1714 + $0x18] sm:$0xff]
  %s1719 = scalar_lea.vmem %s7, 1
  %v1720 = vld [vmem:[%s1719] sm:$0x1]
  %v1722 = vperm.slane %v1720, 0
  %v1725 = vsel %vm781, %v1712, 0
  %v1728 = vsel %vm781, %v1713, 0
  %1730 = vmatpush.msra.mxu0 0.0
  %1731 = vmatpush.msra.mxu0 0.0
  %1732 = vmatpush.msra.mxu0 0.0
  %1733 = vmatpush.msra.mxu0 0.0
  %1734 = vmatpush.msra.mxu0 0.0
  %1735 = vmatpush.msra.mxu0 0.0
  %1736 = vmatpush.msra.mxu0 0.0
  %1737 = vmatpush.msra.mxu0 0.0
  %1738 = vmatpush.msra.mxu0 0.0
  %1739 = vmatpush.msra.mxu0 0.0
  %1740 = vmatpush.msra.mxu0 0.0
  %1741 = vmatpush.msra.mxu0 0.0
  %1742 = vmatpush.msra.mxu0 %v1718
  %1743 = vmatpush.msra.mxu0 %v1717
  %1744 = vmatpush.msra.mxu0 %v1716
  %1745 = vmatpush.msra.mxu0 %v1715
  %1746 = vmatmul.f32.gmra.mxu0 %v1725
  %v1747 = vpop.f32.mrf.mxu0
  %v1748 = vadd.f32 %v1722, %v1747
  %1749 = vmatmul.f32.gmra.mxu0 %v1728
  %v1750 = vpop.f32.mrf.mxu0
  %v1751 = vadd.f32 %v1722, %v1750
  %1752 = vdwg.mxu0
  %1754 = vrot.lane.b32.xlu0 %v1748, 96
  %v1755 = vpop.permute.xlu0 %1754
  %v1756 = vsel %vm893, %v1748, 0
  %v1758 = vsel %vm893, %v1755, 0
  %1760 = vmatpush.xpose.msra.mxu0 0.0
  %1761 = vmatpush.xpose.msra.mxu0 0.0
  %1762 = vmatpush.xpose.msra.mxu0 0.0
  %1763 = vmatpush.xpose.msra.mxu0 0.0
  %1764 = vmatpush.xpose.msra.mxu0 0.0
  %1765 = vmatpush.xpose.msra.mxu0 0.0
  %1766 = vmatpush.xpose.msra.mxu0 0.0
  %1767 = vmatpush.xpose.msra.mxu0 0.0
  %1768 = vmatpush.xpose.msra.mxu0 0.0
  %1769 = vmatpush.xpose.msra.mxu0 0.0
  %1770 = vmatpush.xpose.msra.mxu0 0.0
  %1771 = vmatpush.xpose.msra.mxu0 0.0
  %1772 = vmatpush.xpose.msra.mxu0 0.0
  %1773 = vmatpush.xpose.msra.mxu0 0.0
  %1774 = vmatpush.xpose.msra.mxu0 0.0
  %1775 = vmatpush.xpose.msra.mxu0 %v1758
  %1776 = vmatmul.f32.gmra.mxu0 %v1756
  %v1777 = vpop.f32.mrf.mxu0
  %v1778 = vadd.f32 0.0, %v1777
  %1779 = vdwg.mxu0
  %v1780 = vmul.f32 %v1778, 0.35355338
  %v1781 = vsel %vm919, %v1780, -inf
  %1782 = vmax.xlane.f32.xlu0 %v1781
  %v1783 = vpop.xlane.xlu0 %1782
  %v1784 = vsub.f32 %v1780, %v1783
  %v1785 = vmul.f32 %v1784, 1.442695
  %v1786 = vpow.pop %v1785
  %v1787 = vsel %vm919, %v1786, 0.0
  %1788 = vadd.xlane.f32.xlu0 %v1787
  %v1789 = vpop.xlane.xlu0 %1788
  %v1790 = vrcp.pop %v1789
  %v1791 = vmul.f32 %v1786, %v1790
  %1792 = vrot.lane.b32.xlu0 %v1748, 64
  %v1793 = vpop.permute.xlu0 %1792
  %v1795 = vsel %vm933, %v1791, 0
  %v1797 = vsel %vm937, %v1793, 0
  %1799 = vmatpush.msra.mxu0 0.0
  %1800 = vmatpush.msra.mxu0 0.0
  %1801 = vmatpush.msra.mxu0 0.0
  %1802 = vmatpush.msra.mxu0 0.0
  %1803 = vmatpush.msra.mxu0 0.0
  %1804 = vmatpush.msra.mxu0 0.0
  %1805 = vmatpush.msra.mxu0 0.0
  %1806 = vmatpush.msra.mxu0 0.0
  %1807 = vmatpush.msra.mxu0 0.0
  %1808 = vmatpush.msra.mxu0 0.0
  %1809 = vmatpush.msra.mxu0 0.0
  %1810 = vmatpush.msra.mxu0 0.0
  %1811 = vmatpush.msra.mxu0 0.0
  %1812 = vmatpush.msra.mxu0 0.0
  %1813 = vmatpush.msra.mxu0 0.0
  %1814 = vmatpush.msra.mxu0 %v1797
  %1815 = vmatmul.f32.gmra.mxu0 %v1795
  %v1816 = vpop.f32.mrf.mxu0
  %v1817 = vadd.f32 0.0, %v1816
  %1818 = vdwg.mxu0
  %1819 = vst.msk [vmem:[#allocation3] sm:$0x1f] %vm960, %v1817
  %1820 = vrot.lane.b32.xlu0 %v1748, 120
  %v1821 = vpop.permute.xlu0 %1820
  %1822 = vrot.lane.b32.xlu0 %v1748, 88
  %v1823 = vpop.permute.xlu0 %1822
  %v1824 = vsel %vm893, %v1821, 0
  %v1826 = vsel %vm893, %v1823, 0
  %1828 = vmatpush.xpose.msra.mxu0 0.0
  %1829 = vmatpush.xpose.msra.mxu0 0.0
  %1830 = vmatpush.xpose.msra.mxu0 0.0
  %1831 = vmatpush.xpose.msra.mxu0 0.0
  %1832 = vmatpush.xpose.msra.mxu0 0.0
  %1833 = vmatpush.xpose.msra.mxu0 0.0
  %1834 = vmatpush.xpose.msra.mxu0 0.0
  %1835 = vmatpush.xpose.msra.mxu0 0.0
  %1836 = vmatpush.xpose.msra.mxu0 0.0
  %1837 = vmatpush.xpose.msra.mxu0 0.0
  %1838 = vmatpush.xpose.msra.mxu0 0.0
  %1839 = vmatpush.xpose.msra.mxu0 0.0
  %1840 = vmatpush.xpose.msra.mxu0 0.0
  %1841 = vmatpush.xpose.msra.mxu0 0.0
  %1842 = vmatpush.xpose.msra.mxu0 0.0
  %1843 = vmatpush.xpose.msra.mxu0 %v1826
  %1844 = vmatmul.f32.gmra.mxu0 %v1824
  %v1845 = vpop.f32.mrf.mxu0
  %v1846 = vadd.f32 0.0, %v1845
  %1847 = vdwg.mxu0
  %v1848 = vmul.f32 %v1846, 0.35355338
  %v1849 = vsel %vm919, %v1848, -inf
  %1850 = vmax.xlane.f32.xlu0 %v1849
  %v1851 = vpop.xlane.xlu0 %1850
  %v1852 = vsub.f32 %v1848, %v1851
  %v1853 = vmul.f32 %v1852, 1.442695
  %v1854 = vpow.pop %v1853
  %v1855 = vsel %vm919, %v1854, 0.0
  %1856 = vadd.xlane.f32.xlu0 %v1855
  %v1857 = vpop.xlane.xlu0 %1856
  %v1858 = vrcp.pop %v1857
  %v1859 = vmul.f32 %v1854, %v1858
  %1860 = vrot.lane.b32.xlu0 %v1748, 56
  %v1861 = vpop.permute.xlu0 %1860
  %v1863 = vsel %vm933, %v1859, 0
  %v1865 = vsel %vm937, %v1861, 0
  %1867 = vmatpush.msra.mxu0 0.0
  %1868 = vmatpush.msra.mxu0 0.0
  %1869 = vmatpush.msra.mxu0 0.0
  %1870 = vmatpush.msra.mxu0 0.0
  %1871 = vmatpush.msra.mxu0 0.0
  %1872 = vmatpush.msra.mxu0 0.0
  %1873 = vmatpush.msra.mxu0 0.0
  %1874 = vmatpush.msra.mxu0 0.0
  %1875 = vmatpush.msra.mxu0 0.0
  %1876 = vmatpush.msra.mxu0 0.0
  %1877 = vmatpush.msra.mxu0 0.0
  %1878 = vmatpush.msra.mxu0 0.0
  %1879 = vmatpush.msra.mxu0 0.0
  %1880 = vmatpush.msra.mxu0 0.0
  %1881 = vmatpush.msra.mxu0 0.0
  %1882 = vmatpush.msra.mxu0 %v1865
  %1883 = vmatmul.f32.gmra.mxu0 %v1863
  %v1884 = vpop.f32.mrf.mxu0
  %v1885 = vadd.f32 0.0, %v1884
  %1886 = vdwg.mxu0
  %1888 = vrot.lane.b32.xlu0 %v1885, 8
  %v1889 = vpop.permute.xlu0 %1888
  %1891 = vst.msk [vmem:[#allocation3] sm:$0x1f] %vm1033, %v1889
  %1892 = vrot.lane.b32.xlu0 %v1748, 112
  %v1893 = vpop.permute.xlu0 %1892
  %1894 = vrot.lane.b32.xlu0 %v1748, 80
  %v1895 = vpop.permute.xlu0 %1894
  %v1896 = vsel %vm893, %v1893, 0
  %v1898 = vsel %vm893, %v1895, 0
  %1900 = vmatpush.xpose.msra.mxu0 0.0
  %1901 = vmatpush.xpose.msra.mxu0 0.0
  %1902 = vmatpush.xpose.msra.mxu0 0.0
  %1903 = vmatpush.xpose.msra.mxu0 0.0
  %1904 = vmatpush.xpose.msra.mxu0 0.0
  %1905 = vmatpush.xpose.msra.mxu0 0.0
  %1906 = vmatpush.xpose.msra.mxu0 0.0
  %1907 = vmatpush.xpose.msra.mxu0 0.0
  %1908 = vmatpush.xpose.msra.mxu0 0.0
  %1909 = vmatpush.xpose.msra.mxu0 0.0
  %1910 = vmatpush.xpose.msra.mxu0 0.0
  %1911 = vmatpush.xpose.msra.mxu0 0.0
  %1912 = vmatpush.xpose.msra.mxu0 0.0
  %1913 = vmatpush.xpose.msra.mxu0 0.0
  %1914 = vmatpush.xpose.msra.mxu0 0.0
  %1915 = vmatpush.xpose.msra.mxu0 %v1898
  %1916 = vmatmul.f32.gmra.mxu0 %v1896
  %v1917 = vpop.f32.mrf.mxu0
  %v1918 = vadd.f32 0.0, %v1917
  %1919 = vdwg.mxu0
  %v1920 = vmul.f32 %v1918, 0.35355338
  %v1921 = vsel %vm919, %v1920, -inf
  %1922 = vmax.xlane.f32.xlu0 %v1921
  %v1923 = vpop.xlane.xlu0 %1922
  %v1924 = vsub.f32 %v1920, %v1923
  %v1925 = vmul.f32 %v1924, 1.442695
  %v1926 = vpow.pop %v1925
  %v1927 = vsel %vm919, %v1926, 0.0
  %1928 = vadd.xlane.f32.xlu0 %v1927
  %v1929 = vpop.xlane.xlu0 %1928
  %v1930 = vrcp.pop %v1929
  %v1931 = vmul.f32 %v1926, %v1930
  %1932 = vrot.lane.b32.xlu0 %v1748, 48
  %v1933 = vpop.permute.xlu0 %1932
  %v1935 = vsel %vm933, %v1931, 0
  %v1937 = vsel %vm937, %v1933, 0
  %1939 = vmatpush.msra.mxu0 0.0
  %1940 = vmatpush.msra.mxu0 0.0
  %1941 = vmatpush.msra.mxu0 0.0
  %1942 = vmatpush.msra.mxu0 0.0
  %1943 = vmatpush.msra.mxu0 0.0
  %1944 = vmatpush.msra.mxu0 0.0
  %1945 = vmatpush.msra.mxu0 0.0
  %1946 = vmatpush.msra.mxu0 0.0
  %1947 = vmatpush.msra.mxu0 0.0
  %1948 = vmatpush.msra.mxu0 0.0
  %1949 = vmatpush.msra.mxu0 0.0
  %1950 = vmatpush.msra.mxu0 0.0
  %1951 = vmatpush.msra.mxu0 0.0
  %1952 = vmatpush.msra.mxu0 0.0
  %1953 = vmatpush.msra.mxu0 0.0
  %1954 = vmatpush.msra.mxu0 %v1937
  %1955 = vmatmul.f32.gmra.mxu0 %v1935
  %v1956 = vpop.f32.mrf.mxu0
  %v1957 = vadd.f32 0.0, %v1956
  %1958 = vdwg.mxu0
  %1960 = vrot.lane.b32.xlu0 %v1957, 16
  %v1961 = vpop.permute.xlu0 %1960
  %1963 = vst.msk [vmem:[#allocation3] sm:$0x1f] %vm1106, %v1961
  %1964 = vrot.lane.b32.xlu0 %v1748, 104
  %v1965 = vpop.permute.xlu0 %1964
  %1966 = vrot.lane.b32.xlu0 %v1748, 72
  %v1967 = vpop.permute.xlu0 %1966
  %v1968 = vsel %vm893, %v1965, 0
  %v1970 = vsel %vm893, %v1967, 0
  %1972 = vmatpush.xpose.msra.mxu0 0.0
  %1973 = vmatpush.xpose.msra.mxu0 0.0
  %1974 = vmatpush.xpose.msra.mxu0 0.0
  %1975 = vmatpush.xpose.msra.mxu0 0.0
  %1976 = vmatpush.xpose.msra.mxu0 0.0
  %1977 = vmatpush.xpose.msra.mxu0 0.0
  %1978 = vmatpush.xpose.msra.mxu0 0.0
  %1979 = vmatpush.xpose.msra.mxu0 0.0
  %1980 = vmatpush.xpose.msra.mxu0 0.0
  %1981 = vmatpush.xpose.msra.mxu0 0.0
  %1982 = vmatpush.xpose.msra.mxu0 0.0
  %1983 = vmatpush.xpose.msra.mxu0 0.0
  %1984 = vmatpush.xpose.msra.mxu0 0.0
  %1985 = vmatpush.xpose.msra.mxu0 0.0
  %1986 = vmatpush.xpose.msra.mxu0 0.0
  %1987 = vmatpush.xpose.msra.mxu0 %v1970
  %1988 = vmatmul.f32.gmra.mxu0 %v1968
  %v1989 = vpop.f32.mrf.mxu0
  %v1990 = vadd.f32 0.0, %v1989
  %1991 = vdwg.mxu0
  %v1992 = vmul.f32 %v1990, 0.35355338
  %v1993 = vsel %vm919, %v1992, -inf
  %1994 = vmax.xlane.f32.xlu0 %v1993
  %v1995 = vpop.xlane.xlu0 %1994
  %v1996 = vsub.f32 %v1992, %v1995
  %v1997 = vmul.f32 %v1996, 1.442695
  %v1998 = vpow.pop %v1997
  %v1999 = vsel %vm919, %v1998, 0.0
  %2000 = vadd.xlane.f32.xlu0 %v1999
  %v2001 = vpop.xlane.xlu0 %2000
  %v2002 = vrcp.pop %v2001
  %v2003 = vmul.f32 %v1998, %v2002
  %2004 = vrot.lane.b32.xlu0 %v1748, 40
  %v2005 = vpop.permute.xlu0 %2004
  %v2007 = vsel %vm933, %v2003, 0
  %v2009 = vsel %vm937, %v2005, 0
  %2011 = vmatpush.msra.mxu0 0.0
  %2012 = vmatpush.msra.mxu0 0.0
  %2013 = vmatpush.msra.mxu0 0.0
  %2014 = vmatpush.msra.mxu0 0.0
  %2015 = vmatpush.msra.mxu0 0.0
  %2016 = vmatpush.msra.mxu0 0.0
  %2017 = vmatpush.msra.mxu0 0.0
  %2018 = vmatpush.msra.mxu0 0.0
  %2019 = vmatpush.msra.mxu0 0.0
  %2020 = vmatpush.msra.mxu0 0.0
  %2021 = vmatpush.msra.mxu0 0.0
  %2022 = vmatpush.msra.mxu0 0.0
  %2023 = vmatpush.msra.mxu0 0.0
  %2024 = vmatpush.msra.mxu0 0.0
  %2025 = vmatpush.msra.mxu0 0.0
  %2026 = vmatpush.msra.mxu0 %v2009
  %2027 = vmatmul.f32.gmra.mxu0 %v2007
  %v2028 = vpop.f32.mrf.mxu0
  %v2029 = vadd.f32 0.0, %v2028
  %2030 = vdwg.mxu0
  %2032 = vrot.lane.b32.xlu0 %v2029, 24
  %v2033 = vpop.permute.xlu0 %2032
  %2035 = vst.msk [vmem:[#allocation3] sm:$0x1f] %vm1179, %v2033
  %v2037 = vrot.slane %v1748, 5
  %v2038 = vrot.slane %v1751, 5
  %v2039 = vsel %vm811, %v2037, %v2038
  %2040 = vrot.lane.b32.xlu0 %v2039, 96
  %v2041 = vpop.permute.xlu0 %2040
  %v2042 = vsel %vm893, %v2039, 0
  %v2044 = vsel %vm893, %v2041, 0
  %2046 = vmatpush.xpose.msra.mxu0 0.0
  %2047 = vmatpush.xpose.msra.mxu0 0.0
  %2048 = vmatpush.xpose.msra.mxu0 0.0
  %2049 = vmatpush.xpose.msra.mxu0 0.0
  %2050 = vmatpush.xpose.msra.mxu0 0.0
  %2051 = vmatpush.xpose.msra.mxu0 0.0
  %2052 = vmatpush.xpose.msra.mxu0 0.0
  %2053 = vmatpush.xpose.msra.mxu0 0.0
  %2054 = vmatpush.xpose.msra.mxu0 0.0
  %2055 = vmatpush.xpose.msra.mxu0 0.0
  %2056 = vmatpush.xpose.msra.mxu0 0.0
  %2057 = vmatpush.xpose.msra.mxu0 0.0
  %2058 = vmatpush.xpose.msra.mxu0 0.0
  %2059 = vmatpush.xpose.msra.mxu0 0.0
  %2060 = vmatpush.xpose.msra.mxu0 0.0
  %2061 = vmatpush.xpose.msra.mxu0 %v2044
  %2062 = vmatmul.f32.gmra.mxu0 %v2042
  %v2063 = vpop.f32.mrf.mxu0
  %v2064 = vadd.f32 0.0, %v2063
  %2065 = vdwg.mxu0
  %v2066 = vmul.f32 %v2064, 0.35355338
  %v2067 = vsel %vm919, %v2066, -inf
  %2068 = vmax.xlane.f32.xlu0 %v2067
  %v2069 = vpop.xlane.xlu0 %2068
  %v2070 = vsub.f32 %v2066, %v2069
  %v2071 = vmul.f32 %v2070, 1.442695
  %v2072 = vpow.pop %v2071
  %v2073 = vsel %vm919, %v2072, 0.0
  %2074 = vadd.xlane.f32.xlu0 %v2073
  %v2075 = vpop.xlane.xlu0 %2074
  %v2076 = vrcp.pop %v2075
  %v2077 = vmul.f32 %v2072, %v2076
  %2078 = vrot.lane.b32.xlu0 %v2039, 64
  %v2079 = vpop.permute.xlu0 %2078
  %v2081 = vsel %vm933, %v2077, 0
  %v2083 = vsel %vm937, %v2079, 0
  %2085 = vmatpush.msra.mxu0 0.0
  %2086 = vmatpush.msra.mxu0 0.0
  %2087 = vmatpush.msra.mxu0 0.0
  %2088 = vmatpush.msra.mxu0 0.0
  %2089 = vmatpush.msra.mxu0 0.0
  %2090 = vmatpush.msra.mxu0 0.0
  %2091 = vmatpush.msra.mxu0 0.0
  %2092 = vmatpush.msra.mxu0 0.0
  %2093 = vmatpush.msra.mxu0 0.0
  %2094 = vmatpush.msra.mxu0 0.0
  %2095 = vmatpush.msra.mxu0 0.0
  %2096 = vmatpush.msra.mxu0 0.0
  %2097 = vmatpush.msra.mxu0 0.0
  %2098 = vmatpush.msra.mxu0 0.0
  %2099 = vmatpush.msra.mxu0 0.0
  %2100 = vmatpush.msra.mxu0 %v2083
  %2101 = vmatmul.f32.gmra.mxu0 %v2081
  %v2102 = vpop.f32.mrf.mxu0
  %v2103 = vadd.f32 0.0, %v2102
  %2104 = vdwg.mxu0
  %2105 = vst.msk [vmem:[#allocation3 + $0x5] sm:$0x1f] %vm960, %v2103
  %2106 = vrot.lane.b32.xlu0 %v2039, 120
  %v2107 = vpop.permute.xlu0 %2106
  %2108 = vrot.lane.b32.xlu0 %v2039, 88
  %v2109 = vpop.permute.xlu0 %2108
  %v2110 = vsel %vm893, %v2107, 0
  %v2112 = vsel %vm893, %v2109, 0
  %2114 = vmatpush.xpose.msra.mxu0 0.0
  %2115 = vmatpush.xpose.msra.mxu0 0.0
  %2116 = vmatpush.xpose.msra.mxu0 0.0
  %2117 = vmatpush.xpose.msra.mxu0 0.0
  %2118 = vmatpush.xpose.msra.mxu0 0.0
  %2119 = vmatpush.xpose.msra.mxu0 0.0
  %2120 = vmatpush.xpose.msra.mxu0 0.0
  %2121 = vmatpush.xpose.msra.mxu0 0.0
  %2122 = vmatpush.xpose.msra.mxu0 0.0
  %2123 = vmatpush.xpose.msra.mxu0 0.0
  %2124 = vmatpush.xpose.msra.mxu0 0.0
  %2125 = vmatpush.xpose.msra.mxu0 0.0
  %2126 = vmatpush.xpose.msra.mxu0 0.0
  %2127 = vmatpush.xpose.msra.mxu0 0.0
  %2128 = vmatpush.xpose.msra.mxu0 0.0
  %2129 = vmatpush.xpose.msra.mxu0 %v2112
  %2130 = vmatmul.f32.gmra.mxu0 %v2110
  %v2131 = vpop.f32.mrf.mxu0
  %v2132 = vadd.f32 0.0, %v2131
  %2133 = vdwg.mxu0
  %v2134 = vmul.f32 %v2132, 0.35355338
  %v2135 = vsel %vm919, %v2134, -inf
  %2136 = vmax.xlane.f32.xlu0 %v2135
  %v2137 = vpop.xlane.xlu0 %2136
  %v2138 = vsub.f32 %v2134, %v2137
  %v2139 = vmul.f32 %v2138, 1.442695
  %v2140 = vpow.pop %v2139
  %v2141 = vsel %vm919, %v2140, 0.0
  %2142 = vadd.xlane.f32.xlu0 %v2141
  %v2143 = vpop.xlane.xlu0 %2142
  %v2144 = vrcp.pop %v2143
  %v2145 = vmul.f32 %v2140, %v2144
  %2146 = vrot.lane.b32.xlu0 %v2039, 56
  %v2147 = vpop.permute.xlu0 %2146
  %v2149 = vsel %vm933, %v2145, 0
  %v2151 = vsel %vm937, %v2147, 0
  %2153 = vmatpush.msra.mxu0 0.0
  %2154 = vmatpush.msra.mxu0 0.0
  %2155 = vmatpush.msra.mxu0 0.0
  %2156 = vmatpush.msra.mxu0 0.0
  %2157 = vmatpush.msra.mxu0 0.0
  %2158 = vmatpush.msra.mxu0 0.0
  %2159 = vmatpush.msra.mxu0 0.0
  %2160 = vmatpush.msra.mxu0 0.0
  %2161 = vmatpush.msra.mxu0 0.0
  %2162 = vmatpush.msra.mxu0 0.0
  %2163 = vmatpush.msra.mxu0 0.0
  %2164 = vmatpush.msra.mxu0 0.0
  %2165 = vmatpush.msra.mxu0 0.0
  %2166 = vmatpush.msra.mxu0 0.0
  %2167 = vmatpush.msra.mxu0 0.0
  %2168 = vmatpush.msra.mxu0 %v2151
  %2169 = vmatmul.f32.gmra.mxu0 %v2149
  %v2170 = vpop.f32.mrf.mxu0
  %v2171 = vadd.f32 0.0, %v2170
  %2172 = vdwg.mxu0
  %2174 = vrot.lane.b32.xlu0 %v2171, 8
  %v2175 = vpop.permute.xlu0 %2174
  %2177 = vst.msk [vmem:[#allocation3 + $0x5] sm:$0x1f] %vm1033, %v2175
  %2178 = vrot.lane.b32.xlu0 %v2039, 112
  %v2179 = vpop.permute.xlu0 %2178
  %2180 = vrot.lane.b32.xlu0 %v2039, 80
  %v2181 = vpop.permute.xlu0 %2180
  %v2182 = vsel %vm893, %v2179, 0
  %v2184 = vsel %vm893, %v2181, 0
  %2186 = vmatpush.xpose.msra.mxu0 0.0
  %2187 = vmatpush.xpose.msra.mxu0 0.0
  %2188 = vmatpush.xpose.msra.mxu0 0.0
  %2189 = vmatpush.xpose.msra.mxu0 0.0
  %2190 = vmatpush.xpose.msra.mxu0 0.0
  %2191 = vmatpush.xpose.msra.mxu0 0.0
  %2192 = vmatpush.xpose.msra.mxu0 0.0
  %2193 = vmatpush.xpose.msra.mxu0 0.0
  %2194 = vmatpush.xpose.msra.mxu0 0.0
  %2195 = vmatpush.xpose.msra.mxu0 0.0
  %2196 = vmatpush.xpose.msra.mxu0 0.0
  %2197 = vmatpush.xpose.msra.mxu0 0.0
  %2198 = vmatpush.xpose.msra.mxu0 0.0
  %2199 = vmatpush.xpose.msra.mxu0 0.0
  %2200 = vmatpush.xpose.msra.mxu0 0.0
  %2201 = vmatpush.xpose.msra.mxu0 %v2184
  %2202 = vmatmul.f32.gmra.mxu0 %v2182
  %v2203 = vpop.f32.mrf.mxu0
  %v2204 = vadd.f32 0.0, %v2203
  %2205 = vdwg.mxu0
  %v2206 = vmul.f32 %v2204, 0.35355338
  %v2207 = vsel %vm919, %v2206, -inf
  %2208 = vmax.xlane.f32.xlu0 %v2207
  %v2209 = vpop.xlane.xlu0 %2208
  %v2210 = vsub.f32 %v2206, %v2209
  %v2211 = vmul.f32 %v2210, 1.442695
  %v2212 = vpow.pop %v2211
  %v2213 = vsel %vm919, %v2212, 0.0
  %2214 = vadd.xlane.f32.xlu0 %v2213
  %v2215 = vpop.xlane.xlu0 %2214
  %v2216 = vrcp.pop %v2215
  %v2217 = vmul.f32 %v2212, %v2216
  %2218 = vrot.lane.b32.xlu0 %v2039, 48
  %v2219 = vpop.permute.xlu0 %2218
  %v2221 = vsel %vm933, %v2217, 0
  %v2223 = vsel %vm937, %v2219, 0
  %2225 = vmatpush.msra.mxu0 0.0
  %2226 = vmatpush.msra.mxu0 0.0
  %2227 = vmatpush.msra.mxu0 0.0
  %2228 = vmatpush.msra.mxu0 0.0
  %2229 = vmatpush.msra.mxu0 0.0
  %2230 = vmatpush.msra.mxu0 0.0
  %2231 = vmatpush.msra.mxu0 0.0
  %2232 = vmatpush.msra.mxu0 0.0
  %2233 = vmatpush.msra.mxu0 0.0
  %2234 = vmatpush.msra.mxu0 0.0
  %2235 = vmatpush.msra.mxu0 0.0
  %2236 = vmatpush.msra.mxu0 0.0
  %2237 = vmatpush.msra.mxu0 0.0
  %2238 = vmatpush.msra.mxu0 0.0
  %2239 = vmatpush.msra.mxu0 0.0
  %2240 = vmatpush.msra.mxu0 %v2223
  %2241 = vmatmul.f32.gmra.mxu0 %v2221
  %v2242 = vpop.f32.mrf.mxu0
  %v2243 = vadd.f32 0.0, %v2242
  %2244 = vdwg.mxu0
  %2246 = vrot.lane.b32.xlu0 %v2243, 16
  %v2247 = vpop.permute.xlu0 %2246
  %2249 = vst.msk [vmem:[#allocation3 + $0x5] sm:$0x1f] %vm1106, %v2247
  %2250 = vrot.lane.b32.xlu0 %v2039, 104
  %v2251 = vpop.permute.xlu0 %2250
  %2252 = vrot.lane.b32.xlu0 %v2039, 72
  %v2253 = vpop.permute.xlu0 %2252
  %v2254 = vsel %vm893, %v2251, 0
  %v2256 = vsel %vm893, %v2253, 0
  %2258 = vmatpush.xpose.msra.mxu0 0.0
  %2259 = vmatpush.xpose.msra.mxu0 0.0
  %2260 = vmatpush.xpose.msra.mxu0 0.0
  %2261 = vmatpush.xpose.msra.mxu0 0.0
  %2262 = vmatpush.xpose.msra.mxu0 0.0
  %2263 = vmatpush.xpose.msra.mxu0 0.0
  %2264 = vmatpush.xpose.msra.mxu0 0.0
  %2265 = vmatpush.xpose.msra.mxu0 0.0
  %2266 = vmatpush.xpose.msra.mxu0 0.0
  %2267 = vmatpush.xpose.msra.mxu0 0.0
  %2268 = vmatpush.xpose.msra.mxu0 0.0
  %2269 = vmatpush.xpose.msra.mxu0 0.0
  %2270 = vmatpush.xpose.msra.mxu0 0.0
  %2271 = vmatpush.xpose.msra.mxu0 0.0
  %2272 = vmatpush.xpose.msra.mxu0 0.0
  %2273 = vmatpush.xpose.msra.mxu0 %v2256
  %2274 = vmatmul.f32.gmra.mxu0 %v2254
  %v2275 = vpop.f32.mrf.mxu0
  %v2276 = vadd.f32 0.0, %v2275
  %2277 = vdwg.mxu0
  %v2278 = vmul.f32 %v2276, 0.35355338
  %v2279 = vsel %vm919, %v2278, -inf
  %2280 = vmax.xlane.f32.xlu0 %v2279
  %v2281 = vpop.xlane.xlu0 %2280
  %v2282 = vsub.f32 %v2278, %v2281
  %v2283 = vmul.f32 %v2282, 1.442695
  %v2284 = vpow.pop %v2283
  %v2285 = vsel %vm919, %v2284, 0.0
  %2286 = vadd.xlane.f32.xlu0 %v2285
  %v2287 = vpop.xlane.xlu0 %2286
  %v2288 = vrcp.pop %v2287
  %v2289 = vmul.f32 %v2284, %v2288
  %2290 = vrot.lane.b32.xlu0 %v2039, 40
  %v2291 = vpop.permute.xlu0 %2290
  %v2293 = vsel %vm933, %v2289, 0
  %v2295 = vsel %vm937, %v2291, 0
  %2297 = vmatpush.msra.mxu0 0.0
  %2298 = vmatpush.msra.mxu0 0.0
  %2299 = vmatpush.msra.mxu0 0.0
  %2300 = vmatpush.msra.mxu0 0.0
  %2301 = vmatpush.msra.mxu0 0.0
  %2302 = vmatpush.msra.mxu0 0.0
  %2303 = vmatpush.msra.mxu0 0.0
  %2304 = vmatpush.msra.mxu0 0.0
  %2305 = vmatpush.msra.mxu0 0.0
  %2306 = vmatpush.msra.mxu0 0.0
  %2307 = vmatpush.msra.mxu0 0.0
  %2308 = vmatpush.msra.mxu0 0.0
  %2309 = vmatpush.msra.mxu0 0.0
  %2310 = vmatpush.msra.mxu0 0.0
  %2311 = vmatpush.msra.mxu0 0.0
  %2312 = vmatpush.msra.mxu0 %v2295
  %2313 = vmatmul.f32.gmra.mxu0 %v2293
  %v2314 = vpop.f32.mrf.mxu0
  %v2315 = vadd.f32 0.0, %v2314
  %2316 = vdwg.mxu0
  %2318 = vrot.lane.b32.xlu0 %v2315, 24
  %v2319 = vpop.permute.xlu0 %2318
  %2321 = vst.msk [vmem:[#allocation3 + $0x5] sm:$0x1f] %vm1179, %v2319
  %v2322 = vld [vmem:[#allocation3] sm:$0xff]
  %v2323 = vld [vmem:[#allocation3 + $0x8] sm:$0x3]
  %s2324 = scalar_lea.vmem %s8, 32
  %v2325 = vld [vmem:[%s2324] sm:$0xff]
  %v2326 = vld [vmem:[%s2324 + $0x8] sm:$0xff]
  %v2327 = vld [vmem:[%s2324 + $0x10] sm:$0xff]
  %v2328 = vld [vmem:[%s2324 + $0x18] sm:$0xff]
  %s2329 = scalar_lea.vmem %s9, 1
  %v2330 = vld [vmem:[%s2329] sm:$0x1]
  %v2332 = vperm.slane %v2330, 0
  %v2335 = vsel %vm781, %v2322, 0
  %v2338 = vsel %vm781, %v2323, 0
  %2340 = vmatpush.msra.mxu0 0.0
  %2341 = vmatpush.msra.mxu0 0.0
  %2342 = vmatpush.msra.mxu0 0.0
  %2343 = vmatpush.msra.mxu0 0.0
  %2344 = vmatpush.msra.mxu0 0.0
  %2345 = vmatpush.msra.mxu0 0.0
  %2346 = vmatpush.msra.mxu0 0.0
  %2347 = vmatpush.msra.mxu0 0.0
  %2348 = vmatpush.msra.mxu0 0.0
  %2349 = vmatpush.msra.mxu0 0.0
  %2350 = vmatpush.msra.mxu0 0.0
  %2351 = vmatpush.msra.mxu0 0.0
  %2352 = vmatpush.msra.mxu0 %v2328
  %2353 = vmatpush.msra.mxu0 %v2327
  %2354 = vmatpush.msra.mxu0 %v2326
  %2355 = vmatpush.msra.mxu0 %v2325
  %2356 = vmatmul.f32.gmra.mxu0 %v2335
  %v2357 = vpop.f32.mrf.mxu0
  %v2358 = vadd.f32 %v2332, %v2357
  %2359 = vmatmul.f32.gmra.mxu0 %v2338
  %v2360 = vpop.f32.mrf.mxu0
  %v2361 = vadd.f32 %v2332, %v2360
  %2362 = vdwg.mxu0
  %v2363 = vadd.f32 %v1712, %v2358
  %v2364 = vadd.f32 %v1713, %v2361
  %s2365 = scalar_lea.vmem %s14, 1
  %v2366 = vld [vmem:[%s2365] sm:$0x1]
  %s2367 = scalar_lea.vmem %s15, 1
  %v2368 = vld [vmem:[%s2367] sm:$0x1]
  %v2369 = vsel %vm781, %v2363, 0.0
  %2370 = vadd.xlane.f32.xlu0 %v2369
  %v2371 = vpop.xlane.xlu0 %2370
  %v2372 = vsel %vm839, %v2364, 0.0
  %2373 = vadd.xlane.f32.xlu0 %v2372
  %v2374 = vpop.xlane.xlu0 %2373
  %v2375 = vmul.f32 %v2371, %v1522
  %v2376 = vmul.f32 %v2374, %v1522
  %v2377 = vsub.f32 %v2363, %v2375
  %v2378 = vsub.f32 %v2364, %v2376
  %v2379 = vmul.f32 %v2377, %v2377
  %v2380 = vmul.f32 %v2378, %v2378
  %v2381 = vsel %vm781, %v2379, 0.0
  %2382 = vadd.xlane.f32.xlu0 %v2381
  %v2383 = vpop.xlane.xlu0 %2382
  %v2384 = vsel %vm839, %v2380, 0.0
  %2385 = vadd.xlane.f32.xlu0 %v2384
  %v2386 = vpop.xlane.xlu0 %2385
  %v2387 = vmul.f32 %v2383, %v1522
  %v2388 = vmul.f32 %v2386, %v1522
  %v2389 = vadd.f32 %v2387, 1e-05
  %v2390 = vadd.f32 %v2388, 1e-05
  %v2391 = vrsqrt.pop %v2389
  %v2392 = vmul.f32 %v2391, %v2389
  %v2393 = vmul.f32 %v2392, %v2391
  %v2394 = vmul.f32 0.5, %v2393
  %v2395 = vsub.f32 1.5, %v2394
  %v2396 = vmul.f32 %v2391, %v2395
  %vm2397 = vweird.f32 %v2389
  %vm2398 = vweird.f32 %v2391
  %vm2399 = vmor %vm2397, %vm2398
  %v2400 = vsel %vm2399, %v2391, %v2396
  %v2401 = vrsqrt.pop %v2390
  %v2402 = vmul.f32 %v2401, %v2390
  %v2403 = vmul.f32 %v2402, %v2401
  %v2404 = vmul.f32 0.5, %v2403
  %v2405 = vsub.f32 1.5, %v2404
  %v2406 = vmul.f32 %v2401, %v2405
  %vm2407 = vweird.f32 %v2390
  %vm2408 = vweird.f32 %v2401
  %vm2409 = vmor %vm2407, %vm2408
  %v2410 = vsel %vm2409, %v2401, %v2406
  %v2411 = vmul.f32 %v2377, %v2400
  %v2412 = vmul.f32 %v2378, %v2410
  %v2414 = vperm.slane %v2366, 0
  %v2416 = vmul.f32 %v2411, %v2414
  %v2417 = vmul.f32 %v2412, %v2414
  %v2419 = vperm.slane %v2368, 0
  %v2421 = vadd.f32 %v2416, %v2419
  %v2422 = vadd.f32 %v2417, %v2419
  %s2423 = scalar_lea.vmem %s10, 32
  %v2424 = vld [vmem:[%s2423] sm:$0xff]
  %v2425 = vld [vmem:[%s2423 + $0x8] sm:$0xff]
  %v2426 = vld [vmem:[%s2423 + $0x10] sm:$0xff]
  %v2427 = vld [vmem:[%s2423 + $0x18] sm:$0xff]
  %s2428 = scalar_lea.vmem %s11, 1
  %v2429 = vld [vmem:[%s2428] sm:$0x1]
  %v2431 = vperm.slane %v2429, 0
  %v2434 = vsel %vm781, %v2421, 0
  %v2437 = vsel %vm781, %v2422, 0
  %2439 = vmatpush.msra.mxu0 0.0
  %2440 = vmatpush.msra.mxu0 0.0
  %2441 = vmatpush.msra.mxu0 0.0
  %2442 = vmatpush.msra.mxu0 0.0
  %2443 = vmatpush.msra.mxu0 0.0
  %2444 = vmatpush.msra.mxu0 0.0
  %2445 = vmatpush.msra.mxu0 0.0
  %2446 = vmatpush.msra.mxu0 0.0
  %2447 = vmatpush.msra.mxu0 0.0
  %2448 = vmatpush.msra.mxu0 0.0
  %2449 = vmatpush.msra.mxu0 0.0
  %2450 = vmatpush.msra.mxu0 0.0
  %2451 = vmatpush.msra.mxu0 %v2427
  %2452 = vmatpush.msra.mxu0 %v2426
  %2453 = vmatpush.msra.mxu0 %v2425
  %2454 = vmatpush.msra.mxu0 %v2424
  %2455 = vmatmul.f32.gmra.mxu0 %v2434
  %v2456 = vpop.f32.mrf.mxu0
  %v2457 = vadd.f32 %v2431, %v2456
  %2458 = vmatmul.f32.gmra.mxu0 %v2437
  %v2459 = vpop.f32.mrf.mxu0
  %v2460 = vadd.f32 %v2431, %v2459
  %2461 = vdwg.mxu0
  %v2462 = vmax.f32 %v2457, 0.0
  %v2463 = vmax.f32 %v2460, 0.0
  %s2464 = scalar_lea.vmem %s12, 64
  %v2465 = vld [vmem:[%s2464] sm:$0xff]
  %v2466 = vld [vmem:[%s2464 + $0x8] sm:$0xff]
  %v2467 = vld [vmem:[%s2464 + $0x10] sm:$0xff]
  %v2468 = vld [vmem:[%s2464 + $0x18] sm:$0xff]
  %v2469 = vld [vmem:[%s2464 + $0x20] sm:$0xff]
  %v2470 = vld [vmem:[%s2464 + $0x28] sm:$0xff]
  %v2471 = vld [vmem:[%s2464 + $0x30] sm:$0xff]
  %v2472 = vld [vmem:[%s2464 + $0x38] sm:$0xff]
  %s2473 = scalar_lea.vmem %s13, 1
  %v2474 = vld [vmem:[%s2473] sm:$0x1]
  %v2476 = vperm.slane %v2474, 0
  %v2479 = vsel %vm1622, %v2462, 0
  %v2482 = vsel %vm1622, %v2463, 0
  %2484 = vmatpush.msra.mxu0 0.0
  %2485 = vmatpush.msra.mxu0 0.0
  %2486 = vmatpush.msra.mxu0 0.0
  %2487 = vmatpush.msra.mxu0 0.0
  %2488 = vmatpush.msra.mxu0 0.0
  %2489 = vmatpush.msra.mxu0 0.0
  %2490 = vmatpush.msra.mxu0 0.0
  %2491 = vmatpush.msra.mxu0 0.0
  %2492 = vmatpush.msra.mxu0 %v2472
  %2493 = vmatpush.msra.mxu0 %v2471
  %2494 = vmatpush.msra.mxu0 %v2470
  %2495 = vmatpush.msra.mxu0 %v2469
  %2496 = vmatpush.msra.mxu0 %v2468
  %2497 = vmatpush.msra.mxu0 %v2467
  %2498 = vmatpush.msra.mxu0 %v2466
  %2499 = vmatpush.msra.mxu0 %v2465
  %2500 = vmatmul.f32.gmra.mxu0 %v2479
  %v2501 = vpop.f32.mrf.mxu0
  %v2502 = vadd.f32 %v2476, %v2501
  %2503 = vmatmul.f32.gmra.mxu0 %v2482
  %v2504 = vpop.f32.mrf.mxu0
  %v2505 = vadd.f32 %v2476, %v2504
  %2506 = vdwg.mxu0
  %v2507 = vadd.f32 %v2421, %v2502
  %v2508 = vadd.f32 %v2422, %v2505
  %s2509 = scalar_lea.vmem %s16, 1
  %v2510 = vld [vmem:[%s2509] sm:$0x1]
  %s2511 = scalar_lea.vmem %s17, 1
  %v2512 = vld [vmem:[%s2511] sm:$0x1]
  %v2513 = vsel %vm781, %v2507, 0.0
  %2514 = vadd.xlane.f32.xlu0 %v2513
  %v2515 = vpop.xlane.xlu0 %2514
  %v2516 = vsel %vm839, %v2508, 0.0
  %2517 = vadd.xlane.f32.xlu0 %v2516
  %v2518 = vpop.xlane.xlu0 %2517
  %v2519 = vmul.f32 %v2515, %v1522
  %v2520 = vmul.f32 %v2518, %v1522
  %v2521 = vsub.f32 %v2507, %v2519
  %v2522 = vsub.f32 %v2508, %v2520
  %v2523 = vmul.f32 %v2521, %v2521
  %v2524 = vmul.f32 %v2522, %v2522
  %v2525 = vsel %vm781, %v2523, 0.0
  %2526 = vadd.xlane.f32.xlu0 %v2525
  %v2527 = vpop.xlane.xlu0 %2526
  %v2528 = vsel %vm839, %v2524, 0.0
  %2529 = vadd.xlane.f32.xlu0 %v2528
  %v2530 = vpop.xlane.xlu0 %2529
  %v2531 = vmul.f32 %v2527, %v1522
  %v2532 = vmul.f32 %v2530, %v1522
  %v2533 = vadd.f32 %v2531, 1e-05
  %v2534 = vadd.f32 %v2532, 1e-05
  %v2535 = vrsqrt.pop %v2533
  %v2536 = vmul.f32 %v2535, %v2533
  %v2537 = vmul.f32 %v2536, %v2535
  %v2538 = vmul.f32 0.5, %v2537
  %v2539 = vsub.f32 1.5, %v2538
  %v2540 = vmul.f32 %v2535, %v2539
  %vm2541 = vweird.f32 %v2533
  %vm2542 = vweird.f32 %v2535
  %vm2543 = vmor %vm2541, %vm2542
  %v2544 = vsel %vm2543, %v2535, %v2540
  %v2545 = vrsqrt.pop %v2534
  %v2546 = vmul.f32 %v2545, %v2534
  %v2547 = vmul.f32 %v2546, %v2545
  %v2548 = vmul.f32 0.5, %v2547
  %v2549 = vsub.f32 1.5, %v2548
  %v2550 = vmul.f32 %v2545, %v2549
  %vm2551 = vweird.f32 %v2534
  %vm2552 = vweird.f32 %v2545
  %vm2553 = vmor %vm2551, %vm2552
  %v2554 = vsel %vm2553, %v2545, %v2550
  %v2555 = vmul.f32 %v2521, %v2544
  %v2556 = vmul.f32 %v2522, %v2554
  %v2558 = vperm.slane %v2510, 0
  %v2560 = vmul.f32 %v2555, %v2558
  %v2561 = vmul.f32 %v2556, %v2558
  %v2563 = vperm.slane %v2512, 0
  %v2565 = vadd.f32 %v2560, %v2563
  %v2566 = vadd.f32 %v2561, %v2563
  %2567 = vst.msk [vmem:[#allocation2] sm:$0xff] %vm781, %v2565
  %2568 = vst.msk [vmem:[#allocation2 + $0x8] sm:$0x3] %vm839, %v2566
  %v2569 = vld [vmem:[#allocation2] sm:$0xff]
  %v2570 = vld [vmem:[#allocation2 + $0x8] sm:$0x3]
  %v2571 = vld [vmem:[%s18] sm:$0x1]
  %v2572 = vld [vmem:[%s19] sm:$0x1]
  %v2573 = vsel %vm781, %v2569, 0.0
  %2574 = vadd.xlane.f32.xlu0 %v2573
  %v2575 = vpop.xlane.xlu0 %2574
  %v2576 = vsel %vm839, %v2570, 0.0
  %2577 = vadd.xlane.f32.xlu0 %v2576
  %v2578 = vpop.xlane.xlu0 %2577
  %v2579 = vmul.f32 %v2575, %v1522
  %v2580 = vmul.f32 %v2578, %v1522
  %v2581 = vsub.f32 %v2569, %v2579
  %v2582 = vsub.f32 %v2570, %v2580
  %v2583 = vmul.f32 %v2581, %v2581
  %v2584 = vmul.f32 %v2582, %v2582
  %v2585 = vsel %vm781, %v2583, 0.0
  %2586 = vadd.xlane.f32.xlu0 %v2585
  %v2587 = vpop.xlane.xlu0 %2586
  %v2588 = vsel %vm839, %v2584, 0.0
  %2589 = vadd.xlane.f32.xlu0 %v2588
  %v2590 = vpop.xlane.xlu0 %2589
  %v2591 = vmul.f32 %v2587, %v1522
  %v2592 = vmul.f32 %v2590, %v1522
  %v2593 = vadd.f32 %v2591, 1e-05
  %v2594 = vadd.f32 %v2592, 1e-05
  %v2595 = vrsqrt.pop %v2593
  %v2596 = vmul.f32 %v2595, %v2593
  %v2597 = vmul.f32 %v2596, %v2595
  %v2598 = vmul.f32 0.5, %v2597
  %v2599 = vsub.f32 1.5, %v2598
  %v2600 = vmul.f32 %v2595, %v2599
  %vm2601 = vweird.f32 %v2593
  %vm2602 = vweird.f32 %v2595
  %vm2603 = vmor %vm2601, %vm2602
  %v2604 = vsel %vm2603, %v2595, %v2600
  %v2605 = vrsqrt.pop %v2594
  %v2606 = vmul.f32 %v2605, %v2594
  %v2607 = vmul.f32 %v2606, %v2605
  %v2608 = vmul.f32 0.5, %v2607
  %v2609 = vsub.f32 1.5, %v2608
  %v2610 = vmul.f32 %v2605, %v2609
  %vm2611 = vweird.f32 %v2594
  %vm2612 = vweird.f32 %v2605
  %vm2613 = vmor %vm2611, %vm2612
  %v2614 = vsel %vm2613, %v2605, %v2610
  %v2615 = vmul.f32 %v2581, %v2604
  %v2616 = vmul.f32 %v2582, %v2614
  %v2618 = vperm.slane %v2571, 0
  %v2620 = vmul.f32 %v2615, %v2618
  %v2621 = vmul.f32 %v2616, %v2618
  %v2623 = vperm.slane %v2572, 0
  %v2625 = vadd.f32 %v2620, %v2623
  %v2626 = vadd.f32 %v2621, %v2623
  %2627 = vst.msk [vmem:[%s20] sm:$0xff] %vm781, %v2625
  %2628 = vst.msk [vmem:[%s20 + $0x8] sm:$0x3] %vm839, %v2626
  // Predicated region
  $region82: #{_lambda_.1} parent=0 // pred_check
    _
  $region83: #{_lambda_.1} parent=0 // pred_check_branch
    %2630 = sbr.rel (0) target = $region85
  $region84: #{_lambda_.1} parent=0 // pred_region
    _
  $region85: #{_lambda_.1} parent=0 // pred_fallthru
    _
  // Predicated region
  $region86: #{_lambda_.1} parent=0 // pred_check
    _
  $region87: #{_lambda_.1} parent=0 // pred_check_branch
    %2632 = sbr.rel (0) target = $region89
  $region88: #{_lambda_.1} parent=0 // pred_region
    _
  $region89: #{_lambda_.1} parent=0 // pred_fallthru
    _

</llo_original>
